<compile_context>
chip_gen: v7x
topology: tpu7x:2x2x1
jax: 0.10.0
libtpu: 0.0.40
codegen_flags: <defaults>
</compile_context>

<pallas_src>
import functools
import math
from types import SimpleNamespace

import jax
import jax.numpy as jnp
from jax import lax
from jax.experimental import pallas as pl
from jax.experimental.pallas import tpu as pltpu


def _round_up(x, m):
    return ((x + m - 1) // m) * m


@functools.lru_cache(maxsize=None)
def _vmem_limit_bytes():
    """Generation-aware scoped-VMEM budget (v7x: ~48 MiB; v5e/v6e: up to 100 MiB)."""
    cap = 64 * 1024 * 1024
    try:
        cap = int(getattr(pltpu.get_tpu_info(), "vmem_capacity_bytes", cap))
    except Exception:
        pass
    return int(min(max(cap - 16 * 1024 * 1024, 32 * 1024 * 1024), 100 * 1024 * 1024))


def _choose_tile(dim, max_tile):
    """Pick (tile, padded_dim). Small dims get a single full-dim block (no padding)."""
    if dim <= max_tile:
        return dim, dim
    for t in (max_tile, max_tile // 2, max_tile // 4, 128):
        if dim % t == 0:
            return t, dim
    return max_tile, _round_up(dim, max_tile)


# -----------------------------------------------------------------------------
# Pallas kernels
# -----------------------------------------------------------------------------

def _linear_kernel(*refs, activation, has_residual):
    """Tiled matmul with K-accumulation and fused bias/GELU/residual epilogue."""
    if has_residual:
        x_ref, w_ref, b_ref, r_ref, o_ref, acc_ref = refs
    else:
        x_ref, w_ref, b_ref, o_ref, acc_ref = refs
        r_ref = None
    k = pl.program_id(2)

    @pl.when(k == 0)
    def _():
        acc_ref[...] = jnp.zeros_like(acc_ref)

    acc_ref[...] += jnp.dot(x_ref[...], w_ref[...],
                            preferred_element_type=jnp.float32)

    @pl.when(k == pl.num_programs(2) - 1)
    def _():
        acc = acc_ref[...] + b_ref[...]
        if activation == "gelu":
            # exact (erf) GELU, matching torch.nn.GELU default
            acc = 0.5 * acc * (1.0 + lax.erf(acc * (1.0 / math.sqrt(2.0))))
        if has_residual:
            acc = acc + r_ref[...]
        o_ref[...] = acc.astype(o_ref.dtype)


def pallas_linear(x, w, b, activation=None, residual=None, out_dtype=jnp.float32):
    """y = act(x @ w + b) [+ residual]; bf16 MXU inputs, f32 accumulation."""
    lead = x.shape[:-1]
    K = x.shape[-1]
    N = w.shape[-1]
    x2 = x.reshape(-1, K)
    if x2.dtype != jnp.bfloat16:
        x2 = x2.astype(jnp.bfloat16)
    M = x2.shape[0]

    tm, Mp = _choose_tile(M, 512)
    tn, Np = _choose_tile(N, 512)
    tk, Kp = _choose_tile(K, 1024)

    if (Mp, Kp) != (M, K):
        x2 = jnp.pad(x2, ((0, Mp - M), (0, Kp - K)))
    w2 = w if w.dtype == jnp.bfloat16 else w.astype(jnp.bfloat16)
    if (Kp, Np) != (K, N):
        w2 = jnp.pad(w2, ((0, Kp - K), (0, Np - N)))
    b2 = b.astype(jnp.float32).reshape(1, N)
    if Np != N:
        b2 = jnp.pad(b2, ((0, 0), (0, Np - N)))

    grid = (Mp // tm, Np // tn, Kp // tk)

    in_specs = [
        pl.BlockSpec((tm, tk), lambda i, j, k: (i, k)),
        pl.BlockSpec((tk, tn), lambda i, j, k: (k, j)),
        pl.BlockSpec((1, tn), lambda i, j, k: (0, j)),
    ]
    args = [x2, w2, b2]
    has_residual = residual is not None
    if has_residual:
        r2 = residual.reshape(-1, N).astype(jnp.float32)
        if (Mp, Np) != r2.shape:
            r2 = jnp.pad(r2, ((0, Mp - M), (0, Np - N)))
        in_specs.append(pl.BlockSpec((tm, tn), lambda i, j, k: (i, j)))
        args.append(r2)

    out = pl.pallas_call(
        functools.partial(_linear_kernel, activation=activation,
                          has_residual=has_residual),
        out_shape=jax.ShapeDtypeStruct((Mp, Np), out_dtype),
        grid=grid,
        in_specs=in_specs,
        out_specs=pl.BlockSpec((tm, tn), lambda i, j, k: (i, j)),
        scratch_shapes=[pltpu.VMEM((tm, tn), jnp.float32)],
        compiler_params=pltpu.CompilerParams(
            dimension_semantics=("parallel", "parallel", "arbitrary"),
            vmem_limit_bytes=_vmem_limit_bytes()),
    )(*args)
    if (Mp, Np) != (M, N):
        out = out[:M, :N]
    return out.reshape(*lead, N)


def _layernorm_kernel(x_ref, g_ref, b_ref, o_ref, *, eps):
    x = x_ref[...].astype(jnp.float32)
    mean = jnp.mean(x, axis=-1, keepdims=True)
    xc = x - mean
    var = jnp.mean(xc * xc, axis=-1, keepdims=True)
    y = xc * lax.rsqrt(var + eps)
    o_ref[...] = (y * g_ref[...] + b_ref[...]).astype(o_ref.dtype)


def pallas_layernorm(x, g, b, eps=1e-5, out_dtype=jnp.float32):
    lead = x.shape[:-1]
    D = x.shape[-1]
    x2 = x.reshape(-1, D)          # no host-side cast: kernel up-casts on load
    M = x2.shape[0]
    tm, Mp = _choose_tile(M, 1024)
    if Mp != M:
        x2 = jnp.pad(x2, ((0, Mp - M), (0, 0)))
    out = pl.pallas_call(
        functools.partial(_layernorm_kernel, eps=eps),
        out_shape=jax.ShapeDtypeStruct((Mp, D), out_dtype),
        grid=(Mp // tm,),
        in_specs=[
            pl.BlockSpec((tm, D), lambda i: (i, 0)),
            pl.BlockSpec((1, D), lambda i: (0, 0)),
            pl.BlockSpec((1, D), lambda i: (0, 0)),
        ],
        out_specs=pl.BlockSpec((tm, D), lambda i: (i, 0)),
        compiler_params=pltpu.CompilerParams(
            dimension_semantics=("parallel",),
            vmem_limit_bytes=_vmem_limit_bytes()),
    )(x2, g.reshape(1, D).astype(jnp.float32), b.reshape(1, D).astype(jnp.float32))
    if Mp != M:
        out = out[:M]
    return out.reshape(*lead, D)


def _flash_attn_kernel(q_ref, k_ref, v_ref, o_ref, m_ref, l_ref, acc_ref, *,
                       kv_len, tkv, masked):
    """One (batch, head, q-tile) per outer grid point; kv tiles stream on axis 3."""
    ki = pl.program_id(3)

    @pl.when(ki == 0)
    def _():
        m_ref[...] = jnp.full_like(m_ref, -jnp.inf)
        l_ref[...] = jnp.zeros_like(l_ref)
        acc_ref[...] = jnp.zeros_like(acc_ref)

    q = q_ref[0, 0]                                    # (tq, Dh) bf16 (scale pre-folded)
    k = k_ref[0, 0]                                    # (tkv, Dh) bf16
    v = v_ref[0, 0]                                    # (tkv, Dh) bf16
    s = lax.dot_general(q, k, (((1,), (1,)), ((), ())),
                        preferred_element_type=jnp.float32)      # (tq, tkv)
    if masked:
        col = ki * tkv + lax.broadcasted_iota(jnp.int32, s.shape, 1)
        s = jnp.where(col < kv_len, s, -jnp.inf)

    m_prev = m_ref[...]
    m_new = jnp.maximum(m_prev, jnp.max(s, axis=-1, keepdims=True))
    alpha = jnp.exp(m_prev - m_new)
    p = jnp.exp(s - m_new)
    l_ref[...] = alpha * l_ref[...] + jnp.sum(p, axis=-1, keepdims=True)
    acc_ref[...] = alpha * acc_ref[...] + jnp.dot(p.astype(v.dtype), v,
                                                  preferred_element_type=jnp.float32)
    m_ref[...] = m_new

    @pl.when(ki == pl.num_programs(3) - 1)
    def _():
        o_ref[0, 0] = (acc_ref[...] *
                       pl.reciprocal(l_ref[...], approx=True)).astype(o_ref.dtype)


def pallas_attention(q, k, v):
    """q, k, v: (B, H, S, Dh) bf16 (softmax scale already folded into q) -> bf16."""
    B, H, S, Dh = q.shape
    if S <= 512:
        tq = tkv = S
        Sp = S
    else:
        Sp = _round_up(S, 128)
        tkv = next(t for t in (512, 256, 128) if Sp % t == 0)
        tq = 256 if Sp % 256 == 0 else 128
    masked = Sp != S
    if masked:
        pad = ((0, 0), (0, 0), (0, Sp - S), (0, 0))
        q, k, v = jnp.pad(q, pad), jnp.pad(k, pad), jnp.pad(v, pad)

    q_spec = pl.BlockSpec((1, 1, tq, Dh), lambda b, h, qi, ki: (b, h, qi, 0))
    kv_spec = pl.BlockSpec((1, 1, tkv, Dh), lambda b, h, qi, ki: (b, h, ki, 0))

    out = pl.pallas_call(
        functools.partial(_flash_attn_kernel, kv_len=S, tkv=tkv, masked=masked),
        out_shape=jax.ShapeDtypeStruct((B, H, Sp, Dh), jnp.bfloat16),
        grid=(B, H, Sp // tq, Sp // tkv),
        in_specs=[q_spec, kv_spec, kv_spec],
        out_specs=q_spec,
        scratch_shapes=[pltpu.VMEM((tq, 1), jnp.float32),
                        pltpu.VMEM((tq, 1), jnp.float32),
                        pltpu.VMEM((tq, Dh), jnp.float32)],
        compiler_params=pltpu.CompilerParams(
            dimension_semantics=("parallel", "parallel", "parallel", "arbitrary"),
            vmem_limit_bytes=_vmem_limit_bytes()),
    )(q, k, v)
    if Sp != S:
        out = out[:, :, :S]
    return out


# -----------------------------------------------------------------------------
# FSQ quantization (plain JAX: d=6 lane layout is hostile to vreg packing)
# -----------------------------------------------------------------------------

def fsq_quantize(z, levels):
    """Finite scalar quantization. z: (..., d); forward semantics of round_ste."""
    # TODO(synk): forward-only (no straight-through estimator); fine for inference.
    lv = jnp.asarray(levels, jnp.float32)
    eps = 1e-3
    half_l = (lv - 1.0) * (1.0 - eps) / 2.0
    offset = jnp.where(jnp.asarray(levels) % 2 == 0, 0.5, 0.0).astype(jnp.float32)
    shift = jnp.arctanh(offset / half_l)
    half_width = jnp.floor(lv / 2.0)

    z = z.astype(jnp.float32)
    bounded = jnp.tanh(z + shift) * half_l - offset
    quantized = jnp.round(bounded)
    zhat = quantized / half_width

    codes = jnp.round(zhat * half_width + half_width)       # in [0, L-1]
    basis = jnp.concatenate([jnp.ones((1,), jnp.float32), jnp.cumprod(lv[:-1])])
    indices = jnp.sum(codes * basis, axis=-1).astype(jnp.int32)
    return zhat, indices


# -----------------------------------------------------------------------------
# Haar DWT / iDWT (Patcher / UnPatcher) -- strided slicing glue in plain JAX
# TODO(synk): band ordering / normalization follow the orthonormal Haar convention;
#             verify against the exact Patcher() implementation if bit-exactness is needed.
# -----------------------------------------------------------------------------

_SQRT2 = math.sqrt(2.0)


def _haar_split(x, axis):
    n = x.shape[axis]
    a = lax.slice_in_dim(x, 0, n, 2, axis)
    b = lax.slice_in_dim(x, 1, n, 2, axis)
    return (a + b) / _SQRT2, (a - b) / _SQRT2


def _haar_merge(l, h, axis):
    a = (l + h) / _SQRT2
    b = (l - h) / _SQRT2
    stacked = jnp.stack([a, b], axis=axis + 1)
    shp = list(l.shape)
    shp[axis] = shp[axis] * 2
    return stacked.reshape(shp)


def dwt3d(x):
    """(B, C, T, H, W) -> (B, 8C, T/2, H/2, W/2), band-major channel order."""
    tl, th = _haar_split(x, 2)
    bands = []
    for tb in (tl, th):
        hl, hh = _haar_split(tb, 3)
        for hb in (hl, hh):
            wl, wh = _haar_split(hb, 4)
            bands += [wl, wh]
    return jnp.concatenate(bands, axis=1)


def idwt3d(x):
    """(B, 8C, T/2, H/2, W/2) -> (B, C, T, H, W)."""
    bands = jnp.split(x, 8, axis=1)
    hb = [_haar_merge(bands[2 * i], bands[2 * i + 1], 4) for i in range(4)]
    tb = [_haar_merge(hb[2 * i], hb[2 * i + 1], 3) for i in range(2)]
    return _haar_merge(tb[0], tb[1], 2)


# -----------------------------------------------------------------------------
# Model: parameters & forward
# -----------------------------------------------------------------------------

MODEL_SIZES = {
    "tiny":  dict(width=64,  num_layers=2,  num_heads=4),
    "small": dict(width=512, num_layers=8,  num_heads=8),
    "base":  dict(width=768, num_layers=12, num_heads=12),
    "large": dict(width=1024, num_layers=24, num_heads=16),
}


def _trunc_normal(key, shape, std=0.02):
    return jax.random.truncated_normal(key, -2.0, 2.0, shape, jnp.float32) * std


def _xavier_uniform(key, shape, fan_in, fan_out):
    limit = math.sqrt(6.0 / (fan_in + fan_out))
    return jax.random.uniform(key, shape, jnp.float32, -limit, limit)


def _init_block(key, width):
    ks = jax.random.split(key, 4)
    bf16 = jnp.bfloat16
    return dict(
        ln1_g=jnp.ones((width,), jnp.float32), ln1_b=jnp.zeros((width,), jnp.float32),
        qkv_w=_trunc_normal(ks[0], (width, 3 * width)).astype(bf16),
        qkv_b=jnp.zeros((3 * width,), jnp.float32),
        proj_w=_trunc_normal(ks[1], (width, width)).astype(bf16),
        proj_b=jnp.zeros((width,), jnp.float32),
        ln2_g=jnp.ones((width,), jnp.float32), ln2_b=jnp.zeros((width,), jnp.float32),
        fc1_w=_trunc_normal(ks[2], (width, 4 * width)).astype(bf16),
        fc1_b=jnp.zeros((4 * width,), jnp.float32),
        fc2_w=_trunc_normal(ks[3], (4 * width, width)).astype(bf16),
        fc2_b=jnp.zeros((width,), jnp.float32),
    )


def _transformer_block(p, x, num_heads):
    B, S, D = x.shape
    Dh = D // num_heads
    scale = 1.0 / math.sqrt(Dh)
    # LN -> QKV (LN emits bf16 so the matmul consumes it directly)
    h = pallas_layernorm(x, p["ln1_g"], p["ln1_b"], out_dtype=jnp.bfloat16)
    qkv = pallas_linear(h, p["qkv_w"], p["qkv_b"], out_dtype=jnp.bfloat16)  # (B,S,3D)
    q, k, v = jnp.split(qkv, 3, axis=-1)

    def to_heads(t):
        return t.reshape(B, S, num_heads, Dh).transpose(0, 2, 1, 3)         # (B,H,S,Dh)

    # fold softmax scale into q (O(S*D) instead of scaling the (S,S) score matrix)
    q = (to_heads(q) * scale).astype(jnp.bfloat16)
    o = pallas_attention(q, to_heads(k), to_heads(v))                        # bf16
    o = o.transpose(0, 2, 1, 3).reshape(B, S, D)                             # bf16 traffic
    # projection with fused residual add
    x = pallas_linear(o, p["proj_w"], p["proj_b"], residual=x)
    # MLP with fused GELU and fused residual add
    h = pallas_layernorm(x, p["ln2_g"], p["ln2_b"], out_dtype=jnp.bfloat16)
    h = pallas_linear(h, p["fc1_w"], p["fc1_b"], activation="gelu",
                      out_dtype=jnp.bfloat16)
    x = pallas_linear(h, p["fc2_w"], p["fc2_b"], residual=x)
    return x


class TiTokPallas:
    def __init__(self, config, key):
        self.config = config
        tc = config.model.titok
        ds = config.dataset
        self.grid = [ds.num_frames, ds.resolution, ds.resolution]
        self.patch_size = [tc.temporal_patch_size, tc.spatial_patch_size, tc.spatial_patch_size]
        assert all(x % 2 == 0 for x in self.patch_size), "patch sizes must be multiple of two"
        assert all(x % y == 0 for x, y in zip(self.grid, self.patch_size)), \
            "input dimensions should be evenly divisible by respective patch sizes"

        self.levels = list(tc.fsq_levels)
        self.token_size = len(self.levels)
        self.num_latent = tc.num_latent_tokens
        self.in_grid = [g // 2 for g in self.grid]             # post-DWT grid
        self.inner_patch = [p // 2 for p in self.patch_size]   # post-DWT patch
        self.in_channels = 3 * 8
        self.grid_tokens = (self.in_grid[0] // self.inner_patch[0]) * \
                           (self.in_grid[1] // self.inner_patch[1]) * \
                           (self.in_grid[2] // self.inner_patch[2])
        self.patch_vol = self.inner_patch[0] * self.inner_patch[1] * self.inner_patch[2]

        enc_cfg = MODEL_SIZES[tc.encoder_size]
        dec_cfg = MODEL_SIZES[tc.decoder_size]
        self.enc_heads = enc_cfg["num_heads"]
        self.dec_heads = dec_cfg["num_heads"]

        ke, kd = jax.random.split(key)
        self.enc_params = self._init_encoder(ke, enc_cfg)
        self.dec_params = self._init_decoder(kd, dec_cfg)

    # ---- parameter init (big matmul weights pre-cast to bf16; tiny ones stay f32) ----
    def _init_encoder(self, key, cfg):
        width, layers = cfg["width"], cfg["num_layers"]
        pk = self.in_channels * self.patch_vol
        ks = jax.random.split(key, layers + 6)
        return dict(
            patch_w=_xavier_uniform(ks[0], (pk, width),
                                    fan_in=pk, fan_out=width * self.patch_vol
                                    ).astype(jnp.bfloat16),
            patch_b=jnp.zeros((width,), jnp.float32),
            pos_embed=_trunc_normal(ks[1], (self.grid_tokens, width)),
            latent_tokens=_trunc_normal(ks[2], (self.num_latent, width)),
            latent_pos=_trunc_normal(ks[3], (self.num_latent, width)),
            ln_pre_g=jnp.ones((width,)), ln_pre_b=jnp.zeros((width,)),
            ln_post_g=jnp.ones((width,)), ln_post_b=jnp.zeros((width,)),
            blocks=[_init_block(ks[4 + i], width) for i in range(layers)],
            # degenerate (N = token_size) projection stays f32 / XLA
            out_w=_trunc_normal(ks[4 + layers], (width, self.token_size)),
            out_b=jnp.zeros((self.token_size,), jnp.float32),
        )

    def _init_decoder(self, key, cfg):
        width, layers = cfg["width"], cfg["num_layers"]
        po = self.in_channels * self.patch_vol
        ks = jax.random.split(key, layers + 6)
        return dict(
            # degenerate (K = token_size) embedding stays f32 / XLA
            emb_w=_trunc_normal(ks[0], (self.token_size, width)),
            emb_b=jnp.zeros((width,), jnp.float32),
            mask_token=_trunc_normal(ks[1], (1, width)),
            pos_embed=_trunc_normal(ks[2], (self.grid_tokens, width)),
            latent_pos=_trunc_normal(ks[3], (self.num_latent, width)),
            ln_pre_g=jnp.ones((width,)), ln_pre_b=jnp.zeros((width,)),
            ln_post_g=jnp.ones((width,)), ln_post_b=jnp.zeros((width,)),
            blocks=[_init_block(ks[4 + i], width) for i in range(layers)],
            out_w=_trunc_normal(ks[4 + layers], (width, po)).astype(jnp.bfloat16),
            out_b=jnp.zeros((po,), jnp.float32),
        )

    # ---- sub-forwards ----
    def _patchify(self, x):
        # x: (B, C, T, H, W) -> (B, Np, C*pt*ph*pw)  (channel-major within a patch == Conv3d flatten)
        B, C, T, H, W = x.shape
        pt, ph, pw = self.inner_patch
        nT, nH, nW = T // pt, H // ph, W // pw
        x = x.reshape(B, C, nT, pt, nH, ph, nW, pw)
        x = x.transpose(0, 2, 4, 6, 1, 3, 5, 7)
        return x.reshape(B, nT * nH * nW, C * pt * ph * pw)

    def _unpatchify(self, x):
        # x: (B, Np, C*pt*ph*pw) -> (B, C, T, H, W)
        B = x.shape[0]
        C = self.in_channels
        pt, ph, pw = self.inner_patch
        Tg, Hg, Wg = self.in_grid
        nT, nH, nW = Tg // pt, Hg // ph, Wg // pw
        x = x.reshape(B, nT, nH, nW, C, pt, ph, pw)
        x = x.transpose(0, 4, 1, 5, 2, 6, 3, 7)
        return x.reshape(B, C, Tg, Hg, Wg)

    def _encoder(self, p, x_dwt):
        B = x_dwt.shape[0]
        patches = self._patchify(x_dwt)
        width = p["pos_embed"].shape[-1]
        # patch embedding with pos-embed add fused into the matmul epilogue
        pos = jnp.broadcast_to(p["pos_embed"][None], (B, self.grid_tokens, width))
        x = pallas_linear(patches, p["patch_w"], p["patch_b"], residual=pos)  # (B,Np,W)
        lat = (p["latent_tokens"] + p["latent_pos"])[None]
        lat = jnp.broadcast_to(lat, (B,) + lat.shape[1:])
        x = jnp.concatenate([x, lat], axis=1)
        x = pallas_layernorm(x, p["ln_pre_g"], p["ln_pre_b"])
        for blk in p["blocks"]:
            x = _transformer_block(blk, x, self.enc_heads)
        x = pallas_layernorm(x, p["ln_post_g"], p["ln_post_b"])
        lat_out = x[:, self.grid_tokens:]                                     # (B, Nl, W)
        # degenerate GEMM (N = token_size): plain XLA beats a 6->128-padded pallas_call
        return jnp.dot(lat_out, p["out_w"]) + p["out_b"]                      # (B, Nl, token_size)

    def _decoder(self, p, zq):
        B = zq.shape[0]
        # degenerate GEMM (K = token_size): plain XLA; latent-pos add fused here
        lat = jnp.dot(zq.astype(jnp.float32), p["emb_w"]) + p["emb_b"] + p["latent_pos"][None]
        mask = (p["mask_token"] + p["pos_embed"])[None]                       # (1, Np, W)
        mask = jnp.broadcast_to(mask, (B,) + mask.shape[1:])
        x = jnp.concatenate([mask, lat], axis=1)
        x = pallas_layernorm(x, p["ln_pre_g"], p["ln_pre_b"])
        for blk in p["blocks"]:
            x = _transformer_block(blk, x, self.dec_heads)
        x = pallas_layernorm(x, p["ln_post_g"], p["ln_post_b"], out_dtype=jnp.bfloat16)
        grid_tok = x[:, :self.grid_tokens]
        out = pallas_linear(grid_tok, p["out_w"], p["out_b"])                 # (B, Np, C*patch_vol)
        return self._unpatchify(out)

    # ---- public API mirroring the nn.Module ----
    def encode(self, x):
        x = x / 2.0
        x_dwt = dwt3d(x)
        z = self._encoder(self.enc_params, x_dwt)
        x_q, indices = fsq_quantize(z, self.levels)
        out_dict = {"min_encoding_indices": indices}
        return x_q, x_dwt, out_dict

    def decode(self, x_q):
        x_dwt = self._decoder(self.dec_params, x_q)
        x = idwt3d(x_dwt)
        x = x * 2.0
        return x, x_dwt

    def forward(self, x):
        x_q, target_dwt, out_dict = self.encode(x)
        x_rec, recon_dwt = self.decode(x_q)
        out_dict["target_dwt"] = target_dwt
        out_dict["recon_dwt"] = recon_dwt
        return x_rec, out_dict


# -----------------------------------------------------------------------------
# Main
# -----------------------------------------------------------------------------

if __name__ == "__main__":
    config = SimpleNamespace(
        model=SimpleNamespace(
            titok=SimpleNamespace(
                encoder_size="tiny",
                decoder_size="tiny",
                temporal_patch_size=2,
                spatial_patch_size=4,
                num_latent_tokens=8,
                fsq_levels=[8, 8, 8, 5, 5, 5],
            )
        ),
        dataset=SimpleNamespace(num_frames=4, resolution=16),
    )

    key = jax.random.PRNGKey(0)
    model = TiTokPallas(config, key)

    x = jax.random.normal(jax.random.PRNGKey(1), (2, 3, 4, 16, 16), jnp.float32)

    fwd = jax.jit(model.forward)
    x_rec, out_dict = fwd(x)
    jax.block_until_ready(x_rec)
    jax.block_until_ready(out_dict["recon_dwt"])

    assert x_rec.shape == x.shape
    assert out_dict["target_dwt"].shape == (2, 24, 2, 8, 8)
    assert out_dict["recon_dwt"].shape == (2, 24, 2, 8, 8)
    assert out_dict["min_encoding_indices"].shape == (2, config.model.titok.num_latent_tokens)
    print("KERNEL_OK")
</pallas_src>

<mosaic_0001>
module attributes {stable_mosaic.version = 11 : i64} {
  func.func @_linear_kernel(%arg0: i32, %arg1: i32, %arg2: i32, %arg3: memref<64x96xbf16, #tpu.memory_space<vmem>>, %arg4: memref<96x64xbf16, #tpu.memory_space<vmem>>, %arg5: memref<1x64xf32, #tpu.memory_space<vmem>>, %arg6: memref<64x64xf32, #tpu.memory_space<vmem>>, %arg7: memref<64x64xf32, #tpu.memory_space<vmem>>, %arg8: memref<64x64xf32, #tpu.memory_space<vmem>>) attributes {dimension_semantics = [#tpu.dimension_semantics<parallel>, #tpu.dimension_semantics<parallel>, #tpu.dimension_semantics<arbitrary>], iteration_bounds = array<i64: 1, 1, 1>, scalar_prefetch = 0 : i64, scratch_operands = 1 : i64, tpu.core_type = #tpu.core_type<tc>, window_params = [{transform_indices = @transform_0, window_bounds = array<i64: 64, 96>}, {transform_indices = @transform_1, window_bounds = array<i64: 96, 64>}, {transform_indices = @transform_2, window_bounds = array<i64: 1, 64>}, {transform_indices = @transform_3, window_bounds = array<i64: 64, 64>}, {transform_indices = @transform_4, window_bounds = array<i64: 64, 64>}]} {
    %c0_i32 = arith.constant 0 : i32
    %0 = arith.cmpi eq, %arg2, %c0_i32 : i32
    %1 = arith.extui %0 : i1 to i32
    %c0_i32_0 = arith.constant 0 : i32
    %2 = arith.cmpi ne, %1, %c0_i32_0 : i32
    scf.if %2 {
      %cst_10 = arith.constant 0.000000e+00 : f32
      %12 = vector.broadcast %cst_10 : f32 to vector<64x64xf32>
      %c0_11 = arith.constant 0 : index
      %c0_12 = arith.constant 0 : index
      %13 = vector.load %arg8[%c0_11, %c0_12] : memref<64x64xf32, #tpu.memory_space<vmem>>, vector<64x64xf32>
      tpu.vector_store %arg8[%c0_11, %c0_12], %12 {strides = array<i32>} : memref<64x64xf32, #tpu.memory_space<vmem>>, vector<64x64xf32>,
    } else {
    }
    %c0 = arith.constant 0 : index
    %c0_1 = arith.constant 0 : index
    %3 = vector.load %arg8[%c0, %c0_1] : memref<64x64xf32, #tpu.memory_space<vmem>>, vector<64x64xf32>
    %c0_2 = arith.constant 0 : index
    %c0_3 = arith.constant 0 : index
    %4 = vector.load %arg3[%c0_2, %c0_3] : memref<64x96xbf16, #tpu.memory_space<vmem>>, vector<64x96xbf16>
    %c0_4 = arith.constant 0 : index
    %c0_5 = arith.constant 0 : index
    %5 = vector.load %arg4[%c0_4, %c0_5] : memref<96x64xbf16, #tpu.memory_space<vmem>>, vector<96x64xbf16>
    %cst = arith.constant dense<0.000000e+00> : vector<64x64xf32>
    %6 = tpu.matmul %4, %5, %cst {dimension_numbers = #tpu.dot_dimension_numbers<[1], [0], [0], [1], [0, 0, 1, 1], [], []>} : vector<64x96xbf16>, vector<96x64xbf16>, vector<64x64xf32> -> vector<64x64xf32>
    %7 = arith.addf %3, %6 : vector<64x64xf32>
    %c0_6 = arith.constant 0 : index
    %c0_7 = arith.constant 0 : index
    %8 = vector.load %arg8[%c0_6, %c0_7] : memref<64x64xf32, #tpu.memory_space<vmem>>, vector<64x64xf32>
    tpu.vector_store %arg8[%c0_6, %c0_7], %7 {strides = array<i32>} : memref<64x64xf32, #tpu.memory_space<vmem>>, vector<64x64xf32>,
    %c0_i32_8 = arith.constant 0 : i32
    %9 = arith.cmpi eq, %arg2, %c0_i32_8 : i32
    %10 = arith.extui %9 : i1 to i32
    %c0_i32_9 = arith.constant 0 : i32
    %11 = arith.cmpi ne, %10, %c0_i32_9 : i32
    scf.if %11 {
      %c0_10 = arith.constant 0 : index
      %c0_11 = arith.constant 0 : index
      %12 = vector.load %arg8[%c0_10, %c0_11] : memref<64x64xf32, #tpu.memory_space<vmem>>, vector<64x64xf32>
      %c0_12 = arith.constant 0 : index
      %c0_13 = arith.constant 0 : index
      %13 = vector.load %arg5[%c0_12, %c0_13] : memref<1x64xf32, #tpu.memory_space<vmem>>, vector<1x64xf32>
      %14 = vector.broadcast %13 : vector<1x64xf32> to vector<64x64xf32>
      %15 = arith.addf %12, %14 : vector<64x64xf32>
      %c0_14 = arith.constant 0 : index
      %c0_15 = arith.constant 0 : index
      %16 = vector.load %arg6[%c0_14, %c0_15] : memref<64x64xf32, #tpu.memory_space<vmem>>, vector<64x64xf32>
      %17 = arith.addf %15, %16 : vector<64x64xf32>
      %c0_16 = arith.constant 0 : index
      %c0_17 = arith.constant 0 : index
      %18 = vector.load %arg7[%c0_16, %c0_17] : memref<64x64xf32, #tpu.memory_space<vmem>>, vector<64x64xf32>
      tpu.vector_store %arg7[%c0_16, %c0_17], %17 {strides = array<i32>} : memref<64x64xf32, #tpu.memory_space<vmem>>, vector<64x64xf32>,
    } else {
    }
    return
  }
  func.func @transform_0(%arg0: i32, %arg1: i32, %arg2: i32) -> (i32, i32) {
    %c0_i32 = arith.constant 0 : i32
    return %arg0, %arg2 : i32, i32
  }
  func.func @transform_1(%arg0: i32, %arg1: i32, %arg2: i32) -> (i32, i32) {
    %c0_i32 = arith.constant 0 : i32
    return %arg2, %arg1 : i32, i32
  }
  func.func @transform_2(%arg0: i32, %arg1: i32, %arg2: i32) -> (i32, i32) {
    %c0_i32 = arith.constant 0 : i32
    %c0_i32_0 = arith.constant 0 : i32
    return %c0_i32, %arg1 : i32, i32
  }
  func.func @transform_3(%arg0: i32, %arg1: i32, %arg2: i32) -> (i32, i32) {
    %c0_i32 = arith.constant 0 : i32
    return %arg0, %arg1 : i32, i32
  }
  func.func @transform_4(%arg0: i32, %arg1: i32, %arg2: i32) -> (i32, i32) {
    %c0_i32 = arith.constant 0 : i32
    return %arg0, %arg1 : i32, i32
  }
}

module attributes {stable_mosaic.version = 11 : i64} {
  func.func @_layernorm_kernel(%arg0: i32, %arg1: memref<80x64xf32, #tpu.memory_space<vmem>>, %arg2: memref<1x64xf32, #tpu.memory_space<vmem>>, %arg3: memref<1x64xf32, #tpu.memory_space<vmem>>, %arg4: memref<80x64xf32, #tpu.memory_space<vmem>>) attributes {dimension_semantics = [#tpu.dimension_semantics<parallel>], iteration_bounds = array<i64: 1>, scalar_prefetch = 0 : i64, scratch_operands = 0 : i64, tpu.core_type = #tpu.core_type<tc>, window_params = [{transform_indices = @transform_0, window_bounds = array<i64: 80, 64>}, {pipeline_mode = #tpu.pipeline_mode<synchronous>, transform_indices = @transform_1, window_bounds = array<i64: 1, 64>}, {pipeline_mode = #tpu.pipeline_mode<synchronous>, transform_indices = @transform_2, window_bounds = array<i64: 1, 64>}, {transform_indices = @transform_3, window_bounds = array<i64: 80, 64>}]} {
    %c0 = arith.constant 0 : index
    %c0_0 = arith.constant 0 : index
    %0 = vector.load %arg1[%c0, %c0_0] : memref<80x64xf32, #tpu.memory_space<vmem>>, vector<80x64xf32>
    %cst = arith.constant dense<0.000000e+00> : vector<80xf32>
    %1 = vector.multi_reduction <add>, %0, %cst [1] : vector<80x64xf32> to vector<80xf32>
    %2 = vector.shape_cast %1 : vector<80xf32> to vector<80x1xf32>
    %cst_1 = arith.constant 6.400000e+01 : f32
    %3 = vector.broadcast %cst_1 : f32 to vector<80x1xf32>
    %4 = arith.divf %2, %3 : vector<80x1xf32>
    %5 = vector.broadcast %4 : vector<80x1xf32> to vector<80x64xf32>
    %6 = arith.subf %0, %5 : vector<80x64xf32>
    %7 = arith.mulf %6, %6 : vector<80x64xf32>
    %cst_2 = arith.constant dense<0.000000e+00> : vector<80xf32>
    %8 = vector.multi_reduction <add>, %7, %cst_2 [1] : vector<80x64xf32> to vector<80xf32>
    %9 = vector.shape_cast %8 : vector<80xf32> to vector<80x1xf32>
    %cst_3 = arith.constant 6.400000e+01 : f32
    %10 = vector.broadcast %cst_3 : f32 to vector<80x1xf32>
    %11 = arith.divf %9, %10 : vector<80x1xf32>
    %cst_4 = arith.constant 9.99999974E-6 : f32
    %12 = vector.broadcast %cst_4 : f32 to vector<80x1xf32>
    %13 = arith.addf %11, %12 : vector<80x1xf32>
    %14 = math.rsqrt %13 : vector<80x1xf32>
    %15 = vector.broadcast %14 : vector<80x1xf32> to vector<80x64xf32>
    %16 = arith.mulf %6, %15 : vector<80x64xf32>
    %c0_5 = arith.constant 0 : index
    %c0_6 = arith.constant 0 : index
    %17 = vector.load %arg2[%c0_5, %c0_6] : memref<1x64xf32, #tpu.memory_space<vmem>>, vector<1x64xf32>
    %18 = vector.broadcast %17 : vector<1x64xf32> to vector<80x64xf32>
    %19 = arith.mulf %16, %18 : vector<80x64xf32>
    %c0_7 = arith.constant 0 : index
    %c0_8 = arith.constant 0 : index
    %20 = vector.load %arg3[%c0_7, %c0_8] : memref<1x64xf32, #tpu.memory_space<vmem>>, vector<1x64xf32>
    %21 = vector.broadcast %20 : vector<1x64xf32> to vector<80x64xf32>
    %22 = arith.addf %19, %21 : vector<80x64xf32>
    %c0_9 = arith.constant 0 : index
    %c0_10 = arith.constant 0 : index
    %23 = vector.load %arg4[%c0_9, %c0_10] : memref<80x64xf32, #tpu.memory_space<vmem>>, vector<80x64xf32>
    tpu.vector_store %arg4[%c0_9, %c0_10], %22 {strides = array<i32>} : memref<80x64xf32, #tpu.memory_space<vmem>>, vector<80x64xf32>,
    return
  }
  func.func @transform_0(%arg0: i32) -> (i32, i32) {
    %c0_i32 = arith.constant 0 : i32
    %c0_i32_0 = arith.constant 0 : i32
    return %arg0, %c0_i32 : i32, i32
  }
  func.func @transform_1(%arg0: i32) -> (i32, i32) {
    %c0_i32 = arith.constant 0 : i32
    %c0_i32_0 = arith.constant 0 : i32
    %c0_i32_1 = arith.constant 0 : i32
    return %c0_i32, %c0_i32_0 : i32, i32
  }
  func.func @transform_2(%arg0: i32) -> (i32, i32) {
    %c0_i32 = arith.constant 0 : i32
    %c0_i32_0 = arith.constant 0 : i32
    %c0_i32_1 = arith.constant 0 : i32
    return %c0_i32, %c0_i32_0 : i32, i32
  }
  func.func @transform_3(%arg0: i32) -> (i32, i32) {
    %c0_i32 = arith.constant 0 : i32
    %c0_i32_0 = arith.constant 0 : i32
    return %arg0, %c0_i32 : i32, i32
  }
}

module attributes {stable_mosaic.version = 11 : i64} {
  func.func @_layernorm_kernel(%arg0: i32, %arg1: memref<80x64xf32, #tpu.memory_space<vmem>>, %arg2: memref<1x64xf32, #tpu.memory_space<vmem>>, %arg3: memref<1x64xf32, #tpu.memory_space<vmem>>, %arg4: memref<80x64xbf16, #tpu.memory_space<vmem>>) attributes {dimension_semantics = [#tpu.dimension_semantics<parallel>], iteration_bounds = array<i64: 1>, scalar_prefetch = 0 : i64, scratch_operands = 0 : i64, tpu.core_type = #tpu.core_type<tc>, window_params = [{transform_indices = @transform_0, window_bounds = array<i64: 80, 64>}, {pipeline_mode = #tpu.pipeline_mode<synchronous>, transform_indices = @transform_1, window_bounds = array<i64: 1, 64>}, {pipeline_mode = #tpu.pipeline_mode<synchronous>, transform_indices = @transform_2, window_bounds = array<i64: 1, 64>}, {transform_indices = @transform_3, window_bounds = array<i64: 80, 64>}]} {
    %c0 = arith.constant 0 : index
    %c0_0 = arith.constant 0 : index
    %0 = vector.load %arg1[%c0, %c0_0] : memref<80x64xf32, #tpu.memory_space<vmem>>, vector<80x64xf32>
    %cst = arith.constant dense<0.000000e+00> : vector<80xf32>
    %1 = vector.multi_reduction <add>, %0, %cst [1] : vector<80x64xf32> to vector<80xf32>
    %2 = vector.shape_cast %1 : vector<80xf32> to vector<80x1xf32>
    %cst_1 = arith.constant 6.400000e+01 : f32
    %3 = vector.broadcast %cst_1 : f32 to vector<80x1xf32>
    %4 = arith.divf %2, %3 : vector<80x1xf32>
    %5 = vector.broadcast %4 : vector<80x1xf32> to vector<80x64xf32>
    %6 = arith.subf %0, %5 : vector<80x64xf32>
    %7 = arith.mulf %6, %6 : vector<80x64xf32>
    %cst_2 = arith.constant dense<0.000000e+00> : vector<80xf32>
    %8 = vector.multi_reduction <add>, %7, %cst_2 [1] : vector<80x64xf32> to vector<80xf32>
    %9 = vector.shape_cast %8 : vector<80xf32> to vector<80x1xf32>
    %cst_3 = arith.constant 6.400000e+01 : f32
    %10 = vector.broadcast %cst_3 : f32 to vector<80x1xf32>
    %11 = arith.divf %9, %10 : vector<80x1xf32>
    %cst_4 = arith.constant 9.99999974E-6 : f32
    %12 = vector.broadcast %cst_4 : f32 to vector<80x1xf32>
    %13 = arith.addf %11, %12 : vector<80x1xf32>
    %14 = math.rsqrt %13 : vector<80x1xf32>
    %15 = vector.broadcast %14 : vector<80x1xf32> to vector<80x64xf32>
    %16 = arith.mulf %6, %15 : vector<80x64xf32>
    %c0_5 = arith.constant 0 : index
    %c0_6 = arith.constant 0 : index
    %17 = vector.load %arg2[%c0_5, %c0_6] : memref<1x64xf32, #tpu.memory_space<vmem>>, vector<1x64xf32>
    %18 = vector.broadcast %17 : vector<1x64xf32> to vector<80x64xf32>
    %19 = arith.mulf %16, %18 : vector<80x64xf32>
    %c0_7 = arith.constant 0 : index
    %c0_8 = arith.constant 0 : index
    %20 = vector.load %arg3[%c0_7, %c0_8] : memref<1x64xf32, #tpu.memory_space<vmem>>, vector<1x64xf32>
    %21 = vector.broadcast %20 : vector<1x64xf32> to vector<80x64xf32>
    %22 = arith.addf %19, %21 : vector<80x64xf32>
    %23 = arith.truncf %22 : vector<80x64xf32> to vector<80x64xbf16>
    %c0_9 = arith.constant 0 : index
    %c0_10 = arith.constant 0 : index
    %24 = vector.load %arg4[%c0_9, %c0_10] : memref<80x64xbf16, #tpu.memory_space<vmem>>, vector<80x64xbf16>
    tpu.vector_store %arg4[%c0_9, %c0_10], %23 {strides = array<i32>} : memref<80x64xbf16, #tpu.memory_space<vmem>>, vector<80x64xbf16>,
    return
  }
  func.func @transform_0(%arg0: i32) -> (i32, i32) {
    %c0_i32 = arith.constant 0 : i32
    %c0_i32_0 = arith.constant 0 : i32
    return %arg0, %c0_i32 : i32, i32
  }
  func.func @transform_1(%arg0: i32) -> (i32, i32) {
    %c0_i32 = arith.constant 0 : i32
    %c0_i32_0 = arith.constant 0 : i32
    %c0_i32_1 = arith.constant 0 : i32
    return %c0_i32, %c0_i32_0 : i32, i32
  }
  func.func @transform_2(%arg0: i32) -> (i32, i32) {
    %c0_i32 = arith.constant 0 : i32
    %c0_i32_0 = arith.constant 0 : i32
    %c0_i32_1 = arith.constant 0 : i32
    return %c0_i32, %c0_i32_0 : i32, i32
  }
  func.func @transform_3(%arg0: i32) -> (i32, i32) {
    %c0_i32 = arith.constant 0 : i32
    %c0_i32_0 = arith.constant 0 : i32
    return %arg0, %c0_i32 : i32, i32
  }
}

module attributes {stable_mosaic.version = 11 : i64} {
  func.func @_linear_kernel(%arg0: i32, %arg1: i32, %arg2: i32, %arg3: memref<80x64xbf16, #tpu.memory_space<vmem>>, %arg4: memref<64x192xbf16, #tpu.memory_space<vmem>>, %arg5: memref<1x192xf32, #tpu.memory_space<vmem>>, %arg6: memref<80x192xbf16, #tpu.memory_space<vmem>>, %arg7: memref<80x192xf32, #tpu.memory_space<vmem>>) attributes {dimension_semantics = [#tpu.dimension_semantics<parallel>, #tpu.dimension_semantics<parallel>, #tpu.dimension_semantics<arbitrary>], iteration_bounds = array<i64: 1, 1, 1>, scalar_prefetch = 0 : i64, scratch_operands = 1 : i64, tpu.core_type = #tpu.core_type<tc>, window_params = [{transform_indices = @transform_0, window_bounds = array<i64: 80, 64>}, {transform_indices = @transform_1, window_bounds = array<i64: 64, 192>}, {transform_indices = @transform_2, window_bounds = array<i64: 1, 192>}, {transform_indices = @transform_3, window_bounds = array<i64: 80, 192>}]} {
    %c0_i32 = arith.constant 0 : i32
    %0 = arith.cmpi eq, %arg2, %c0_i32 : i32
    %1 = arith.extui %0 : i1 to i32
    %c0_i32_0 = arith.constant 0 : i32
    %2 = arith.cmpi ne, %1, %c0_i32_0 : i32
    scf.if %2 {
      %cst_10 = arith.constant 0.000000e+00 : f32
      %12 = vector.broadcast %cst_10 : f32 to vector<80x192xf32>
      %c0_11 = arith.constant 0 : index
      %c0_12 = arith.constant 0 : index
      %13 = vector.load %arg7[%c0_11, %c0_12] : memref<80x192xf32, #tpu.memory_space<vmem>>, vector<80x192xf32>
      tpu.vector_store %arg7[%c0_11, %c0_12], %12 {strides = array<i32>} : memref<80x192xf32, #tpu.memory_space<vmem>>, vector<80x192xf32>,
    } else {
    }
    %c0 = arith.constant 0 : index
    %c0_1 = arith.constant 0 : index
    %3 = vector.load %arg7[%c0, %c0_1] : memref<80x192xf32, #tpu.memory_space<vmem>>, vector<80x192xf32>
    %c0_2 = arith.constant 0 : index
    %c0_3 = arith.constant 0 : index
    %4 = vector.load %arg3[%c0_2, %c0_3] : memref<80x64xbf16, #tpu.memory_space<vmem>>, vector<80x64xbf16>
    %c0_4 = arith.constant 0 : index
    %c0_5 = arith.constant 0 : index
    %5 = vector.load %arg4[%c0_4, %c0_5] : memref<64x192xbf16, #tpu.memory_space<vmem>>, vector<64x192xbf16>
    %cst = arith.constant dense<0.000000e+00> : vector<80x192xf32>
    %6 = tpu.matmul %4, %5, %cst {dimension_numbers = #tpu.dot_dimension_numbers<[1], [0], [0], [1], [0, 0, 1, 1], [], []>} : vector<80x64xbf16>, vector<64x192xbf16>, vector<80x192xf32> -> vector<80x192xf32>
    %7 = arith.addf %3, %6 : vector<80x192xf32>
    %c0_6 = arith.constant 0 : index
    %c0_7 = arith.constant 0 : index
    %8 = vector.load %arg7[%c0_6, %c0_7] : memref<80x192xf32, #tpu.memory_space<vmem>>, vector<80x192xf32>
    tpu.vector_store %arg7[%c0_6, %c0_7], %7 {strides = array<i32>} : memref<80x192xf32, #tpu.memory_space<vmem>>, vector<80x192xf32>,
    %c0_i32_8 = arith.constant 0 : i32
    %9 = arith.cmpi eq, %arg2, %c0_i32_8 : i32
    %10 = arith.extui %9 : i1 to i32
    %c0_i32_9 = arith.constant 0 : i32
    %11 = arith.cmpi ne, %10, %c0_i32_9 : i32
    scf.if %11 {
      %c0_10 = arith.constant 0 : index
      %c0_11 = arith.constant 0 : index
      %12 = vector.load %arg7[%c0_10, %c0_11] : memref<80x192xf32, #tpu.memory_space<vmem>>, vector<80x192xf32>
      %c0_12 = arith.constant 0 : index
      %c0_13 = arith.constant 0 : index
      %13 = vector.load %arg5[%c0_12, %c0_13] : memref<1x192xf32, #tpu.memory_space<vmem>>, vector<1x192xf32>
      %14 = vector.broadcast %13 : vector<1x192xf32> to vector<80x192xf32>
      %15 = arith.addf %12, %14 : vector<80x192xf32>
      %16 = arith.truncf %15 : vector<80x192xf32> to vector<80x192xbf16>
      %c0_14 = arith.constant 0 : index
      %c0_15 = arith.constant 0 : index
      %17 = vector.load %arg6[%c0_14, %c0_15] : memref<80x192xbf16, #tpu.memory_space<vmem>>, vector<80x192xbf16>
      tpu.vector_store %arg6[%c0_14, %c0_15], %16 {strides = array<i32>} : memref<80x192xbf16, #tpu.memory_space<vmem>>, vector<80x192xbf16>,
    } else {
    }
    return
  }
  func.func @transform_0(%arg0: i32, %arg1: i32, %arg2: i32) -> (i32, i32) {
    %c0_i32 = arith.constant 0 : i32
    return %arg0, %arg2 : i32, i32
  }
  func.func @transform_1(%arg0: i32, %arg1: i32, %arg2: i32) -> (i32, i32) {
    %c0_i32 = arith.constant 0 : i32
    return %arg2, %arg1 : i32, i32
  }
  func.func @transform_2(%arg0: i32, %arg1: i32, %arg2: i32) -> (i32, i32) {
    %c0_i32 = arith.constant 0 : i32
    %c0_i32_0 = arith.constant 0 : i32
    return %c0_i32, %arg1 : i32, i32
  }
  func.func @transform_3(%arg0: i32, %arg1: i32, %arg2: i32) -> (i32, i32) {
    %c0_i32 = arith.constant 0 : i32
    return %arg0, %arg1 : i32, i32
  }
}

module attributes {stable_mosaic.version = 11 : i64} {
  func.func @_flash_attn_kernel(%arg0: i32, %arg1: i32, %arg2: i32, %arg3: i32, %arg4: memref<1x1x40x16xbf16, #tpu.memory_space<vmem>>, %arg5: memref<1x1x40x16xbf16, #tpu.memory_space<vmem>>, %arg6: memref<1x1x40x16xbf16, #tpu.memory_space<vmem>>, %arg7: memref<1x1x40x16xbf16, #tpu.memory_space<vmem>>, %arg8: memref<40x1xf32, #tpu.memory_space<vmem>>, %arg9: memref<40x1xf32, #tpu.memory_space<vmem>>, %arg10: memref<40x16xf32, #tpu.memory_space<vmem>>) attributes {dimension_semantics = [#tpu.dimension_semantics<parallel>, #tpu.dimension_semantics<parallel>, #tpu.dimension_semantics<parallel>, #tpu.dimension_semantics<arbitrary>], iteration_bounds = array<i64: 2, 4, 1, 1>, scalar_prefetch = 0 : i64, scratch_operands = 3 : i64, tpu.core_type = #tpu.core_type<tc>, window_params = [{transform_indices = @transform_0, window_bounds = array<i64: 1, 1, 40, 16>}, {transform_indices = @transform_1, window_bounds = array<i64: 1, 1, 40, 16>}, {transform_indices = @transform_2, window_bounds = array<i64: 1, 1, 40, 16>}, {transform_indices = @transform_3, window_bounds = array<i64: 1, 1, 40, 16>}]} {
    %c0_i32 = arith.constant 0 : i32
    %0 = arith.cmpi eq, %arg3, %c0_i32 : i32
    %1 = arith.extui %0 : i1 to i32
    %c0_i32_0 = arith.constant 0 : i32
    %2 = arith.cmpi ne, %1, %c0_i32_0 : i32
    scf.if %2 {
      %cst_29 = arith.constant 0xFF800000 : f32
      %36 = vector.broadcast %cst_29 : f32 to vector<40x1xf32>
      %c0_30 = arith.constant 0 : index
      %c0_31 = arith.constant 0 : index
      %37 = vector.load %arg8[%c0_30, %c0_31] : memref<40x1xf32, #tpu.memory_space<vmem>>, vector<40x1xf32>
      tpu.vector_store %arg8[%c0_30, %c0_31], %36 {strides = array<i32>} : memref<40x1xf32, #tpu.memory_space<vmem>>, vector<40x1xf32>,
      %cst_32 = arith.constant 0.000000e+00 : f32
      %38 = vector.broadcast %cst_32 : f32 to vector<40x1xf32>
      %c0_33 = arith.constant 0 : index
      %c0_34 = arith.constant 0 : index
      %39 = vector.load %arg9[%c0_33, %c0_34] : memref<40x1xf32, #tpu.memory_space<vmem>>, vector<40x1xf32>
      tpu.vector_store %arg9[%c0_33, %c0_34], %38 {strides = array<i32>} : memref<40x1xf32, #tpu.memory_space<vmem>>, vector<40x1xf32>,
      %cst_35 = arith.constant 0.000000e+00 : f32
      %40 = vector.broadcast %cst_35 : f32 to vector<40x16xf32>
      %c0_36 = arith.constant 0 : index
      %c0_37 = arith.constant 0 : index
      %41 = vector.load %arg10[%c0_36, %c0_37] : memref<40x16xf32, #tpu.memory_space<vmem>>, vector<40x16xf32>
      tpu.vector_store %arg10[%c0_36, %c0_37], %40 {strides = array<i32>} : memref<40x16xf32, #tpu.memory_space<vmem>>, vector<40x16xf32>,
    } else {
    }
    %c0 = arith.constant 0 : index
    %c0_1 = arith.constant 0 : index
    %c0_2 = arith.constant 0 : index
    %c0_3 = arith.constant 0 : index
    %3 = vector.load %arg4[%c0, %c0_1, %c0_2, %c0_3] : memref<1x1x40x16xbf16, #tpu.memory_space<vmem>>, vector<1x1x40x16xbf16>
    %4 = vector.shape_cast %3 : vector<1x1x40x16xbf16> to vector<40x16xbf16>
    %c0_4 = arith.constant 0 : index
    %c0_5 = arith.constant 0 : index
    %c0_6 = arith.constant 0 : index
    %c0_7 = arith.constant 0 : index
    %5 = vector.load %arg5[%c0_4, %c0_5, %c0_6, %c0_7] : memref<1x1x40x16xbf16, #tpu.memory_space<vmem>>, vector<1x1x40x16xbf16>
    %6 = vector.shape_cast %5 : vector<1x1x40x16xbf16> to vector<40x16xbf16>
    %c0_8 = arith.constant 0 : index
    %c0_9 = arith.constant 0 : index
    %c0_10 = arith.constant 0 : index
    %c0_11 = arith.constant 0 : index
    %7 = vector.load %arg6[%c0_8, %c0_9, %c0_10, %c0_11] : memref<1x1x40x16xbf16, #tpu.memory_space<vmem>>, vector<1x1x40x16xbf16>
    %8 = vector.shape_cast %7 : vector<1x1x40x16xbf16> to vector<40x16xbf16>
    %cst = arith.constant dense<0.000000e+00> : vector<40x40xf32>
    %9 = tpu.matmul %4, %6, %cst {dimension_numbers = #tpu.dot_dimension_numbers<[1], [1], [0], [0], [0, 0, 1, 0], [], []>} : vector<40x16xbf16>, vector<40x16xbf16>, vector<40x40xf32> -> vector<40x40xf32>
    %c0_12 = arith.constant 0 : index
    %c0_13 = arith.constant 0 : index
    %10 = vector.load %arg8[%c0_12, %c0_13] : memref<40x1xf32, #tpu.memory_space<vmem>>, vector<40x1xf32>
    %cst_14 = arith.constant dense<0xFF800000> : vector<40xf32>
    %11 = vector.multi_reduction <maximumf>, %9, %cst_14 [1] : vector<40x40xf32> to vector<40xf32>
    %12 = vector.shape_cast %11 : vector<40xf32> to vector<40x1xf32>
    %13 = arith.maximumf %10, %12 : vector<40x1xf32>
    %14 = arith.subf %10, %13 : vector<40x1xf32>
    %15 = math.exp %14 : vector<40x1xf32>
    %16 = vector.broadcast %13 : vector<40x1xf32> to vector<40x40xf32>
    %17 = arith.subf %9, %16 : vector<40x40xf32>
    %18 = math.exp %17 : vector<40x40xf32>
    %c0_15 = arith.constant 0 : index
    %c0_16 = arith.constant 0 : index
    %19 = vector.load %arg9[%c0_15, %c0_16] : memref<40x1xf32, #tpu.memory_space<vmem>>, vector<40x1xf32>
    %20 = arith.mulf %15, %19 : vector<40x1xf32>
    %cst_17 = arith.constant dense<0.000000e+00> : vector<40xf32>
    %21 = vector.multi_reduction <add>, %18, %cst_17 [1] : vector<40x40xf32> to vector<40xf32>
    %22 = vector.shape_cast %21 : vector<40xf32> to vector<40x1xf32>
    %23 = arith.addf %20, %22 : vector<40x1xf32>
    %c0_18 = arith.constant 0 : index
    %c0_19 = arith.constant 0 : index
    %24 = vector.load %arg9[%c0_18, %c0_19] : memref<40x1xf32, #tpu.memory_space<vmem>>, vector<40x1xf32>
    tpu.vector_store %arg9[%c0_18, %c0_19], %23 {strides = array<i32>} : memref<40x1xf32, #tpu.memory_space<vmem>>, vector<40x1xf32>,
    %c0_20 = arith.constant 0 : index
    %c0_21 = arith.constant 0 : index
    %25 = vector.load %arg10[%c0_20, %c0_21] : memref<40x16xf32, #tpu.memory_space<vmem>>, vector<40x16xf32>
    %26 = vector.broadcast %15 : vector<40x1xf32> to vector<40x16xf32>
    %27 = arith.mulf %26, %25 : vector<40x16xf32>
    %28 = arith.truncf %18 : vector<40x40xf32> to vector<40x40xbf16>
    %cst_22 = arith.constant dense<0.000000e+00> : vector<40x16xf32>
    %29 = tpu.matmul %28, %8, %cst_22 {dimension_numbers = #tpu.dot_dimension_numbers<[1], [0], [0], [1], [0, 0, 1, 1], [], []>} : vector<40x40xbf16>, vector<40x16xbf16>, vector<40x16xf32> -> vector<40x16xf32>
    %30 = arith.addf %27, %29 : vector<40x16xf32>
    %c0_23 = arith.constant 0 : index
    %c0_24 = arith.constant 0 : index
    %31 = vector.load %arg10[%c0_23, %c0_24] : memref<40x16xf32, #tpu.memory_space<vmem>>, vector<40x16xf32>
    tpu.vector_store %arg10[%c0_23, %c0_24], %30 {strides = array<i32>} : memref<40x16xf32, #tpu.memory_space<vmem>>, vector<40x16xf32>,
    %c0_25 = arith.constant 0 : index
    %c0_26 = arith.constant 0 : index
    %32 = vector.load %arg8[%c0_25, %c0_26] : memref<40x1xf32, #tpu.memory_space<vmem>>, vector<40x1xf32>
    tpu.vector_store %arg8[%c0_25, %c0_26], %13 {strides = array<i32>} : memref<40x1xf32, #tpu.memory_space<vmem>>, vector<40x1xf32>,
    %c0_i32_27 = arith.constant 0 : i32
    %33 = arith.cmpi eq, %arg3, %c0_i32_27 : i32
    %34 = arith.extui %33 : i1 to i32
    %c0_i32_28 = arith.constant 0 : i32
    %35 = arith.cmpi ne, %34, %c0_i32_28 : i32
    scf.if %35 {
      %c0_29 = arith.constant 0 : index
      %c0_30 = arith.constant 0 : index
      %36 = vector.load %arg10[%c0_29, %c0_30] : memref<40x16xf32, #tpu.memory_space<vmem>>, vector<40x16xf32>
      %c0_31 = arith.constant 0 : index
      %c0_32 = arith.constant 0 : index
      %37 = vector.load %arg9[%c0_31, %c0_32] : memref<40x1xf32, #tpu.memory_space<vmem>>, vector<40x1xf32>
      %38 = tpu.reciprocal %37 {approx = true} : vector<40x1xf32> -> vector<40x1xf32>
      %39 = vector.broadcast %38 : vector<40x1xf32> to vector<40x16xf32>
      %40 = arith.mulf %36, %39 : vector<40x16xf32>
      %41 = arith.truncf %40 : vector<40x16xf32> to vector<40x16xbf16>
      %c0_33 = arith.constant 0 : index
      %c0_34 = arith.constant 0 : index
      %c0_35 = arith.constant 0 : index
      %c0_36 = arith.constant 0 : index
      %42 = vector.load %arg7[%c0_33, %c0_34, %c0_35, %c0_36] : memref<1x1x40x16xbf16, #tpu.memory_space<vmem>>, vector<1x1x40x16xbf16>
      %43 = vector.shape_cast %42 : vector<1x1x40x16xbf16> to vector<40x16xbf16>
      %44 = vector.shape_cast %41 : vector<40x16xbf16> to vector<1x1x40x16xbf16>
      tpu.vector_store %arg7[%c0_33, %c0_34, %c0_35, %c0_36], %44 {strides = array<i32>} : memref<1x1x40x16xbf16, #tpu.memory_space<vmem>>, vector<1x1x40x16xbf16>,
    } else {
    }
    return
  }
  func.func @transform_0(%arg0: i32, %arg1: i32, %arg2: i32, %arg3: i32) -> (i32, i32, i32, i32) {
    %c0_i32 = arith.constant 0 : i32
    %c0_i32_0 = arith.constant 0 : i32
    return %arg0, %arg1, %arg2, %c0_i32 : i32, i32, i32, i32
  }
  func.func @transform_1(%arg0: i32, %arg1: i32, %arg2: i32, %arg3: i32) -> (i32, i32, i32, i32) {
    %c0_i32 = arith.constant 0 : i32
    %c0_i32_0 = arith.constant 0 : i32
    return %arg0, %arg1, %arg3, %c0_i32 : i32, i32, i32, i32
  }
  func.func @transform_2(%arg0: i32, %arg1: i32, %arg2: i32, %arg3: i32) -> (i32, i32, i32, i32) {
    %c0_i32 = arith.constant 0 : i32
    %c0_i32_0 = arith.constant 0 : i32
    return %arg0, %arg1, %arg3, %c0_i32 : i32, i32, i32, i32
  }
  func.func @transform_3(%arg0: i32, %arg1: i32, %arg2: i32, %arg3: i32) -> (i32, i32, i32, i32) {
    %c0_i32 = arith.constant 0 : i32
    %c0_i32_0 = arith.constant 0 : i32
    return %arg0, %arg1, %arg2, %c0_i32 : i32, i32, i32, i32
  }
}

module attributes {stable_mosaic.version = 11 : i64} {
  func.func @_linear_kernel(%arg0: i32, %arg1: i32, %arg2: i32, %arg3: memref<80x64xbf16, #tpu.memory_space<vmem>>, %arg4: memref<64x64xbf16, #tpu.memory_space<vmem>>, %arg5: memref<1x64xf32, #tpu.memory_space<vmem>>, %arg6: memref<80x64xf32, #tpu.memory_space<vmem>>, %arg7: memref<80x64xf32, #tpu.memory_space<vmem>>, %arg8: memref<80x64xf32, #tpu.memory_space<vmem>>) attributes {dimension_semantics = [#tpu.dimension_semantics<parallel>, #tpu.dimension_semantics<parallel>, #tpu.dimension_semantics<arbitrary>], iteration_bounds = array<i64: 1, 1, 1>, scalar_prefetch = 0 : i64, scratch_operands = 1 : i64, tpu.core_type = #tpu.core_type<tc>, window_params = [{transform_indices = @transform_0, window_bounds = array<i64: 80, 64>}, {transform_indices = @transform_1, window_bounds = array<i64: 64, 64>}, {transform_indices = @transform_2, window_bounds = array<i64: 1, 64>}, {transform_indices = @transform_3, window_bounds = array<i64: 80, 64>}, {transform_indices = @transform_4, window_bounds = array<i64: 80, 64>}]} {
    %c0_i32 = arith.constant 0 : i32
    %0 = arith.cmpi eq, %arg2, %c0_i32 : i32
    %1 = arith.extui %0 : i1 to i32
    %c0_i32_0 = arith.constant 0 : i32
    %2 = arith.cmpi ne, %1, %c0_i32_0 : i32
    scf.if %2 {
      %cst_10 = arith.constant 0.000000e+00 : f32
      %12 = vector.broadcast %cst_10 : f32 to vector<80x64xf32>
      %c0_11 = arith.constant 0 : index
      %c0_12 = arith.constant 0 : index
      %13 = vector.load %arg8[%c0_11, %c0_12] : memref<80x64xf32, #tpu.memory_space<vmem>>, vector<80x64xf32>
      tpu.vector_store %arg8[%c0_11, %c0_12], %12 {strides = array<i32>} : memref<80x64xf32, #tpu.memory_space<vmem>>, vector<80x64xf32>,
    } else {
    }
    %c0 = arith.constant 0 : index
    %c0_1 = arith.constant 0 : index
    %3 = vector.load %arg8[%c0, %c0_1] : memref<80x64xf32, #tpu.memory_space<vmem>>, vector<80x64xf32>
    %c0_2 = arith.constant 0 : index
    %c0_3 = arith.constant 0 : index
    %4 = vector.load %arg3[%c0_2, %c0_3] : memref<80x64xbf16, #tpu.memory_space<vmem>>, vector<80x64xbf16>
    %c0_4 = arith.constant 0 : index
    %c0_5 = arith.constant 0 : index
    %5 = vector.load %arg4[%c0_4, %c0_5] : memref<64x64xbf16, #tpu.memory_space<vmem>>, vector<64x64xbf16>
    %cst = arith.constant dense<0.000000e+00> : vector<80x64xf32>
    %6 = tpu.matmul %4, %5, %cst {dimension_numbers = #tpu.dot_dimension_numbers<[1], [0], [0], [1], [0, 0, 1, 1], [], []>} : vector<80x64xbf16>, vector<64x64xbf16>, vector<80x64xf32> -> vector<80x64xf32>
    %7 = arith.addf %3, %6 : vector<80x64xf32>
    %c0_6 = arith.constant 0 : index
    %c0_7 = arith.constant 0 : index
    %8 = vector.load %arg8[%c0_6, %c0_7] : memref<80x64xf32, #tpu.memory_space<vmem>>, vector<80x64xf32>
    tpu.vector_store %arg8[%c0_6, %c0_7], %7 {strides = array<i32>} : memref<80x64xf32, #tpu.memory_space<vmem>>, vector<80x64xf32>,
    %c0_i32_8 = arith.constant 0 : i32
    %9 = arith.cmpi eq, %arg2, %c0_i32_8 : i32
    %10 = arith.extui %9 : i1 to i32
    %c0_i32_9 = arith.constant 0 : i32
    %11 = arith.cmpi ne, %10, %c0_i32_9 : i32
    scf.if %11 {
      %c0_10 = arith.constant 0 : index
      %c0_11 = arith.constant 0 : index
      %12 = vector.load %arg8[%c0_10, %c0_11] : memref<80x64xf32, #tpu.memory_space<vmem>>, vector<80x64xf32>
      %c0_12 = arith.constant 0 : index
      %c0_13 = arith.constant 0 : index
      %13 = vector.load %arg5[%c0_12, %c0_13] : memref<1x64xf32, #tpu.memory_space<vmem>>, vector<1x64xf32>
      %14 = vector.broadcast %13 : vector<1x64xf32> to vector<80x64xf32>
      %15 = arith.addf %12, %14 : vector<80x64xf32>
      %c0_14 = arith.constant 0 : index
      %c0_15 = arith.constant 0 : index
      %16 = vector.load %arg6[%c0_14, %c0_15] : memref<80x64xf32, #tpu.memory_space<vmem>>, vector<80x64xf32>
      %17 = arith.addf %15, %16 : vector<80x64xf32>
      %c0_16 = arith.constant 0 : index
      %c0_17 = arith.constant 0 : index
      %18 = vector.load %arg7[%c0_16, %c0_17] : memref<80x64xf32, #tpu.memory_space<vmem>>, vector<80x64xf32>
      tpu.vector_store %arg7[%c0_16, %c0_17], %17 {strides = array<i32>} : memref<80x64xf32, #tpu.memory_space<vmem>>, vector<80x64xf32>,
    } else {
    }
    return
  }
  func.func @transform_0(%arg0: i32, %arg1: i32, %arg2: i32) -> (i32, i32) {
    %c0_i32 = arith.constant 0 : i32
    return %arg0, %arg2 : i32, i32
  }
  func.func @transform_1(%arg0: i32, %arg1: i32, %arg2: i32) -> (i32, i32) {
    %c0_i32 = arith.constant 0 : i32
    return %arg2, %arg1 : i32, i32
  }
  func.func @transform_2(%arg0: i32, %arg1: i32, %arg2: i32) -> (i32, i32) {
    %c0_i32 = arith.constant 0 : i32
    %c0_i32_0 = arith.constant 0 : i32
    return %c0_i32, %arg1 : i32, i32
  }
  func.func @transform_3(%arg0: i32, %arg1: i32, %arg2: i32) -> (i32, i32) {
    %c0_i32 = arith.constant 0 : i32
    return %arg0, %arg1 : i32, i32
  }
  func.func @transform_4(%arg0: i32, %arg1: i32, %arg2: i32) -> (i32, i32) {
    %c0_i32 = arith.constant 0 : i32
    return %arg0, %arg1 : i32, i32
  }
}

module attributes {stable_mosaic.version = 11 : i64} {
  func.func @_linear_kernel(%arg0: i32, %arg1: i32, %arg2: i32, %arg3: memref<80x64xbf16, #tpu.memory_space<vmem>>, %arg4: memref<64x256xbf16, #tpu.memory_space<vmem>>, %arg5: memref<1x256xf32, #tpu.memory_space<vmem>>, %arg6: memref<80x256xbf16, #tpu.memory_space<vmem>>, %arg7: memref<80x256xf32, #tpu.memory_space<vmem>>) attributes {dimension_semantics = [#tpu.dimension_semantics<parallel>, #tpu.dimension_semantics<parallel>, #tpu.dimension_semantics<arbitrary>], iteration_bounds = array<i64: 1, 1, 1>, scalar_prefetch = 0 : i64, scratch_operands = 1 : i64, tpu.core_type = #tpu.core_type<tc>, window_params = [{transform_indices = @transform_0, window_bounds = array<i64: 80, 64>}, {transform_indices = @transform_1, window_bounds = array<i64: 64, 256>}, {transform_indices = @transform_2, window_bounds = array<i64: 1, 256>}, {transform_indices = @transform_3, window_bounds = array<i64: 80, 256>}]} {
    %c0_i32 = arith.constant 0 : i32
    %0 = arith.cmpi eq, %arg2, %c0_i32 : i32
    %1 = arith.extui %0 : i1 to i32
    %c0_i32_0 = arith.constant 0 : i32
    %2 = arith.cmpi ne, %1, %c0_i32_0 : i32
    scf.if %2 {
      %cst_10 = arith.constant 0.000000e+00 : f32
      %12 = vector.broadcast %cst_10 : f32 to vector<80x256xf32>
      %c0_11 = arith.constant 0 : index
      %c0_12 = arith.constant 0 : index
      %13 = vector.load %arg7[%c0_11, %c0_12] : memref<80x256xf32, #tpu.memory_space<vmem>>, vector<80x256xf32>
      tpu.vector_store %arg7[%c0_11, %c0_12], %12 {strides = array<i32>} : memref<80x256xf32, #tpu.memory_space<vmem>>, vector<80x256xf32>,
    } else {
    }
    %c0 = arith.constant 0 : index
    %c0_1 = arith.constant 0 : index
    %3 = vector.load %arg7[%c0, %c0_1] : memref<80x256xf32, #tpu.memory_space<vmem>>, vector<80x256xf32>
    %c0_2 = arith.constant 0 : index
    %c0_3 = arith.constant 0 : index
    %4 = vector.load %arg3[%c0_2, %c0_3] : memref<80x64xbf16, #tpu.memory_space<vmem>>, vector<80x64xbf16>
    %c0_4 = arith.constant 0 : index
    %c0_5 = arith.constant 0 : index
    %5 = vector.load %arg4[%c0_4, %c0_5] : memref<64x256xbf16, #tpu.memory_space<vmem>>, vector<64x256xbf16>
    %cst = arith.constant dense<0.000000e+00> : vector<80x256xf32>
    %6 = tpu.matmul %4, %5, %cst {dimension_numbers = #tpu.dot_dimension_numbers<[1], [0], [0], [1], [0, 0, 1, 1], [], []>} : vector<80x64xbf16>, vector<64x256xbf16>, vector<80x256xf32> -> vector<80x256xf32>
    %7 = arith.addf %3, %6 : vector<80x256xf32>
    %c0_6 = arith.constant 0 : index
    %c0_7 = arith.constant 0 : index
    %8 = vector.load %arg7[%c0_6, %c0_7] : memref<80x256xf32, #tpu.memory_space<vmem>>, vector<80x256xf32>
    tpu.vector_store %arg7[%c0_6, %c0_7], %7 {strides = array<i32>} : memref<80x256xf32, #tpu.memory_space<vmem>>, vector<80x256xf32>,
    %c0_i32_8 = arith.constant 0 : i32
    %9 = arith.cmpi eq, %arg2, %c0_i32_8 : i32
    %10 = arith.extui %9 : i1 to i32
    %c0_i32_9 = arith.constant 0 : i32
    %11 = arith.cmpi ne, %10, %c0_i32_9 : i32
    scf.if %11 {
      %c0_10 = arith.constant 0 : index
      %c0_11 = arith.constant 0 : index
      %12 = vector.load %arg7[%c0_10, %c0_11] : memref<80x256xf32, #tpu.memory_space<vmem>>, vector<80x256xf32>
      %c0_12 = arith.constant 0 : index
      %c0_13 = arith.constant 0 : index
      %13 = vector.load %arg5[%c0_12, %c0_13] : memref<1x256xf32, #tpu.memory_space<vmem>>, vector<1x256xf32>
      %14 = vector.broadcast %13 : vector<1x256xf32> to vector<80x256xf32>
      %15 = arith.addf %12, %14 : vector<80x256xf32>
      %cst_14 = arith.constant 5.000000e-01 : f32
      %16 = vector.broadcast %cst_14 : f32 to vector<80x256xf32>
      %17 = arith.mulf %16, %15 : vector<80x256xf32>
      %cst_15 = arith.constant 0.707106769 : f32
      %18 = vector.broadcast %cst_15 : f32 to vector<80x256xf32>
      %19 = arith.mulf %15, %18 : vector<80x256xf32>
      %20 = math.erf %19 : vector<80x256xf32>
      %cst_16 = arith.constant 1.000000e+00 : f32
      %21 = vector.broadcast %cst_16 : f32 to vector<80x256xf32>
      %22 = arith.addf %21, %20 : vector<80x256xf32>
      %23 = arith.mulf %17, %22 : vector<80x256xf32>
      %24 = arith.truncf %23 : vector<80x256xf32> to vector<80x256xbf16>
      %c0_17 = arith.constant 0 : index
      %c0_18 = arith.constant 0 : index
      %25 = vector.load %arg6[%c0_17, %c0_18] : memref<80x256xbf16, #tpu.memory_space<vmem>>, vector<80x256xbf16>
      tpu.vector_store %arg6[%c0_17, %c0_18], %24 {strides = array<i32>} : memref<80x256xbf16, #tpu.memory_space<vmem>>, vector<80x256xbf16>,
    } else {
    }
    return
  }
  func.func @transform_0(%arg0: i32, %arg1: i32, %arg2: i32) -> (i32, i32) {
    %c0_i32 = arith.constant 0 : i32
    return %arg0, %arg2 : i32, i32
  }
  func.func @transform_1(%arg0: i32, %arg1: i32, %arg2: i32) -> (i32, i32) {
    %c0_i32 = arith.constant 0 : i32
    return %arg2, %arg1 : i32, i32
  }
  func.func @transform_2(%arg0: i32, %arg1: i32, %arg2: i32) -> (i32, i32) {
    %c0_i32 = arith.constant 0 : i32
    %c0_i32_0 = arith.constant 0 : i32
    return %c0_i32, %arg1 : i32, i32
  }
  func.func @transform_3(%arg0: i32, %arg1: i32, %arg2: i32) -> (i32, i32) {
    %c0_i32 = arith.constant 0 : i32
    return %arg0, %arg1 : i32, i32
  }
}

module attributes {stable_mosaic.version = 11 : i64} {
  func.func @_linear_kernel(%arg0: i32, %arg1: i32, %arg2: i32, %arg3: memref<80x256xbf16, #tpu.memory_space<vmem>>, %arg4: memref<256x64xbf16, #tpu.memory_space<vmem>>, %arg5: memref<1x64xf32, #tpu.memory_space<vmem>>, %arg6: memref<80x64xf32, #tpu.memory_space<vmem>>, %arg7: memref<80x64xf32, #tpu.memory_space<vmem>>, %arg8: memref<80x64xf32, #tpu.memory_space<vmem>>) attributes {dimension_semantics = [#tpu.dimension_semantics<parallel>, #tpu.dimension_semantics<parallel>, #tpu.dimension_semantics<arbitrary>], iteration_bounds = array<i64: 1, 1, 1>, scalar_prefetch = 0 : i64, scratch_operands = 1 : i64, tpu.core_type = #tpu.core_type<tc>, window_params = [{transform_indices = @transform_0, window_bounds = array<i64: 80, 256>}, {transform_indices = @transform_1, window_bounds = array<i64: 256, 64>}, {transform_indices = @transform_2, window_bounds = array<i64: 1, 64>}, {transform_indices = @transform_3, window_bounds = array<i64: 80, 64>}, {transform_indices = @transform_4, window_bounds = array<i64: 80, 64>}]} {
    %c0_i32 = arith.constant 0 : i32
    %0 = arith.cmpi eq, %arg2, %c0_i32 : i32
    %1 = arith.extui %0 : i1 to i32
    %c0_i32_0 = arith.constant 0 : i32
    %2 = arith.cmpi ne, %1, %c0_i32_0 : i32
    scf.if %2 {
      %cst_10 = arith.constant 0.000000e+00 : f32
      %12 = vector.broadcast %cst_10 : f32 to vector<80x64xf32>
      %c0_11 = arith.constant 0 : index
      %c0_12 = arith.constant 0 : index
      %13 = vector.load %arg8[%c0_11, %c0_12] : memref<80x64xf32, #tpu.memory_space<vmem>>, vector<80x64xf32>
      tpu.vector_store %arg8[%c0_11, %c0_12], %12 {strides = array<i32>} : memref<80x64xf32, #tpu.memory_space<vmem>>, vector<80x64xf32>,
    } else {
    }
    %c0 = arith.constant 0 : index
    %c0_1 = arith.constant 0 : index
    %3 = vector.load %arg8[%c0, %c0_1] : memref<80x64xf32, #tpu.memory_space<vmem>>, vector<80x64xf32>
    %c0_2 = arith.constant 0 : index
    %c0_3 = arith.constant 0 : index
    %4 = vector.load %arg3[%c0_2, %c0_3] : memref<80x256xbf16, #tpu.memory_space<vmem>>, vector<80x256xbf16>
    %c0_4 = arith.constant 0 : index
    %c0_5 = arith.constant 0 : index
    %5 = vector.load %arg4[%c0_4, %c0_5] : memref<256x64xbf16, #tpu.memory_space<vmem>>, vector<256x64xbf16>
    %cst = arith.constant dense<0.000000e+00> : vector<80x64xf32>
    %6 = tpu.matmul %4, %5, %cst {dimension_numbers = #tpu.dot_dimension_numbers<[1], [0], [0], [1], [0, 0, 1, 1], [], []>} : vector<80x256xbf16>, vector<256x64xbf16>, vector<80x64xf32> -> vector<80x64xf32>
    %7 = arith.addf %3, %6 : vector<80x64xf32>
    %c0_6 = arith.constant 0 : index
    %c0_7 = arith.constant 0 : index
    %8 = vector.load %arg8[%c0_6, %c0_7] : memref<80x64xf32, #tpu.memory_space<vmem>>, vector<80x64xf32>
    tpu.vector_store %arg8[%c0_6, %c0_7], %7 {strides = array<i32>} : memref<80x64xf32, #tpu.memory_space<vmem>>, vector<80x64xf32>,
    %c0_i32_8 = arith.constant 0 : i32
    %9 = arith.cmpi eq, %arg2, %c0_i32_8 : i32
    %10 = arith.extui %9 : i1 to i32
    %c0_i32_9 = arith.constant 0 : i32
    %11 = arith.cmpi ne, %10, %c0_i32_9 : i32
    scf.if %11 {
      %c0_10 = arith.constant 0 : index
      %c0_11 = arith.constant 0 : index
      %12 = vector.load %arg8[%c0_10, %c0_11] : memref<80x64xf32, #tpu.memory_space<vmem>>, vector<80x64xf32>
      %c0_12 = arith.constant 0 : index
      %c0_13 = arith.constant 0 : index
      %13 = vector.load %arg5[%c0_12, %c0_13] : memref<1x64xf32, #tpu.memory_space<vmem>>, vector<1x64xf32>
      %14 = vector.broadcast %13 : vector<1x64xf32> to vector<80x64xf32>
      %15 = arith.addf %12, %14 : vector<80x64xf32>
      %c0_14 = arith.constant 0 : index
      %c0_15 = arith.constant 0 : index
      %16 = vector.load %arg6[%c0_14, %c0_15] : memref<80x64xf32, #tpu.memory_space<vmem>>, vector<80x64xf32>
      %17 = arith.addf %15, %16 : vector<80x64xf32>
      %c0_16 = arith.constant 0 : index
      %c0_17 = arith.constant 0 : index
      %18 = vector.load %arg7[%c0_16, %c0_17] : memref<80x64xf32, #tpu.memory_space<vmem>>, vector<80x64xf32>
      tpu.vector_store %arg7[%c0_16, %c0_17], %17 {strides = array<i32>} : memref<80x64xf32, #tpu.memory_space<vmem>>, vector<80x64xf32>,
    } else {
    }
    return
  }
  func.func @transform_0(%arg0: i32, %arg1: i32, %arg2: i32) -> (i32, i32) {
    %c0_i32 = arith.constant 0 : i32
    return %arg0, %arg2 : i32, i32
  }
  func.func @transform_1(%arg0: i32, %arg1: i32, %arg2: i32) -> (i32, i32) {
    %c0_i32 = arith.constant 0 : i32
    return %arg2, %arg1 : i32, i32
  }
  func.func @transform_2(%arg0: i32, %arg1: i32, %arg2: i32) -> (i32, i32) {
    %c0_i32 = arith.constant 0 : i32
    %c0_i32_0 = arith.constant 0 : i32
    return %c0_i32, %arg1 : i32, i32
  }
  func.func @transform_3(%arg0: i32, %arg1: i32, %arg2: i32) -> (i32, i32) {
    %c0_i32 = arith.constant 0 : i32
    return %arg0, %arg1 : i32, i32
  }
  func.func @transform_4(%arg0: i32, %arg1: i32, %arg2: i32) -> (i32, i32) {
    %c0_i32 = arith.constant 0 : i32
    return %arg0, %arg1 : i32, i32
  }
}

module attributes {stable_mosaic.version = 11 : i64} {
  func.func @_linear_kernel(%arg0: i32, %arg1: i32, %arg2: i32, %arg3: memref<64x64xbf16, #tpu.memory_space<vmem>>, %arg4: memref<64x96xbf16, #tpu.memory_space<vmem>>, %arg5: memref<1x96xf32, #tpu.memory_space<vmem>>, %arg6: memref<64x96xf32, #tpu.memory_space<vmem>>, %arg7: memref<64x96xf32, #tpu.memory_space<vmem>>) attributes {dimension_semantics = [#tpu.dimension_semantics<parallel>, #tpu.dimension_semantics<parallel>, #tpu.dimension_semantics<arbitrary>], iteration_bounds = array<i64: 1, 1, 1>, scalar_prefetch = 0 : i64, scratch_operands = 1 : i64, tpu.core_type = #tpu.core_type<tc>, window_params = [{transform_indices = @transform_0, window_bounds = array<i64: 64, 64>}, {transform_indices = @transform_1, window_bounds = array<i64: 64, 96>}, {transform_indices = @transform_2, window_bounds = array<i64: 1, 96>}, {transform_indices = @transform_3, window_bounds = array<i64: 64, 96>}]} {
    %c0_i32 = arith.constant 0 : i32
    %0 = arith.cmpi eq, %arg2, %c0_i32 : i32
    %1 = arith.extui %0 : i1 to i32
    %c0_i32_0 = arith.constant 0 : i32
    %2 = arith.cmpi ne, %1, %c0_i32_0 : i32
    scf.if %2 {
      %cst_10 = arith.constant 0.000000e+00 : f32
      %12 = vector.broadcast %cst_10 : f32 to vector<64x96xf32>
      %c0_11 = arith.constant 0 : index
      %c0_12 = arith.constant 0 : index
      %13 = vector.load %arg7[%c0_11, %c0_12] : memref<64x96xf32, #tpu.memory_space<vmem>>, vector<64x96xf32>
      tpu.vector_store %arg7[%c0_11, %c0_12], %12 {strides = array<i32>} : memref<64x96xf32, #tpu.memory_space<vmem>>, vector<64x96xf32>,
    } else {
    }
    %c0 = arith.constant 0 : index
    %c0_1 = arith.constant 0 : index
    %3 = vector.load %arg7[%c0, %c0_1] : memref<64x96xf32, #tpu.memory_space<vmem>>, vector<64x96xf32>
    %c0_2 = arith.constant 0 : index
    %c0_3 = arith.constant 0 : index
    %4 = vector.load %arg3[%c0_2, %c0_3] : memref<64x64xbf16, #tpu.memory_space<vmem>>, vector<64x64xbf16>
    %c0_4 = arith.constant 0 : index
    %c0_5 = arith.constant 0 : index
    %5 = vector.load %arg4[%c0_4, %c0_5] : memref<64x96xbf16, #tpu.memory_space<vmem>>, vector<64x96xbf16>
    %cst = arith.constant dense<0.000000e+00> : vector<64x96xf32>
    %6 = tpu.matmul %4, %5, %cst {dimension_numbers = #tpu.dot_dimension_numbers<[1], [0], [0], [1], [0, 0, 1, 1], [], []>} : vector<64x64xbf16>, vector<64x96xbf16>, vector<64x96xf32> -> vector<64x96xf32>
    %7 = arith.addf %3, %6 : vector<64x96xf32>
    %c0_6 = arith.constant 0 : index
    %c0_7 = arith.constant 0 : index
    %8 = vector.load %arg7[%c0_6, %c0_7] : memref<64x96xf32, #tpu.memory_space<vmem>>, vector<64x96xf32>
    tpu.vector_store %arg7[%c0_6, %c0_7], %7 {strides = array<i32>} : memref<64x96xf32, #tpu.memory_space<vmem>>, vector<64x96xf32>,
    %c0_i32_8 = arith.constant 0 : i32
    %9 = arith.cmpi eq, %arg2, %c0_i32_8 : i32
    %10 = arith.extui %9 : i1 to i32
    %c0_i32_9 = arith.constant 0 : i32
    %11 = arith.cmpi ne, %10, %c0_i32_9 : i32
    scf.if %11 {
      %c0_10 = arith.constant 0 : index
      %c0_11 = arith.constant 0 : index
      %12 = vector.load %arg7[%c0_10, %c0_11] : memref<64x96xf32, #tpu.memory_space<vmem>>, vector<64x96xf32>
      %c0_12 = arith.constant 0 : index
      %c0_13 = arith.constant 0 : index
      %13 = vector.load %arg5[%c0_12, %c0_13] : memref<1x96xf32, #tpu.memory_space<vmem>>, vector<1x96xf32>
      %14 = vector.broadcast %13 : vector<1x96xf32> to vector<64x96xf32>
      %15 = arith.addf %12, %14 : vector<64x96xf32>
      %c0_14 = arith.constant 0 : index
      %c0_15 = arith.constant 0 : index
      %16 = vector.load %arg6[%c0_14, %c0_15] : memref<64x96xf32, #tpu.memory_space<vmem>>, vector<64x96xf32>
      tpu.vector_store %arg6[%c0_14, %c0_15], %15 {strides = array<i32>} : memref<64x96xf32, #tpu.memory_space<vmem>>, vector<64x96xf32>,
    } else {
    }
    return
  }
  func.func @transform_0(%arg0: i32, %arg1: i32, %arg2: i32) -> (i32, i32) {
    %c0_i32 = arith.constant 0 : i32
    return %arg0, %arg2 : i32, i32
  }
  func.func @transform_1(%arg0: i32, %arg1: i32, %arg2: i32) -> (i32, i32) {
    %c0_i32 = arith.constant 0 : i32
    return %arg2, %arg1 : i32, i32
  }
  func.func @transform_2(%arg0: i32, %arg1: i32, %arg2: i32) -> (i32, i32) {
    %c0_i32 = arith.constant 0 : i32
    %c0_i32_0 = arith.constant 0 : i32
    return %c0_i32, %arg1 : i32, i32
  }
  func.func @transform_3(%arg0: i32, %arg1: i32, %arg2: i32) -> (i32, i32) {
    %c0_i32 = arith.constant 0 : i32
    return %arg0, %arg1 : i32, i32
  }
}

</mosaic_0001>

<llo_original>
// kernel: forward.34
$region0: #{forward.34}
  #allocation0 [shape = 'u32[]', space=smem, size = 0x4, offset = 0x4, fixed_abs, tag = 'smem constant byte address 0x4 - core index']
  #allocation1 [shape = 'u32[144,128]{1,0:T(1,128)}', space=vmem, size = 0x12000, scoped, tag = 'internal scratch']
  #allocation2 [shape = 'f32[64,64]{1,0:T(8,128)}', space=vmem, size = 0x8000, scoped, tag = 'scratch operand']
  %s0 = inlined_call_operand.vmem [shape: bf16[64,96], index: 0, kind: input, shape index: {}]
  %s1 = inlined_call_operand.vmem [shape: bf16[96,64], index: 1, kind: input, shape index: {}]
  %s2 = inlined_call_operand.vmem [shape: f32[1,64], index: 2, kind: input, shape index: {}]
  %s3 = inlined_call_operand.vmem [shape: f32[64,64], index: 3, kind: input, shape index: {}]
  %s4 = inlined_call_operand.vmem [shape: f32[64,64], index: 4, kind: output, shape index: {}]
  %s5 = sld [smem:[#allocation0]]
  $region34: #{forward.34} parent=0
    _
  %s7 = ssub.s32 1, %s5
  %s8 = scalar_select 0, %s7, %s5
  // Predicated region
  $region2: #{forward.34} parent=0 // pred_check
    _
  $region3: #{forward.34} parent=0 // pred_check_branch
    %10 = sbr.rel (0) target = $region5
  $region4: #{forward.34} parent=0 // pred_region
    _
  $region5: #{forward.34} parent=0 // pred_fallthru
    _
  // Predicated region
  $region6: #{forward.34} parent=0 // pred_check
    _
  $region7: #{forward.34} parent=0 // pred_check_branch
    %12 = sbr.rel (0) target = $region9
  $region8: #{forward.34} parent=0 // pred_region
    _
  $region9: #{forward.34} parent=0 // pred_fallthru
    _
  // Predicated region
  $region10: #{forward.34} parent=0 // pred_check
    _
  $region11: #{forward.34} parent=0 // pred_check_branch
    %14 = sbr.rel (0) target = $region13
  $region12: #{forward.34} parent=0 // pred_region
    _
  $region13: #{forward.34} parent=0 // pred_fallthru
    _
  // Predicated region
  $region14: #{forward.34} parent=0 // pred_check
    _
  $region15: #{forward.34} parent=0 // pred_check_branch
    %16 = sbr.rel (0) target = $region17
  $region16: #{forward.34} parent=0 // pred_region
    _
  $region17: #{forward.34} parent=0 // pred_fallthru
    _
  %p18 = scmp.eq.s32.totalorder 0, 0
  // Predicated region
  $region18: #{forward.34} parent=0 // pred_check
    %p19 = pneg %p18
  $region19: #{forward.34} parent=0 // pred_check_branch
    %21 = sbr.rel (%p19) target = $region21
  $region20: #{forward.34} parent=0 // pred_region
    %vm22 = vcmask 523264
    %23 = vst.msk [vmem:[#allocation2] sm:$0xff] %vm22, 0.0
    %24 = vst.msk [vmem:[#allocation2 + $0x8] sm:$0xff] %vm22, 0.0
    %25 = vst.msk [vmem:[#allocation2 + $0x10] sm:$0xff] %vm22, 0.0
    %26 = vst.msk [vmem:[#allocation2 + $0x18] sm:$0xff] %vm22, 0.0
    %27 = vst.msk [vmem:[#allocation2 + $0x20] sm:$0xff] %vm22, 0.0
    %28 = vst.msk [vmem:[#allocation2 + $0x28] sm:$0xff] %vm22, 0.0
    %29 = vst.msk [vmem:[#allocation2 + $0x30] sm:$0xff] %vm22, 0.0
    %30 = vst.msk [vmem:[#allocation2 + $0x38] sm:$0xff] %vm22, 0.0
  $region21: #{forward.34} parent=0 // pred_fallthru
    _
  %v31 = vld [vmem:[#allocation2] sm:$0xff]
  %v32 = vld [vmem:[#allocation2 + $0x8] sm:$0xff]
  %v33 = vld [vmem:[#allocation2 + $0x10] sm:$0xff]
  %v34 = vld [vmem:[#allocation2 + $0x18] sm:$0xff]
  %v35 = vld [vmem:[#allocation2 + $0x20] sm:$0xff]
  %v36 = vld [vmem:[#allocation2 + $0x28] sm:$0xff]
  %v37 = vld [vmem:[#allocation2 + $0x30] sm:$0xff]
  %v38 = vld [vmem:[#allocation2 + $0x38] sm:$0xff]
  %v39 = vld [vmem:[%s0] sm:$0xf]
  %v40 = vld [vmem:[%s0 + $0x4] sm:$0xf]
  %v41 = vld [vmem:[%s0 + $0x8] sm:$0xf]
  %v42 = vld [vmem:[%s0 + $0xc] sm:$0xf]
  %v43 = vld [vmem:[%s0 + $0x10] sm:$0xf]
  %v44 = vld [vmem:[%s0 + $0x14] sm:$0xf]
  %v45 = vld [vmem:[%s0 + $0x18] sm:$0xf]
  %v46 = vld [vmem:[%s0 + $0x1c] sm:$0xf]
  %v47 = vld [vmem:[%s1] sm:$0xf]
  %v48 = vld [vmem:[%s1 + $0x4] sm:$0xf]
  %v49 = vld [vmem:[%s1 + $0x8] sm:$0xf]
  %v50 = vld [vmem:[%s1 + $0xc] sm:$0xf]
  %v51 = vld [vmem:[%s1 + $0x10] sm:$0xf]
  %v52 = vld [vmem:[%s1 + $0x14] sm:$0xf]
  %v53 = vld [vmem:[%s1 + $0x18] sm:$0xf]
  %v54 = vld [vmem:[%s1 + $0x1c] sm:$0xf]
  %v55 = vld [vmem:[%s1 + $0x20] sm:$0xf]
  %v56 = vld [vmem:[%s1 + $0x24] sm:$0xf]
  %v57 = vld [vmem:[%s1 + $0x28] sm:$0xf]
  %v58 = vld [vmem:[%s1 + $0x2c] sm:$0xf]
  %v67 = vunpack.c.l.b16 %v39
  %v68 = vunpack.c.l.b16 %v40
  %v69 = vunpack.c.l.b16 %v41
  %v70 = vunpack.c.l.b16 %v42
  %v71 = vunpack.c.l.b16 %v43
  %v72 = vunpack.c.l.b16 %v44
  %v73 = vunpack.c.l.b16 %v45
  %v74 = vunpack.c.l.b16 %v46
  %v75 = vpack.c.b16 %v68, %v67
  %v76 = vpack.c.b16 %v70, %v69
  %v77 = vpack.c.b16 %v72, %v71
  %v78 = vpack.c.b16 %v74, %v73
  %v91 = vunpack.c.l.b16 %v47
  %v92 = vunpack.c.l.b16 %v48
  %v93 = vunpack.c.l.b16 %v49
  %v94 = vunpack.c.l.b16 %v50
  %v95 = vunpack.c.l.b16 %v51
  %v96 = vunpack.c.l.b16 %v52
  %v97 = vunpack.c.l.b16 %v53
  %v98 = vunpack.c.l.b16 %v54
  %v99 = vunpack.c.l.b16 %v55
  %v100 = vunpack.c.l.b16 %v56
  %v101 = vunpack.c.l.b16 %v57
  %v102 = vunpack.c.l.b16 %v58
  %v103 = vpack.c.b16 %v92, %v91
  %v104 = vpack.c.b16 %v94, %v93
  %v105 = vpack.c.b16 %v96, %v95
  %v106 = vpack.c.b16 %v98, %v97
  %v107 = vpack.c.b16 %v100, %v99
  %v108 = vpack.c.b16 %v102, %v101
  %vm115 = vcmask 785408
  %v117 = vsel %vm115, %v75, 0
  %v120 = vsel %vm115, %v76, 0
  %v123 = vsel %vm115, %v77, 0
  %v126 = vsel %vm115, %v78, 0
  %128 = vmatprep.subr.bf16.mxu0 0
  %129 = vmatpush1.bf16.msra.mxu0 %v103
  %130 = vmatprep.subr.bf16.mxu0 0
  %131 = vmatpush1.bf16.msra.mxu0 %v104
  %132 = vmatprep.subr.bf16.mxu0 0
  %133 = vmatpush1.bf16.msra.mxu0 %v105
  %134 = vmatprep.subr.bf16.mxu0 0
  %135 = vmatpush1.bf16.msra.mxu0 %v106
  %136 = vmatprep.subr.bf16.mxu0 0
  %137 = vmatpush1.bf16.msra.mxu0 %v107
  %138 = vmatprep.subr.bf16.mxu0 0
  %139 = vmatpush1.bf16.msra.mxu0 %v108
  %140 = vmatprep.subr.bf16.mxu0 0
  %141 = vmatpush1.bf16.msra.mxu0 0
  %142 = vmatprep.subr.bf16.mxu0 0
  %143 = vmatpush1.bf16.msra.mxu0 0
  %144 = vmatprep.subr.bf16.mxu0 0
  %145 = vmatpush1.bf16.msra.mxu0 0
  %146 = vmatprep.subr.bf16.mxu0 0
  %147 = vmatpush1.bf16.msra.mxu0 0
  %148 = vmatprep.subr.bf16.mxu0 0
  %149 = vmatpush1.bf16.msra.mxu0 0
  %150 = vmatprep.subr.bf16.mxu0 0
  %151 = vmatpush1.bf16.msra.mxu0 0
  %152 = vmatprep.subr.bf16.mxu0 0
  %153 = vmatpush1.bf16.msra.mxu0 0
  %154 = vmatprep.subr.bf16.mxu0 0
  %155 = vmatpush1.bf16.msra.mxu0 0
  %156 = vmatprep.subr.bf16.mxu0 0
  %157 = vmatpush1.bf16.msra.mxu0 0
  %158 = vmatprep.subr.bf16.mxu0 0
  %159 = vmatpush1.bf16.msra.mxu0 0
  %160 = vmatprep.mubr.bf16.mxu0 0
  %161 = vmatmul.mubr.bf16.gmra.mrb[0].mxu0 %v117
  %v162 = vpop.f32.mrb[0].mxu0
  %v163 = vadd.f32 0.0, %v162
  %v164 = vpop.f32.mrb[0].mxu0
  %v165 = vpop.f32.mrb[0].mxu0
  %v166 = vadd.f32 0.0, %v165
  %v167 = vpop.f32.mrb[0].mxu0
  %168 = vmatprep.mubr.bf16.mxu0 0
  %169 = vmatmul.mubr.bf16.gmra.mrb[0].mxu0 %v120
  %v170 = vpop.f32.mrb[0].mxu0
  %v171 = vadd.f32 0.0, %v170
  %v172 = vpop.f32.mrb[0].mxu0
  %v173 = vpop.f32.mrb[0].mxu0
  %v174 = vadd.f32 0.0, %v173
  %v175 = vpop.f32.mrb[0].mxu0
  %176 = vmatprep.mubr.bf16.mxu0 0
  %177 = vmatmul.mubr.bf16.gmra.mrb[0].mxu0 %v123
  %v178 = vpop.f32.mrb[0].mxu0
  %v179 = vadd.f32 0.0, %v178
  %v180 = vpop.f32.mrb[0].mxu0
  %v181 = vpop.f32.mrb[0].mxu0
  %v182 = vadd.f32 0.0, %v181
  %v183 = vpop.f32.mrb[0].mxu0
  %184 = vmatprep.mubr.bf16.mxu0 0
  %185 = vmatmul.mubr.bf16.gmra.mrb[0].mxu0 %v126
  %v186 = vpop.f32.mrb[0].mxu0
  %v187 = vadd.f32 0.0, %v186
  %v188 = vpop.f32.mrb[0].mxu0
  %v189 = vpop.f32.mrb[0].mxu0
  %v190 = vadd.f32 0.0, %v189
  %v191 = vpop.f32.mrb[0].mxu0
  %192 = vdwg.mxu0
  %v193 = vadd.f32 %v31, %v163
  %v194 = vadd.f32 %v32, %v166
  %v195 = vadd.f32 %v33, %v171
  %v196 = vadd.f32 %v34, %v174
  %v197 = vadd.f32 %v35, %v179
  %v198 = vadd.f32 %v36, %v182
  %v199 = vadd.f32 %v37, %v187
  %v200 = vadd.f32 %v38, %v190
  %vm201 = vcmask 523264
  %202 = vst.msk [vmem:[#allocation2] sm:$0xff] %vm201, %v193
  %203 = vst.msk [vmem:[#allocation2 + $0x8] sm:$0xff] %vm201, %v194
  %204 = vst.msk [vmem:[#allocation2 + $0x10] sm:$0xff] %vm201, %v195
  %205 = vst.msk [vmem:[#allocation2 + $0x18] sm:$0xff] %vm201, %v196
  %206 = vst.msk [vmem:[#allocation2 + $0x20] sm:$0xff] %vm201, %v197
  %207 = vst.msk [vmem:[#allocation2 + $0x28] sm:$0xff] %vm201, %v198
  %208 = vst.msk [vmem:[#allocation2 + $0x30] sm:$0xff] %vm201, %v199
  %209 = vst.msk [vmem:[#allocation2 + $0x38] sm:$0xff] %vm201, %v200
  // Predicated region
  $region22: #{forward.34} parent=0 // pred_check
    %p210 = pneg %p18
  $region23: #{forward.34} parent=0 // pred_check_branch
    %212 = sbr.rel (%p210) target = $region25
  $region24: #{forward.34} parent=0 // pred_region
    %v213 = vld [vmem:[#allocation2] sm:$0xff]
    %v214 = vld [vmem:[#allocation2 + $0x8] sm:$0xff]
    %v215 = vld [vmem:[#allocation2 + $0x10] sm:$0xff]
    %v216 = vld [vmem:[#allocation2 + $0x18] sm:$0xff]
    %v217 = vld [vmem:[#allocation2 + $0x20] sm:$0xff]
    %v218 = vld [vmem:[#allocation2 + $0x28] sm:$0xff]
    %v219 = vld [vmem:[#allocation2 + $0x30] sm:$0xff]
    %v220 = vld [vmem:[#allocation2 + $0x38] sm:$0xff]
    %v221 = vld [vmem:[%s2] sm:$0x1]
    %v223 = vlaneseq
    %v224 = vshrl.u32 %v223, 7
    %v225 = vsub.s32 0, %v224
    %v226 = vrot.slane %v221, %v225
    %v228 = vadd.f32 %v213, %v226
    %v229 = vadd.f32 %v214, %v226
    %v230 = vadd.f32 %v215, %v226
    %v231 = vadd.f32 %v216, %v226
    %v232 = vadd.f32 %v217, %v226
    %v233 = vadd.f32 %v218, %v226
    %v234 = vadd.f32 %v219, %v226
    %v235 = vadd.f32 %v220, %v226
    %v236 = vld [vmem:[%s3] sm:$0xff]
    %v237 = vld [vmem:[%s3 + $0x8] sm:$0xff]
    %v238 = vld [vmem:[%s3 + $0x10] sm:$0xff]
    %v239 = vld [vmem:[%s3 + $0x18] sm:$0xff]
    %v240 = vld [vmem:[%s3 + $0x20] sm:$0xff]
    %v241 = vld [vmem:[%s3 + $0x28] sm:$0xff]
    %v242 = vld [vmem:[%s3 + $0x30] sm:$0xff]
    %v243 = vld [vmem:[%s3 + $0x38] sm:$0xff]
    %v244 = vadd.f32 %v228, %v236
    %v245 = vadd.f32 %v229, %v237
    %v246 = vadd.f32 %v230, %v238
    %v247 = vadd.f32 %v231, %v239
    %v248 = vadd.f32 %v232, %v240
    %v249 = vadd.f32 %v233, %v241
    %v250 = vadd.f32 %v234, %v242
    %v251 = vadd.f32 %v235, %v243
    %252 = vst.msk [vmem:[%s4] sm:$0xff] %vm201, %v244
    %253 = vst.msk [vmem:[%s4 + $0x8] sm:$0xff] %vm201, %v245
    %254 = vst.msk [vmem:[%s4 + $0x10] sm:$0xff] %vm201, %v246
    %255 = vst.msk [vmem:[%s4 + $0x18] sm:$0xff] %vm201, %v247
    %256 = vst.msk [vmem:[%s4 + $0x20] sm:$0xff] %vm201, %v248
    %257 = vst.msk [vmem:[%s4 + $0x28] sm:$0xff] %vm201, %v249
    %258 = vst.msk [vmem:[%s4 + $0x30] sm:$0xff] %vm201, %v250
    %259 = vst.msk [vmem:[%s4 + $0x38] sm:$0xff] %vm201, %v251
  $region25: #{forward.34} parent=0 // pred_fallthru
    _
  // Predicated region
  $region26: #{forward.34} parent=0 // pred_check
    _
  $region27: #{forward.34} parent=0 // pred_check_branch
    %261 = sbr.rel (0) target = $region29
  $region28: #{forward.34} parent=0 // pred_region
    _
  $region29: #{forward.34} parent=0 // pred_fallthru
    _
  // Predicated region
  $region30: #{forward.34} parent=0 // pred_check
    _
  $region31: #{forward.34} parent=0 // pred_check_branch
    %263 = sbr.rel (0) target = $region33
  $region32: #{forward.34} parent=0 // pred_region
    _
  $region33: #{forward.34} parent=0 // pred_fallthru
    _

// kernel: forward.35
$region0: #{forward.35}
  #allocation0 [shape = 'u32[]', space=smem, size = 0x4, offset = 0x4, fixed_abs, tag = 'smem constant byte address 0x4 - core index']
  #allocation1 [shape = 'u32[144,128]{1,0:T(1,128)}', space=vmem, size = 0x12000, scoped, tag = 'internal scratch']
  %s0 = inlined_call_operand.vmem [shape: f32[80,64], index: 0, kind: input, shape index: {}]
  %s1 = inlined_call_operand.vmem [shape: f32[1,64], index: 1, kind: input, shape index: {}]
  %s2 = inlined_call_operand.vmem [shape: f32[1,64], index: 2, kind: input, shape index: {}]
  %s3 = inlined_call_operand.vmem [shape: f32[80,64], index: 3, kind: output, shape index: {}]
  %s4 = sld [smem:[#allocation0]]
  $region22: #{forward.35} parent=0
    _
  %s6 = ssub.s32 1, %s4
  %s7 = scalar_select 0, %s6, %s4
  // Predicated region
  $region2: #{forward.35} parent=0 // pred_check
    _
  $region3: #{forward.35} parent=0 // pred_check_branch
    %9 = sbr.rel (0) target = $region5
  $region4: #{forward.35} parent=0 // pred_region
    _
  $region5: #{forward.35} parent=0 // pred_fallthru
    _
  // Predicated region
  $region6: #{forward.35} parent=0 // pred_check
    _
  $region7: #{forward.35} parent=0 // pred_check_branch
    %11 = sbr.rel (0) target = $region9
  $region8: #{forward.35} parent=0 // pred_region
    _
  $region9: #{forward.35} parent=0 // pred_fallthru
    _
  // Predicated region
  $region10: #{forward.35} parent=0 // pred_check
    _
  $region11: #{forward.35} parent=0 // pred_check_branch
    %13 = sbr.rel (0) target = $region13
  $region12: #{forward.35} parent=0 // pred_region
    _
  $region13: #{forward.35} parent=0 // pred_fallthru
    _
  %v14 = vld [vmem:[%s0] sm:$0xff]
  %v15 = vld [vmem:[%s0 + $0x8] sm:$0xff]
  %v16 = vld [vmem:[%s0 + $0x10] sm:$0xff]
  %v17 = vld [vmem:[%s0 + $0x18] sm:$0xff]
  %v18 = vld [vmem:[%s0 + $0x20] sm:$0xff]
  %v19 = vld [vmem:[%s0 + $0x28] sm:$0xff]
  %v20 = vld [vmem:[%s0 + $0x30] sm:$0xff]
  %v21 = vld [vmem:[%s0 + $0x38] sm:$0xff]
  %v22 = vld [vmem:[%s0 + $0x40] sm:$0xff]
  %v23 = vld [vmem:[%s0 + $0x48] sm:$0xff]
  %vm24 = vcmask 523264
  %v25 = vsel %vm24, %v14, 0.0
  %26 = vadd.xlane.f32.xlu0 %v25
  %v27 = vpop.xlane.xlu0 %26
  %v28 = vsel %vm24, %v15, 0.0
  %29 = vadd.xlane.f32.xlu0 %v28
  %v30 = vpop.xlane.xlu0 %29
  %v31 = vsel %vm24, %v16, 0.0
  %32 = vadd.xlane.f32.xlu0 %v31
  %v33 = vpop.xlane.xlu0 %32
  %v34 = vsel %vm24, %v17, 0.0
  %35 = vadd.xlane.f32.xlu0 %v34
  %v36 = vpop.xlane.xlu0 %35
  %v37 = vsel %vm24, %v18, 0.0
  %38 = vadd.xlane.f32.xlu0 %v37
  %v39 = vpop.xlane.xlu0 %38
  %v40 = vsel %vm24, %v19, 0.0
  %41 = vadd.xlane.f32.xlu0 %v40
  %v42 = vpop.xlane.xlu0 %41
  %v43 = vsel %vm24, %v20, 0.0
  %44 = vadd.xlane.f32.xlu0 %v43
  %v45 = vpop.xlane.xlu0 %44
  %v46 = vsel %vm24, %v21, 0.0
  %47 = vadd.xlane.f32.xlu0 %v46
  %v48 = vpop.xlane.xlu0 %47
  %v49 = vsel %vm24, %v22, 0.0
  %50 = vadd.xlane.f32.xlu0 %v49
  %v51 = vpop.xlane.xlu0 %50
  %v52 = vsel %vm24, %v23, 0.0
  %53 = vadd.xlane.f32.xlu0 %v52
  %v54 = vpop.xlane.xlu0 %53
  %v55 = vrcp.pop 64.0
  %v56 = vmul.f32 %v27, %v55
  %v57 = vmul.f32 %v30, %v55
  %v58 = vmul.f32 %v33, %v55
  %v59 = vmul.f32 %v36, %v55
  %v60 = vmul.f32 %v39, %v55
  %v61 = vmul.f32 %v42, %v55
  %v62 = vmul.f32 %v45, %v55
  %v63 = vmul.f32 %v48, %v55
  %v64 = vmul.f32 %v51, %v55
  %v65 = vmul.f32 %v54, %v55
  %v66 = vsub.f32 %v14, %v56
  %v67 = vsub.f32 %v15, %v57
  %v68 = vsub.f32 %v16, %v58
  %v69 = vsub.f32 %v17, %v59
  %v70 = vsub.f32 %v18, %v60
  %v71 = vsub.f32 %v19, %v61
  %v72 = vsub.f32 %v20, %v62
  %v73 = vsub.f32 %v21, %v63
  %v74 = vsub.f32 %v22, %v64
  %v75 = vsub.f32 %v23, %v65
  %v76 = vmul.f32 %v66, %v66
  %v77 = vmul.f32 %v67, %v67
  %v78 = vmul.f32 %v68, %v68
  %v79 = vmul.f32 %v69, %v69
  %v80 = vmul.f32 %v70, %v70
  %v81 = vmul.f32 %v71, %v71
  %v82 = vmul.f32 %v72, %v72
  %v83 = vmul.f32 %v73, %v73
  %v84 = vmul.f32 %v74, %v74
  %v85 = vmul.f32 %v75, %v75
  %v86 = vsel %vm24, %v76, 0.0
  %87 = vadd.xlane.f32.xlu0 %v86
  %v88 = vpop.xlane.xlu0 %87
  %v89 = vsel %vm24, %v77, 0.0
  %90 = vadd.xlane.f32.xlu0 %v89
  %v91 = vpop.xlane.xlu0 %90
  %v92 = vsel %vm24, %v78, 0.0
  %93 = vadd.xlane.f32.xlu0 %v92
  %v94 = vpop.xlane.xlu0 %93
  %v95 = vsel %vm24, %v79, 0.0
  %96 = vadd.xlane.f32.xlu0 %v95
  %v97 = vpop.xlane.xlu0 %96
  %v98 = vsel %vm24, %v80, 0.0
  %99 = vadd.xlane.f32.xlu0 %v98
  %v100 = vpop.xlane.xlu0 %99
  %v101 = vsel %vm24, %v81, 0.0
  %102 = vadd.xlane.f32.xlu0 %v101
  %v103 = vpop.xlane.xlu0 %102
  %v104 = vsel %vm24, %v82, 0.0
  %105 = vadd.xlane.f32.xlu0 %v104
  %v106 = vpop.xlane.xlu0 %105
  %v107 = vsel %vm24, %v83, 0.0
  %108 = vadd.xlane.f32.xlu0 %v107
  %v109 = vpop.xlane.xlu0 %108
  %v110 = vsel %vm24, %v84, 0.0
  %111 = vadd.xlane.f32.xlu0 %v110
  %v112 = vpop.xlane.xlu0 %111
  %v113 = vsel %vm24, %v85, 0.0
  %114 = vadd.xlane.f32.xlu0 %v113
  %v115 = vpop.xlane.xlu0 %114
  %v116 = vmul.f32 %v88, %v55
  %v117 = vmul.f32 %v91, %v55
  %v118 = vmul.f32 %v94, %v55
  %v119 = vmul.f32 %v97, %v55
  %v120 = vmul.f32 %v100, %v55
  %v121 = vmul.f32 %v103, %v55
  %v122 = vmul.f32 %v106, %v55
  %v123 = vmul.f32 %v109, %v55
  %v124 = vmul.f32 %v112, %v55
  %v125 = vmul.f32 %v115, %v55
  %v126 = vadd.f32 %v116, 1e-05
  %v127 = vadd.f32 %v117, 1e-05
  %v128 = vadd.f32 %v118, 1e-05
  %v129 = vadd.f32 %v119, 1e-05
  %v130 = vadd.f32 %v120, 1e-05
  %v131 = vadd.f32 %v121, 1e-05
  %v132 = vadd.f32 %v122, 1e-05
  %v133 = vadd.f32 %v123, 1e-05
  %v134 = vadd.f32 %v124, 1e-05
  %v135 = vadd.f32 %v125, 1e-05
  %v136 = vrsqrt.pop %v126
  %v137 = vrsqrt.pop %v127
  %v138 = vrsqrt.pop %v128
  %v139 = vrsqrt.pop %v129
  %v140 = vrsqrt.pop %v130
  %v141 = vrsqrt.pop %v131
  %v142 = vrsqrt.pop %v132
  %v143 = vrsqrt.pop %v133
  %v144 = vrsqrt.pop %v134
  %v145 = vrsqrt.pop %v135
  %v146 = vmul.f32 %v66, %v136
  %v147 = vmul.f32 %v67, %v137
  %v148 = vmul.f32 %v68, %v138
  %v149 = vmul.f32 %v69, %v139
  %v150 = vmul.f32 %v70, %v140
  %v151 = vmul.f32 %v71, %v141
  %v152 = vmul.f32 %v72, %v142
  %v153 = vmul.f32 %v73, %v143
  %v154 = vmul.f32 %v74, %v144
  %v155 = vmul.f32 %v75, %v145
  %v156 = vld [vmem:[%s1] sm:$0x1]
  %v158 = vlaneseq
  %v159 = vshrl.u32 %v158, 7
  %v160 = vsub.s32 0, %v159
  %v161 = vrot.slane %v156, %v160
  %v163 = vmul.f32 %v146, %v161
  %v164 = vmul.f32 %v147, %v161
  %v165 = vmul.f32 %v148, %v161
  %v166 = vmul.f32 %v149, %v161
  %v167 = vmul.f32 %v150, %v161
  %v168 = vmul.f32 %v151, %v161
  %v169 = vmul.f32 %v152, %v161
  %v170 = vmul.f32 %v153, %v161
  %v171 = vmul.f32 %v154, %v161
  %v172 = vmul.f32 %v155, %v161
  %v173 = vld [vmem:[%s2] sm:$0x1]
  %v175 = vlaneseq
  %v176 = vshrl.u32 %v175, 7
  %v177 = vsub.s32 0, %v176
  %v178 = vrot.slane %v173, %v177
  %v180 = vadd.f32 %v163, %v178
  %v181 = vadd.f32 %v164, %v178
  %v182 = vadd.f32 %v165, %v178
  %v183 = vadd.f32 %v166, %v178
  %v184 = vadd.f32 %v167, %v178
  %v185 = vadd.f32 %v168, %v178
  %v186 = vadd.f32 %v169, %v178
  %v187 = vadd.f32 %v170, %v178
  %v188 = vadd.f32 %v171, %v178
  %v189 = vadd.f32 %v172, %v178
  %190 = vst.msk [vmem:[%s3] sm:$0xff] %vm24, %v180
  %191 = vst.msk [vmem:[%s3 + $0x8] sm:$0xff] %vm24, %v181
  %192 = vst.msk [vmem:[%s3 + $0x10] sm:$0xff] %vm24, %v182
  %193 = vst.msk [vmem:[%s3 + $0x18] sm:$0xff] %vm24, %v183
  %194 = vst.msk [vmem:[%s3 + $0x20] sm:$0xff] %vm24, %v184
  %195 = vst.msk [vmem:[%s3 + $0x28] sm:$0xff] %vm24, %v185
  %196 = vst.msk [vmem:[%s3 + $0x30] sm:$0xff] %vm24, %v186
  %197 = vst.msk [vmem:[%s3 + $0x38] sm:$0xff] %vm24, %v187
  %198 = vst.msk [vmem:[%s3 + $0x40] sm:$0xff] %vm24, %v188
  %199 = vst.msk [vmem:[%s3 + $0x48] sm:$0xff] %vm24, %v189
  // Predicated region
  $region14: #{forward.35} parent=0 // pred_check
    _
  $region15: #{forward.35} parent=0 // pred_check_branch
    %201 = sbr.rel (0) target = $region17
  $region16: #{forward.35} parent=0 // pred_region
    _
  $region17: #{forward.35} parent=0 // pred_fallthru
    _
  // Predicated region
  $region18: #{forward.35} parent=0 // pred_check
    _
  $region19: #{forward.35} parent=0 // pred_check_branch
    %203 = sbr.rel (0) target = $region21
  $region20: #{forward.35} parent=0 // pred_region
    _
  $region21: #{forward.35} parent=0 // pred_fallthru
    _

// kernel: forward.36
$region0: #{forward.36}
  #allocation0 [shape = 'u32[]', space=smem, size = 0x4, offset = 0x4, fixed_abs, tag = 'smem constant byte address 0x4 - core index']
  #allocation1 [shape = 'u32[144,128]{1,0:T(1,128)}', space=vmem, size = 0x12000, scoped, tag = 'internal scratch']
  %s0 = inlined_call_operand.vmem [shape: f32[80,64], index: 0, kind: input, shape index: {}]
  %s1 = inlined_call_operand.vmem [shape: f32[1,64], index: 1, kind: input, shape index: {}]
  %s2 = inlined_call_operand.vmem [shape: f32[1,64], index: 2, kind: input, shape index: {}]
  %s3 = inlined_call_operand.vmem [shape: bf16[80,64], index: 3, kind: output, shape index: {}]
  %s4 = sld [smem:[#allocation0]]
  $region22: #{forward.36} parent=0
    _
  %s6 = ssub.s32 1, %s4
  %s7 = scalar_select 0, %s6, %s4
  // Predicated region
  $region2: #{forward.36} parent=0 // pred_check
    _
  $region3: #{forward.36} parent=0 // pred_check_branch
    %9 = sbr.rel (0) target = $region5
  $region4: #{forward.36} parent=0 // pred_region
    _
  $region5: #{forward.36} parent=0 // pred_fallthru
    _
  // Predicated region
  $region6: #{forward.36} parent=0 // pred_check
    _
  $region7: #{forward.36} parent=0 // pred_check_branch
    %11 = sbr.rel (0) target = $region9
  $region8: #{forward.36} parent=0 // pred_region
    _
  $region9: #{forward.36} parent=0 // pred_fallthru
    _
  // Predicated region
  $region10: #{forward.36} parent=0 // pred_check
    _
  $region11: #{forward.36} parent=0 // pred_check_branch
    %13 = sbr.rel (0) target = $region13
  $region12: #{forward.36} parent=0 // pred_region
    _
  $region13: #{forward.36} parent=0 // pred_fallthru
    _
  %v14 = vld [vmem:[%s0] sm:$0xff]
  %v15 = vld [vmem:[%s0 + $0x8] sm:$0xff]
  %v16 = vld [vmem:[%s0 + $0x10] sm:$0xff]
  %v17 = vld [vmem:[%s0 + $0x18] sm:$0xff]
  %v18 = vld [vmem:[%s0 + $0x20] sm:$0xff]
  %v19 = vld [vmem:[%s0 + $0x28] sm:$0xff]
  %v20 = vld [vmem:[%s0 + $0x30] sm:$0xff]
  %v21 = vld [vmem:[%s0 + $0x38] sm:$0xff]
  %v22 = vld [vmem:[%s0 + $0x40] sm:$0xff]
  %v23 = vld [vmem:[%s0 + $0x48] sm:$0xff]
  %vm24 = vcmask 523264
  %v25 = vsel %vm24, %v14, 0.0
  %26 = vadd.xlane.f32.xlu0 %v25
  %v27 = vpop.xlane.xlu0 %26
  %v28 = vsel %vm24, %v15, 0.0
  %29 = vadd.xlane.f32.xlu0 %v28
  %v30 = vpop.xlane.xlu0 %29
  %v31 = vsel %vm24, %v16, 0.0
  %32 = vadd.xlane.f32.xlu0 %v31
  %v33 = vpop.xlane.xlu0 %32
  %v34 = vsel %vm24, %v17, 0.0
  %35 = vadd.xlane.f32.xlu0 %v34
  %v36 = vpop.xlane.xlu0 %35
  %v37 = vsel %vm24, %v18, 0.0
  %38 = vadd.xlane.f32.xlu0 %v37
  %v39 = vpop.xlane.xlu0 %38
  %v40 = vsel %vm24, %v19, 0.0
  %41 = vadd.xlane.f32.xlu0 %v40
  %v42 = vpop.xlane.xlu0 %41
  %v43 = vsel %vm24, %v20, 0.0
  %44 = vadd.xlane.f32.xlu0 %v43
  %v45 = vpop.xlane.xlu0 %44
  %v46 = vsel %vm24, %v21, 0.0
  %47 = vadd.xlane.f32.xlu0 %v46
  %v48 = vpop.xlane.xlu0 %47
  %v49 = vsel %vm24, %v22, 0.0
  %50 = vadd.xlane.f32.xlu0 %v49
  %v51 = vpop.xlane.xlu0 %50
  %v52 = vsel %vm24, %v23, 0.0
  %53 = vadd.xlane.f32.xlu0 %v52
  %v54 = vpop.xlane.xlu0 %53
  %v55 = vrcp.pop 64.0
  %v56 = vmul.f32 %v27, %v55
  %v57 = vmul.f32 %v30, %v55
  %v58 = vmul.f32 %v33, %v55
  %v59 = vmul.f32 %v36, %v55
  %v60 = vmul.f32 %v39, %v55
  %v61 = vmul.f32 %v42, %v55
  %v62 = vmul.f32 %v45, %v55
  %v63 = vmul.f32 %v48, %v55
  %v64 = vmul.f32 %v51, %v55
  %v65 = vmul.f32 %v54, %v55
  %v66 = vsub.f32 %v14, %v56
  %v67 = vsub.f32 %v15, %v57
  %v68 = vsub.f32 %v16, %v58
  %v69 = vsub.f32 %v17, %v59
  %v70 = vsub.f32 %v18, %v60
  %v71 = vsub.f32 %v19, %v61
  %v72 = vsub.f32 %v20, %v62
  %v73 = vsub.f32 %v21, %v63
  %v74 = vsub.f32 %v22, %v64
  %v75 = vsub.f32 %v23, %v65
  %v76 = vmul.f32 %v66, %v66
  %v77 = vmul.f32 %v67, %v67
  %v78 = vmul.f32 %v68, %v68
  %v79 = vmul.f32 %v69, %v69
  %v80 = vmul.f32 %v70, %v70
  %v81 = vmul.f32 %v71, %v71
  %v82 = vmul.f32 %v72, %v72
  %v83 = vmul.f32 %v73, %v73
  %v84 = vmul.f32 %v74, %v74
  %v85 = vmul.f32 %v75, %v75
  %v86 = vsel %vm24, %v76, 0.0
  %87 = vadd.xlane.f32.xlu0 %v86
  %v88 = vpop.xlane.xlu0 %87
  %v89 = vsel %vm24, %v77, 0.0
  %90 = vadd.xlane.f32.xlu0 %v89
  %v91 = vpop.xlane.xlu0 %90
  %v92 = vsel %vm24, %v78, 0.0
  %93 = vadd.xlane.f32.xlu0 %v92
  %v94 = vpop.xlane.xlu0 %93
  %v95 = vsel %vm24, %v79, 0.0
  %96 = vadd.xlane.f32.xlu0 %v95
  %v97 = vpop.xlane.xlu0 %96
  %v98 = vsel %vm24, %v80, 0.0
  %99 = vadd.xlane.f32.xlu0 %v98
  %v100 = vpop.xlane.xlu0 %99
  %v101 = vsel %vm24, %v81, 0.0
  %102 = vadd.xlane.f32.xlu0 %v101
  %v103 = vpop.xlane.xlu0 %102
  %v104 = vsel %vm24, %v82, 0.0
  %105 = vadd.xlane.f32.xlu0 %v104
  %v106 = vpop.xlane.xlu0 %105
  %v107 = vsel %vm24, %v83, 0.0
  %108 = vadd.xlane.f32.xlu0 %v107
  %v109 = vpop.xlane.xlu0 %108
  %v110 = vsel %vm24, %v84, 0.0
  %111 = vadd.xlane.f32.xlu0 %v110
  %v112 = vpop.xlane.xlu0 %111
  %v113 = vsel %vm24, %v85, 0.0
  %114 = vadd.xlane.f32.xlu0 %v113
  %v115 = vpop.xlane.xlu0 %114
  %v116 = vmul.f32 %v88, %v55
  %v117 = vmul.f32 %v91, %v55
  %v118 = vmul.f32 %v94, %v55
  %v119 = vmul.f32 %v97, %v55
  %v120 = vmul.f32 %v100, %v55
  %v121 = vmul.f32 %v103, %v55
  %v122 = vmul.f32 %v106, %v55
  %v123 = vmul.f32 %v109, %v55
  %v124 = vmul.f32 %v112, %v55
  %v125 = vmul.f32 %v115, %v55
  %v126 = vadd.f32 %v116, 1e-05
  %v127 = vadd.f32 %v117, 1e-05
  %v128 = vadd.f32 %v118, 1e-05
  %v129 = vadd.f32 %v119, 1e-05
  %v130 = vadd.f32 %v120, 1e-05
  %v131 = vadd.f32 %v121, 1e-05
  %v132 = vadd.f32 %v122, 1e-05
  %v133 = vadd.f32 %v123, 1e-05
  %v134 = vadd.f32 %v124, 1e-05
  %v135 = vadd.f32 %v125, 1e-05
  %v136 = vrsqrt.pop %v126
  %v137 = vrsqrt.pop %v127
  %v138 = vrsqrt.pop %v128
  %v139 = vrsqrt.pop %v129
  %v140 = vrsqrt.pop %v130
  %v141 = vrsqrt.pop %v131
  %v142 = vrsqrt.pop %v132
  %v143 = vrsqrt.pop %v133
  %v144 = vrsqrt.pop %v134
  %v145 = vrsqrt.pop %v135
  %v146 = vmul.f32 %v66, %v136
  %v147 = vmul.f32 %v67, %v137
  %v148 = vmul.f32 %v68, %v138
  %v149 = vmul.f32 %v69, %v139
  %v150 = vmul.f32 %v70, %v140
  %v151 = vmul.f32 %v71, %v141
  %v152 = vmul.f32 %v72, %v142
  %v153 = vmul.f32 %v73, %v143
  %v154 = vmul.f32 %v74, %v144
  %v155 = vmul.f32 %v75, %v145
  %v156 = vld [vmem:[%s1] sm:$0x1]
  %v158 = vlaneseq
  %v159 = vshrl.u32 %v158, 7
  %v160 = vsub.s32 0, %v159
  %v161 = vrot.slane %v156, %v160
  %v163 = vmul.f32 %v146, %v161
  %v164 = vmul.f32 %v147, %v161
  %v165 = vmul.f32 %v148, %v161
  %v166 = vmul.f32 %v149, %v161
  %v167 = vmul.f32 %v150, %v161
  %v168 = vmul.f32 %v151, %v161
  %v169 = vmul.f32 %v152, %v161
  %v170 = vmul.f32 %v153, %v161
  %v171 = vmul.f32 %v154, %v161
  %v172 = vmul.f32 %v155, %v161
  %v173 = vld [vmem:[%s2] sm:$0x1]
  %v175 = vlaneseq
  %v176 = vshrl.u32 %v175, 7
  %v177 = vsub.s32 0, %v176
  %v178 = vrot.slane %v173, %v177
  %v180 = vadd.f32 %v163, %v178
  %v181 = vadd.f32 %v164, %v178
  %v182 = vadd.f32 %v165, %v178
  %v183 = vadd.f32 %v166, %v178
  %v184 = vadd.f32 %v167, %v178
  %v185 = vadd.f32 %v168, %v178
  %v186 = vadd.f32 %v169, %v178
  %v187 = vadd.f32 %v170, %v178
  %v188 = vadd.f32 %v171, %v178
  %v189 = vadd.f32 %v172, %v178
  %v190 = vpack.c.bf16 %v181, %v180
  %v191 = vpack.c.bf16 %v183, %v182
  %v192 = vpack.c.bf16 %v185, %v184
  %v193 = vpack.c.bf16 %v187, %v186
  %v194 = vpack.c.bf16 %v189, %v188
  %v200 = vunpack.c.l.b16 %v190
  %v201 = vunpack.c.h.b16 %v190
  %v202 = vunpack.c.l.b16 %v191
  %v203 = vunpack.c.h.b16 %v191
  %v204 = vunpack.c.l.b16 %v192
  %v205 = vunpack.c.h.b16 %v192
  %v206 = vunpack.c.l.b16 %v193
  %v207 = vunpack.c.h.b16 %v193
  %v208 = vunpack.c.l.b16 %v194
  %v209 = vunpack.c.h.b16 %v194
  %v210 = vpack.c.b16 %v200, %v200
  %v211 = vpack.c.b16 %v201, %v201
  %v212 = vpack.c.b16 %v202, %v202
  %v213 = vpack.c.b16 %v203, %v203
  %v214 = vpack.c.b16 %v204, %v204
  %v215 = vpack.c.b16 %v205, %v205
  %v216 = vpack.c.b16 %v206, %v206
  %v217 = vpack.c.b16 %v207, %v207
  %v218 = vpack.c.b16 %v208, %v208
  %v219 = vpack.c.b16 %v209, %v209
  %vm230 = vcmask 519168
  %231 = vst.msk [vmem:[%s3] sm:$0xf] %vm230, %v210
  %232 = vst.msk [vmem:[%s3 + $0x4] sm:$0xf] %vm230, %v211
  %233 = vst.msk [vmem:[%s3 + $0x8] sm:$0xf] %vm230, %v212
  %234 = vst.msk [vmem:[%s3 + $0xc] sm:$0xf] %vm230, %v213
  %235 = vst.msk [vmem:[%s3 + $0x10] sm:$0xf] %vm230, %v214
  %236 = vst.msk [vmem:[%s3 + $0x14] sm:$0xf] %vm230, %v215
  %237 = vst.msk [vmem:[%s3 + $0x18] sm:$0xf] %vm230, %v216
  %238 = vst.msk [vmem:[%s3 + $0x1c] sm:$0xf] %vm230, %v217
  %239 = vst.msk [vmem:[%s3 + $0x20] sm:$0xf] %vm230, %v218
  %240 = vst.msk [vmem:[%s3 + $0x24] sm:$0xf] %vm230, %v219
  // Predicated region
  $region14: #{forward.36} parent=0 // pred_check
    _
  $region15: #{forward.36} parent=0 // pred_check_branch
    %242 = sbr.rel (0) target = $region17
  $region16: #{forward.36} parent=0 // pred_region
    _
  $region17: #{forward.36} parent=0 // pred_fallthru
    _
  // Predicated region
  $region18: #{forward.36} parent=0 // pred_check
    _
  $region19: #{forward.36} parent=0 // pred_check_branch
    %244 = sbr.rel (0) target = $region21
  $region20: #{forward.36} parent=0 // pred_region
    _
  $region21: #{forward.36} parent=0 // pred_fallthru
    _

// kernel: forward.37
$region0: #{forward.37}
  #allocation0 [shape = 'u32[]', space=smem, size = 0x4, offset = 0x4, fixed_abs, tag = 'smem constant byte address 0x4 - core index']
  #allocation1 [shape = 'u32[144,128]{1,0:T(1,128)}', space=vmem, size = 0x12000, scoped, tag = 'internal scratch']
  #allocation2 [shape = 'f32[80,192]{1,0:T(8,128)}', space=vmem, size = 0x14000, scoped, tag = 'scratch operand']
  %s0 = inlined_call_operand.vmem [shape: bf16[80,64], index: 0, kind: input, shape index: {}]
  %s1 = inlined_call_operand.vmem [shape: bf16[64,192], index: 1, kind: input, shape index: {}]
  %s2 = inlined_call_operand.vmem [shape: f32[1,192], index: 2, kind: input, shape index: {}]
  %s3 = inlined_call_operand.vmem [shape: bf16[80,192], index: 3, kind: output, shape index: {}]
  %s4 = sld [smem:[#allocation0]]
  $region30: #{forward.37} parent=0
    _
  %s6 = ssub.s32 1, %s4
  %s7 = scalar_select 0, %s6, %s4
  // Predicated region
  $region2: #{forward.37} parent=0 // pred_check
    _
  $region3: #{forward.37} parent=0 // pred_check_branch
    %9 = sbr.rel (0) target = $region5
  $region4: #{forward.37} parent=0 // pred_region
    _
  $region5: #{forward.37} parent=0 // pred_fallthru
    _
  // Predicated region
  $region6: #{forward.37} parent=0 // pred_check
    _
  $region7: #{forward.37} parent=0 // pred_check_branch
    %11 = sbr.rel (0) target = $region9
  $region8: #{forward.37} parent=0 // pred_region
    _
  $region9: #{forward.37} parent=0 // pred_fallthru
    _
  // Predicated region
  $region10: #{forward.37} parent=0 // pred_check
    _
  $region11: #{forward.37} parent=0 // pred_check_branch
    %13 = sbr.rel (0) target = $region13
  $region12: #{forward.37} parent=0 // pred_region
    _
  $region13: #{forward.37} parent=0 // pred_fallthru
    _
  %p15 = scmp.eq.s32.totalorder 0, 0
  // Predicated region
  $region14: #{forward.37} parent=0 // pred_check
    %p16 = pneg %p15
  $region15: #{forward.37} parent=0 // pred_check_branch
    %18 = sbr.rel (%p16) target = $region17
  $region16: #{forward.37} parent=0 // pred_region
    %19 = vst [vmem:[#allocation2] sm:$0xff] 0.0
    %vm20 = vcmask 523264
    %21 = vst.msk [vmem:[#allocation2 + $0x8] sm:$0xff] %vm20, 0.0
    %22 = vst [vmem:[#allocation2 + $0x10] sm:$0xff] 0.0
    %23 = vst.msk [vmem:[#allocation2 + $0x18] sm:$0xff] %vm20, 0.0
    %24 = vst [vmem:[#allocation2 + $0x20] sm:$0xff] 0.0
    %25 = vst.msk [vmem:[#allocation2 + $0x28] sm:$0xff] %vm20, 0.0
    %26 = vst [vmem:[#allocation2 + $0x30] sm:$0xff] 0.0
    %27 = vst.msk [vmem:[#allocation2 + $0x38] sm:$0xff] %vm20, 0.0
    %28 = vst [vmem:[#allocation2 + $0x40] sm:$0xff] 0.0
    %29 = vst.msk [vmem:[#allocation2 + $0x48] sm:$0xff] %vm20, 0.0
    %30 = vst [vmem:[#allocation2 + $0x50] sm:$0xff] 0.0
    %31 = vst.msk [vmem:[#allocation2 + $0x58] sm:$0xff] %vm20, 0.0
    %32 = vst [vmem:[#allocation2 + $0x60] sm:$0xff] 0.0
    %33 = vst.msk [vmem:[#allocation2 + $0x68] sm:$0xff] %vm20, 0.0
    %34 = vst [vmem:[#allocation2 + $0x70] sm:$0xff] 0.0
    %35 = vst.msk [vmem:[#allocation2 + $0x78] sm:$0xff] %vm20, 0.0
    %36 = vst [vmem:[#allocation2 + $0x80] sm:$0xff] 0.0
    %37 = vst.msk [vmem:[#allocation2 + $0x88] sm:$0xff] %vm20, 0.0
    %38 = vst [vmem:[#allocation2 + $0x90] sm:$0xff] 0.0
    %39 = vst.msk [vmem:[#allocation2 + $0x98] sm:$0xff] %vm20, 0.0
  $region17: #{forward.37} parent=0 // pred_fallthru
    _
  %v40 = vld [vmem:[#allocation2] sm:$0xff]
  %v41 = vld [vmem:[#allocation2 + $0x8] sm:$0xff]
  %v42 = vld [vmem:[#allocation2 + $0x10] sm:$0xff]
  %v43 = vld [vmem:[#allocation2 + $0x18] sm:$0xff]
  %v44 = vld [vmem:[#allocation2 + $0x20] sm:$0xff]
  %v45 = vld [vmem:[#allocation2 + $0x28] sm:$0xff]
  %v46 = vld [vmem:[#allocation2 + $0x30] sm:$0xff]
  %v47 = vld [vmem:[#allocation2 + $0x38] sm:$0xff]
  %v48 = vld [vmem:[#allocation2 + $0x40] sm:$0xff]
  %v49 = vld [vmem:[#allocation2 + $0x48] sm:$0xff]
  %v50 = vld [vmem:[#allocation2 + $0x50] sm:$0xff]
  %v51 = vld [vmem:[#allocation2 + $0x58] sm:$0xff]
  %v52 = vld [vmem:[#allocation2 + $0x60] sm:$0xff]
  %v53 = vld [vmem:[#allocation2 + $0x68] sm:$0xff]
  %v54 = vld [vmem:[#allocation2 + $0x70] sm:$0xff]
  %v55 = vld [vmem:[#allocation2 + $0x78] sm:$0xff]
  %v56 = vld [vmem:[#allocation2 + $0x80] sm:$0xff]
  %v57 = vld [vmem:[#allocation2 + $0x88] sm:$0xff]
  %v58 = vld [vmem:[#allocation2 + $0x90] sm:$0xff]
  %v59 = vld [vmem:[#allocation2 + $0x98] sm:$0xff]
  %v60 = vld [vmem:[%s0] sm:$0xf]
  %v61 = vld [vmem:[%s0 + $0x4] sm:$0xf]
  %v62 = vld [vmem:[%s0 + $0x8] sm:$0xf]
  %v63 = vld [vmem:[%s0 + $0xc] sm:$0xf]
  %v64 = vld [vmem:[%s0 + $0x10] sm:$0xf]
  %v65 = vld [vmem:[%s0 + $0x14] sm:$0xf]
  %v66 = vld [vmem:[%s0 + $0x18] sm:$0xf]
  %v67 = vld [vmem:[%s0 + $0x1c] sm:$0xf]
  %v68 = vld [vmem:[%s0 + $0x20] sm:$0xf]
  %v69 = vld [vmem:[%s0 + $0x24] sm:$0xf]
  %v70 = vld [vmem:[%s1] sm:$0xff]
  %v71 = vld [vmem:[%s1 + $0x8] sm:$0xff]
  %v72 = vld [vmem:[%s1 + $0x10] sm:$0xff]
  %v73 = vld [vmem:[%s1 + $0x18] sm:$0xff]
  %v74 = vld [vmem:[%s1 + $0x20] sm:$0xff]
  %v75 = vld [vmem:[%s1 + $0x28] sm:$0xff]
  %v76 = vld [vmem:[%s1 + $0x30] sm:$0xff]
  %v77 = vld [vmem:[%s1 + $0x38] sm:$0xff]
  %v88 = vunpack.c.l.b16 %v60
  %v89 = vunpack.c.l.b16 %v61
  %v90 = vunpack.c.l.b16 %v62
  %v91 = vunpack.c.l.b16 %v63
  %v92 = vunpack.c.l.b16 %v64
  %v93 = vunpack.c.l.b16 %v65
  %v94 = vunpack.c.l.b16 %v66
  %v95 = vunpack.c.l.b16 %v67
  %v96 = vunpack.c.l.b16 %v68
  %v97 = vunpack.c.l.b16 %v69
  %v98 = vpack.c.b16 %v89, %v88
  %v99 = vpack.c.b16 %v91, %v90
  %v100 = vpack.c.b16 %v93, %v92
  %v101 = vpack.c.b16 %v95, %v94
  %v102 = vpack.c.b16 %v97, %v96
  %v111 = vunpack.c.l.b16 %v70
  %v112 = vunpack.c.h.b16 %v70
  %v113 = vunpack.c.l.b16 %v71
  %v114 = vunpack.c.h.b16 %v71
  %v115 = vunpack.c.l.b16 %v72
  %v116 = vunpack.c.h.b16 %v72
  %v117 = vunpack.c.l.b16 %v73
  %v118 = vunpack.c.h.b16 %v73
  %v119 = vunpack.c.l.b16 %v74
  %v120 = vunpack.c.h.b16 %v74
  %v121 = vunpack.c.l.b16 %v75
  %v122 = vunpack.c.h.b16 %v75
  %v123 = vunpack.c.l.b16 %v76
  %v124 = vunpack.c.h.b16 %v76
  %v125 = vunpack.c.l.b16 %v77
  %v126 = vunpack.c.h.b16 %v77
  %v127 = vpack.c.b16 %v113, %v111
  %v128 = vpack.c.b16 %v114, %v112
  %v129 = vpack.c.b16 %v117, %v115
  %v130 = vpack.c.b16 %v118, %v116
  %v131 = vpack.c.b16 %v121, %v119
  %v132 = vpack.c.b16 %v122, %v120
  %v133 = vpack.c.b16 %v125, %v123
  %v134 = vpack.c.b16 %v126, %v124
  %vm143 = vcmask 523264
  %v145 = vsel %vm143, %v98, 0
  %v148 = vsel %vm143, %v99, 0
  %v151 = vsel %vm143, %v100, 0
  %v154 = vsel %vm143, %v101, 0
  %v157 = vsel %vm143, %v102, 0
  %159 = vmatprep.subr.bf16.mxu0 %v128
  %160 = vmatpush1.bf16.msra.mxu0 %v127
  %161 = vmatprep.subr.bf16.mxu0 %v130
  %162 = vmatpush1.bf16.msra.mxu0 %v129
  %163 = vmatprep.subr.bf16.mxu0 %v132
  %164 = vmatpush1.bf16.msra.mxu0 %v131
  %165 = vmatprep.subr.bf16.mxu0 %v134
  %166 = vmatpush1.bf16.msra.mxu0 %v133
  %167 = vmatprep.subr.bf16.mxu0 0
  %168 = vmatpush1.bf16.msra.mxu0 0
  %169 = vmatprep.subr.bf16.mxu0 0
  %170 = vmatpush1.bf16.msra.mxu0 0
  %171 = vmatprep.subr.bf16.mxu0 0
  %172 = vmatpush1.bf16.msra.mxu0 0
  %173 = vmatprep.subr.bf16.mxu0 0
  %174 = vmatpush1.bf16.msra.mxu0 0
  %175 = vmatprep.subr.bf16.mxu0 0
  %176 = vmatpush1.bf16.msra.mxu0 0
  %177 = vmatprep.subr.bf16.mxu0 0
  %178 = vmatpush1.bf16.msra.mxu0 0
  %179 = vmatprep.subr.bf16.mxu0 0
  %180 = vmatpush1.bf16.msra.mxu0 0
  %181 = vmatprep.subr.bf16.mxu0 0
  %182 = vmatpush1.bf16.msra.mxu0 0
  %183 = vmatprep.subr.bf16.mxu0 0
  %184 = vmatpush1.bf16.msra.mxu0 0
  %185 = vmatprep.subr.bf16.mxu0 0
  %186 = vmatpush1.bf16.msra.mxu0 0
  %187 = vmatprep.subr.bf16.mxu0 0
  %188 = vmatpush1.bf16.msra.mxu0 0
  %189 = vmatprep.subr.bf16.mxu0 0
  %190 = vmatpush1.bf16.msra.mxu0 0
  %191 = vmatprep.mubr.bf16.mxu0 0
  %192 = vmatmul.mubr.bf16.gmra.mrb[0].mxu0 %v145
  %v193 = vpop.f32.mrb[0].mxu0
  %v194 = vadd.f32 0.0, %v193
  %v195 = vpop.f32.mrb[0].mxu0
  %v196 = vadd.f32 0.0, %v195
  %v197 = vpop.f32.mrb[0].mxu0
  %v198 = vadd.f32 0.0, %v197
  %v199 = vpop.f32.mrb[0].mxu0
  %v200 = vadd.f32 0.0, %v199
  %201 = vmatprep.mubr.bf16.mxu0 0
  %202 = vmatmul.mubr.bf16.gmra.mrb[0].mxu0 %v148
  %v203 = vpop.f32.mrb[0].mxu0
  %v204 = vadd.f32 0.0, %v203
  %v205 = vpop.f32.mrb[0].mxu0
  %v206 = vadd.f32 0.0, %v205
  %v207 = vpop.f32.mrb[0].mxu0
  %v208 = vadd.f32 0.0, %v207
  %v209 = vpop.f32.mrb[0].mxu0
  %v210 = vadd.f32 0.0, %v209
  %211 = vmatprep.mubr.bf16.mxu0 0
  %212 = vmatmul.mubr.bf16.gmra.mrb[0].mxu0 %v151
  %v213 = vpop.f32.mrb[0].mxu0
  %v214 = vadd.f32 0.0, %v213
  %v215 = vpop.f32.mrb[0].mxu0
  %v216 = vadd.f32 0.0, %v215
  %v217 = vpop.f32.mrb[0].mxu0
  %v218 = vadd.f32 0.0, %v217
  %v219 = vpop.f32.mrb[0].mxu0
  %v220 = vadd.f32 0.0, %v219
  %221 = vmatprep.mubr.bf16.mxu0 0
  %222 = vmatmul.mubr.bf16.gmra.mrb[0].mxu0 %v154
  %v223 = vpop.f32.mrb[0].mxu0
  %v224 = vadd.f32 0.0, %v223
  %v225 = vpop.f32.mrb[0].mxu0
  %v226 = vadd.f32 0.0, %v225
  %v227 = vpop.f32.mrb[0].mxu0
  %v228 = vadd.f32 0.0, %v227
  %v229 = vpop.f32.mrb[0].mxu0
  %v230 = vadd.f32 0.0, %v229
  %231 = vmatprep.mubr.bf16.mxu0 0
  %232 = vmatmul.mubr.bf16.gmra.mrb[0].mxu0 %v157
  %v233 = vpop.f32.mrb[0].mxu0
  %v234 = vadd.f32 0.0, %v233
  %v235 = vpop.f32.mrb[0].mxu0
  %v236 = vadd.f32 0.0, %v235
  %v237 = vpop.f32.mrb[0].mxu0
  %v238 = vadd.f32 0.0, %v237
  %v239 = vpop.f32.mrb[0].mxu0
  %v240 = vadd.f32 0.0, %v239
  %241 = vdwg.mxu0
  %v242 = vadd.f32 %v40, %v194
  %v243 = vadd.f32 %v41, %v196
  %v244 = vadd.f32 %v42, %v198
  %v245 = vadd.f32 %v43, %v200
  %v246 = vadd.f32 %v44, %v204
  %v247 = vadd.f32 %v45, %v206
  %v248 = vadd.f32 %v46, %v208
  %v249 = vadd.f32 %v47, %v210
  %v250 = vadd.f32 %v48, %v214
  %v251 = vadd.f32 %v49, %v216
  %v252 = vadd.f32 %v50, %v218
  %v253 = vadd.f32 %v51, %v220
  %v254 = vadd.f32 %v52, %v224
  %v255 = vadd.f32 %v53, %v226
  %v256 = vadd.f32 %v54, %v228
  %v257 = vadd.f32 %v55, %v230
  %v258 = vadd.f32 %v56, %v234
  %v259 = vadd.f32 %v57, %v236
  %v260 = vadd.f32 %v58, %v238
  %v261 = vadd.f32 %v59, %v240
  %262 = vst [vmem:[#allocation2] sm:$0xff] %v242
  %263 = vst.msk [vmem:[#allocation2 + $0x8] sm:$0xff] %vm143, %v243
  %264 = vst [vmem:[#allocation2 + $0x10] sm:$0xff] %v244
  %265 = vst.msk [vmem:[#allocation2 + $0x18] sm:$0xff] %vm143, %v245
  %266 = vst [vmem:[#allocation2 + $0x20] sm:$0xff] %v246
  %267 = vst.msk [vmem:[#allocation2 + $0x28] sm:$0xff] %vm143, %v247
  %268 = vst [vmem:[#allocation2 + $0x30] sm:$0xff] %v248
  %269 = vst.msk [vmem:[#allocation2 + $0x38] sm:$0xff] %vm143, %v249
  %270 = vst [vmem:[#allocation2 + $0x40] sm:$0xff] %v250
  %271 = vst.msk [vmem:[#allocation2 + $0x48] sm:$0xff] %vm143, %v251
  %272 = vst [vmem:[#allocation2 + $0x50] sm:$0xff] %v252
  %273 = vst.msk [vmem:[#allocation2 + $0x58] sm:$0xff] %vm143, %v253
  %274 = vst [vmem:[#allocation2 + $0x60] sm:$0xff] %v254
  %275 = vst.msk [vmem:[#allocation2 + $0x68] sm:$0xff] %vm143, %v255
  %276 = vst [vmem:[#allocation2 + $0x70] sm:$0xff] %v256
  %277 = vst.msk [vmem:[#allocation2 + $0x78] sm:$0xff] %vm143, %v257
  %278 = vst [vmem:[#allocation2 + $0x80] sm:$0xff] %v258
  %279 = vst.msk [vmem:[#allocation2 + $0x88] sm:$0xff] %vm143, %v259
  %280 = vst [vmem:[#allocation2 + $0x90] sm:$0xff] %v260
  %281 = vst.msk [vmem:[#allocation2 + $0x98] sm:$0xff] %vm143, %v261
  // Predicated region
  $region18: #{forward.37} parent=0 // pred_check
    %p282 = pneg %p15
  $region19: #{forward.37} parent=0 // pred_check_branch
    %284 = sbr.rel (%p282) target = $region21
  $region20: #{forward.37} parent=0 // pred_region
    %v285 = vld [vmem:[#allocation2] sm:$0xff]
    %v286 = vld [vmem:[#allocation2 + $0x8] sm:$0xff]
    %v287 = vld [vmem:[#allocation2 + $0x10] sm:$0xff]
    %v288 = vld [vmem:[#allocation2 + $0x18] sm:$0xff]
    %v289 = vld [vmem:[#allocation2 + $0x20] sm:$0xff]
    %v290 = vld [vmem:[#allocation2 + $0x28] sm:$0xff]
    %v291 = vld [vmem:[#allocation2 + $0x30] sm:$0xff]
    %v292 = vld [vmem:[#allocation2 + $0x38] sm:$0xff]
    %v293 = vld [vmem:[#allocation2 + $0x40] sm:$0xff]
    %v294 = vld [vmem:[#allocation2 + $0x48] sm:$0xff]
    %v295 = vld [vmem:[#allocation2 + $0x50] sm:$0xff]
    %v296 = vld [vmem:[#allocation2 + $0x58] sm:$0xff]
    %v297 = vld [vmem:[#allocation2 + $0x60] sm:$0xff]
    %v298 = vld [vmem:[#allocation2 + $0x68] sm:$0xff]
    %v299 = vld [vmem:[#allocation2 + $0x70] sm:$0xff]
    %v300 = vld [vmem:[#allocation2 + $0x78] sm:$0xff]
    %v301 = vld [vmem:[#allocation2 + $0x80] sm:$0xff]
    %v302 = vld [vmem:[#allocation2 + $0x88] sm:$0xff]
    %v303 = vld [vmem:[#allocation2 + $0x90] sm:$0xff]
    %v304 = vld [vmem:[#allocation2 + $0x98] sm:$0xff]
    %v305 = vld [vmem:[%s2] sm:$0x3]
    %v307 = vlaneseq
    %v308 = vshrl.u32 %v307, 7
    %v309 = vsub.s32 0, %v308
    %v310 = vrot.slane %v305, %v309
    %v311 = vlaneseq
    %v312 = vshrl.u32 %v311, 7
    %v313 = vsub.s32 1, %v312
    %v314 = vrot.slane %v305, %v313
    %v317 = vadd.f32 %v285, %v310
    %v318 = vadd.f32 %v286, %v314
    %v319 = vadd.f32 %v287, %v310
    %v320 = vadd.f32 %v288, %v314
    %v321 = vadd.f32 %v289, %v310
    %v322 = vadd.f32 %v290, %v314
    %v323 = vadd.f32 %v291, %v310
    %v324 = vadd.f32 %v292, %v314
    %v325 = vadd.f32 %v293, %v310
    %v326 = vadd.f32 %v294, %v314
    %v327 = vadd.f32 %v295, %v310
    %v328 = vadd.f32 %v296, %v314
    %v329 = vadd.f32 %v297, %v310
    %v330 = vadd.f32 %v298, %v314
    %v331 = vadd.f32 %v299, %v310
    %v332 = vadd.f32 %v300, %v314
    %v333 = vadd.f32 %v301, %v310
    %v334 = vadd.f32 %v302, %v314
    %v335 = vadd.f32 %v303, %v310
    %v336 = vadd.f32 %v304, %v314
    %v337 = vpack.c.bf16 %v319, %v317
    %v338 = vpack.c.bf16 %v320, %v318
    %v339 = vpack.c.bf16 %v323, %v321
    %v340 = vpack.c.bf16 %v324, %v322
    %v341 = vpack.c.bf16 %v327, %v325
    %v342 = vpack.c.bf16 %v328, %v326
    %v343 = vpack.c.bf16 %v331, %v329
    %v344 = vpack.c.bf16 %v332, %v330
    %v345 = vpack.c.bf16 %v335, %v333
    %v346 = vpack.c.bf16 %v336, %v334
    %v357 = vunpack.c.l.b16 %v337
    %v358 = vunpack.c.l.b16 %v338
    %v359 = vunpack.c.h.b16 %v337
    %v360 = vunpack.c.h.b16 %v338
    %v361 = vunpack.c.l.b16 %v339
    %v362 = vunpack.c.l.b16 %v340
    %v363 = vunpack.c.h.b16 %v339
    %v364 = vunpack.c.h.b16 %v340
    %v365 = vunpack.c.l.b16 %v341
    %v366 = vunpack.c.l.b16 %v342
    %v367 = vunpack.c.h.b16 %v341
    %v368 = vunpack.c.h.b16 %v342
    %v369 = vunpack.c.l.b16 %v343
    %v370 = vunpack.c.l.b16 %v344
    %v371 = vunpack.c.h.b16 %v343
    %v372 = vunpack.c.h.b16 %v344
    %v373 = vunpack.c.l.b16 %v345
    %v374 = vunpack.c.l.b16 %v346
    %v375 = vunpack.c.h.b16 %v345
    %v376 = vunpack.c.h.b16 %v346
    %v377 = vpack.c.b16 %v358, %v357
    %v378 = vpack.c.b16 %v360, %v359
    %v379 = vpack.c.b16 %v362, %v361
    %v380 = vpack.c.b16 %v364, %v363
    %v381 = vpack.c.b16 %v366, %v365
    %v382 = vpack.c.b16 %v368, %v367
    %v383 = vpack.c.b16 %v370, %v369
    %v384 = vpack.c.b16 %v372, %v371
    %v385 = vpack.c.b16 %v374, %v373
    %v386 = vpack.c.b16 %v376, %v375
    %vm397 = vcmask 1043456
    %vm398 = vcmask 523268
    %vm399 = vmor %vm398, %vm397
    %400 = vst.msk [vmem:[%s3] sm:$0xff] %vm399, %v377
    %401 = vst.msk [vmem:[%s3 + $0x8] sm:$0xff] %vm399, %v378
    %402 = vst.msk [vmem:[%s3 + $0x10] sm:$0xff] %vm399, %v379
    %403 = vst.msk [vmem:[%s3 + $0x18] sm:$0xff] %vm399, %v380
    %404 = vst.msk [vmem:[%s3 + $0x20] sm:$0xff] %vm399, %v381
    %405 = vst.msk [vmem:[%s3 + $0x28] sm:$0xff] %vm399, %v382
    %406 = vst.msk [vmem:[%s3 + $0x30] sm:$0xff] %vm399, %v383
    %407 = vst.msk [vmem:[%s3 + $0x38] sm:$0xff] %vm399, %v384
    %408 = vst.msk [vmem:[%s3 + $0x40] sm:$0xff] %vm399, %v385
    %409 = vst.msk [vmem:[%s3 + $0x48] sm:$0xff] %vm399, %v386
  $region21: #{forward.37} parent=0 // pred_fallthru
    _
  // Predicated region
  $region22: #{forward.37} parent=0 // pred_check
    _
  $region23: #{forward.37} parent=0 // pred_check_branch
    %411 = sbr.rel (0) target = $region25
  $region24: #{forward.37} parent=0 // pred_region
    _
  $region25: #{forward.37} parent=0 // pred_fallthru
    _
  // Predicated region
  $region26: #{forward.37} parent=0 // pred_check
    _
  $region27: #{forward.37} parent=0 // pred_check_branch
    %413 = sbr.rel (0) target = $region29
  $region28: #{forward.37} parent=0 // pred_region
    _
  $region29: #{forward.37} parent=0 // pred_fallthru
    _

// kernel: forward.38
$region0: #{forward.38}
  #allocation0 [shape = 'u32[]', space=smem, size = 0x4, offset = 0x4, fixed_abs, tag = 'smem constant byte address 0x4 - core index']
  #allocation1 [shape = 'u32[144,128]{1,0:T(1,128)}', space=vmem, size = 0x12000, scoped, tag = 'internal scratch']
  #allocation2 [shape = 'f32[40,1]{1,0:T(8,128)}', space=vmem, size = 0x5000, scoped, tag = 'scratch operand']
  #allocation3 [shape = 'f32[40,1]{1,0:T(8,128)}', space=vmem, size = 0x5000, scoped, tag = 'scratch operand']
  #allocation4 [shape = 'f32[40,16]{1,0:T(8,128)}', space=vmem, size = 0x5000, scoped, tag = 'scratch operand']
  %s0 = inlined_call_operand.vmem [shape: bf16[2,4,40,16], index: 0, kind: input, shape index: {}]
  %s1 = inlined_call_operand.vmem [shape: bf16[2,4,40,16], index: 1, kind: input, shape index: {}]
  %s2 = inlined_call_operand.vmem [shape: bf16[2,4,40,16], index: 2, kind: input, shape index: {}]
  %s3 = inlined_call_operand.vmem [shape: bf16[2,4,40,16], index: 3, kind: output, shape index: {}]
  %s4 = sld [smem:[#allocation0]]
  $region53: #{forward.38} parent=0
    _
  %s6 = ssub.s32 1, %s4
  %s7 = scalar_select 0, %s6, %s4
  loop: start=0, step=1, limit=10
  $region2: #{forward.38} parent=0 // loop_pre_header
    _
  $region3: #{forward.38} parent=0 // loop_header
    %s9 = sphi 0, %s13
    %p10 = scmp.ge.s32.totalorder %s9, 10
    %s16 = sphi 0, %s42
    %s17 = sphi 0, %s38
    %s18 = sphi 0, %s34
    %s19 = sphi 0, %s30
    %s20 = sphi 0, %s16
    %s21 = sphi 0, %s17
    %s22 = sphi 0, %s18
    %s23 = sphi 0, %s19
    %s24 = sphi 0, %s20
    %s25 = sphi 0, %s21
    %s26 = sphi 0, %s22
    %s27 = sphi 0, %s23
    %s49 = sphi 0, %s51
    %s52 = sphi 0, %s49
    %s53 = sphi 0, %s52
    %s69 = sphi 0, %s53
    %s79 = sphi 0, %s81
    %s82 = sphi 0, %s79
    %s83 = sphi 0, %s82
    %s99 = sphi 0, %s83
    %s109 = sphi 0, %s111
    %s112 = sphi 0, %s109
    %s113 = sphi 0, %s112
    %s129 = sphi 0, %s113
    %s139 = sphi 0, %s141
    %s142 = sphi 0, %s139
    %s143 = sphi 0, %s142
    %s159 = sphi 0, %s143
  $region4: #{forward.38} parent=0 // loop_header_branch
    %12 = sbr.rel (%p10) target = $region8
  $region5: #{forward.38} parent=0 // loop_body
    %s14 = ssub.s32 %s9, 1
    %s15 = ssub.s32 %s9, 2
    %s28 = sadd.s32 1, %s19
    %p29 = scmp.ge.s32.totalorder %s28, 1
    %s30 = scalar_select %p29, 0, %s28
    %s31 = sadd.s32 1, %s18
    %s32 = scalar_select %p29, %s31, %s18
    %p33 = scmp.ge.s32.totalorder %s32, 1
    %s34 = scalar_select %p33, 0, %s32
    %s35 = sadd.s32 1, %s17
    %s36 = scalar_select %p33, %s35, %s17
    %p37 = scmp.ge.s32.totalorder %s36, 4
    %s38 = scalar_select %p37, 0, %s36
    %s39 = sadd.s32 1, %s16
    %s40 = scalar_select %p37, %s39, %s16
    %p41 = scmp.ge.s32.totalorder %s40, 2
    %s42 = scalar_select %p41, 0, %s40
    %s43 = ssub.s32 %s16, %s42
    %s44 = ssub.s32 %s17, %s38
    %s45 = sor.u32 %s43, %s44
    %s46 = ssub.s32 %s18, %s34
    %s47 = sor.u32 %s45, %s46
    %p48 = scmp.eq.s32.totalorder %s47, 0
    %s50 = sadd.s32 %s49, 1
    %s51 = scalar_select %p48, %s49, %s50
    %p54 = pneg %p48
    %p55 = scmp.eq.s32.totalorder %s9, 7
    %p56 = por %p54, %p55
    %p57 = scmp.ne.s32.totalorder %s49, %s52
    %p58 = scmp.eq.s32.totalorder %s9, 0
    %p59 = por %p57, %p58
    %p60 = scmp.ne.s32.totalorder %s49, %s52
    %p61 = scmp.eq.s32.totalorder %s14, 7
    %p62 = por %p60, %p61
    %p63 = scmp.ne.s32.totalorder %s52, %s53
    %p64 = scmp.eq.s32.totalorder %s14, 0
    %p65 = por %p63, %p64
    %p66 = scmp.ne.s32.totalorder %s52, %s53
    %p67 = scmp.eq.s32.totalorder %s15, 7
    %p68 = por %p66, %p67
    %p70 = scmp.ne.s32.totalorder %s53, %s69
    %p71 = scmp.eq.s32.totalorder %s15, 0
    %p72 = por %p70, %p71
    %s73 = ssub.s32 %s16, %s42
    %s74 = ssub.s32 %s17, %s38
    %s75 = sor.u32 %s73, %s74
    %s76 = ssub.s32 %s19, %s30
    %s77 = sor.u32 %s75, %s76
    %p78 = scmp.eq.s32.totalorder %s77, 0
    %s80 = sadd.s32 %s79, 1
    %s81 = scalar_select %p78, %s79, %s80
    %p84 = pneg %p78
    %p85 = scmp.eq.s32.totalorder %s9, 7
    %p86 = por %p84, %p85
    %p87 = scmp.ne.s32.totalorder %s79, %s82
    %p88 = scmp.eq.s32.totalorder %s9, 0
    %p89 = por %p87, %p88
    %p90 = scmp.ne.s32.totalorder %s79, %s82
    %p91 = scmp.eq.s32.totalorder %s14, 7
    %p92 = por %p90, %p91
    %p93 = scmp.ne.s32.totalorder %s82, %s83
    %p94 = scmp.eq.s32.totalorder %s14, 0
    %p95 = por %p93, %p94
    %p96 = scmp.ne.s32.totalorder %s82, %s83
    %p97 = scmp.eq.s32.totalorder %s15, 7
    %p98 = por %p96, %p97
    %p100 = scmp.ne.s32.totalorder %s83, %s99
    %p101 = scmp.eq.s32.totalorder %s15, 0
    %p102 = por %p100, %p101
    %s103 = ssub.s32 %s16, %s42
    %s104 = ssub.s32 %s17, %s38
    %s105 = sor.u32 %s103, %s104
    %s106 = ssub.s32 %s19, %s30
    %s107 = sor.u32 %s105, %s106
    %p108 = scmp.eq.s32.totalorder %s107, 0
    %s110 = sadd.s32 %s109, 1
    %s111 = scalar_select %p108, %s109, %s110
    %p114 = pneg %p108
    %p115 = scmp.eq.s32.totalorder %s9, 7
    %p116 = por %p114, %p115
    %p117 = scmp.ne.s32.totalorder %s109, %s112
    %p118 = scmp.eq.s32.totalorder %s9, 0
    %p119 = por %p117, %p118
    %p120 = scmp.ne.s32.totalorder %s109, %s112
    %p121 = scmp.eq.s32.totalorder %s14, 7
    %p122 = por %p120, %p121
    %p123 = scmp.ne.s32.totalorder %s112, %s113
    %p124 = scmp.eq.s32.totalorder %s14, 0
    %p125 = por %p123, %p124
    %p126 = scmp.ne.s32.totalorder %s112, %s113
    %p127 = scmp.eq.s32.totalorder %s15, 7
    %p128 = por %p126, %p127
    %p130 = scmp.ne.s32.totalorder %s113, %s129
    %p131 = scmp.eq.s32.totalorder %s15, 0
    %p132 = por %p130, %p131
    %s133 = ssub.s32 %s16, %s42
    %s134 = ssub.s32 %s17, %s38
    %s135 = sor.u32 %s133, %s134
    %s136 = ssub.s32 %s18, %s34
    %s137 = sor.u32 %s135, %s136
    %p138 = scmp.eq.s32.totalorder %s137, 0
    %s140 = sadd.s32 %s139, 1
    %s141 = scalar_select %p138, %s139, %s140
    %p144 = pneg %p138
    %p145 = scmp.eq.s32.totalorder %s9, 7
    %p146 = por %p144, %p145
    %p147 = scmp.ne.s32.totalorder %s139, %s142
    %p148 = scmp.eq.s32.totalorder %s9, 0
    %p149 = por %p147, %p148
    %p150 = scmp.ne.s32.totalorder %s139, %s142
    %p151 = scmp.eq.s32.totalorder %s14, 7
    %p152 = por %p150, %p151
    %p153 = scmp.ne.s32.totalorder %s142, %s143
    %p154 = scmp.eq.s32.totalorder %s14, 0
    %p155 = por %p153, %p154
    %p156 = scmp.ne.s32.totalorder %s142, %s143
    %p157 = scmp.eq.s32.totalorder %s15, 7
    %p158 = por %p156, %p157
    %p160 = scmp.ne.s32.totalorder %s143, %s159
    %p161 = scmp.eq.s32.totalorder %s15, 0
    %p162 = por %p160, %p161
    %p163 = scmp.le.s32.totalorder 1, %s9
    %p164 = scmp.lt.s32.totalorder %s9, 9
    %p165 = pnand %p163, %p164
    %p166 = pneg %p165
    // Predicated region
    $region9: #{forward.38} parent=5 // pred_check
      _
    $region10: #{forward.38} parent=5 // pred_check_branch
      %168 = sbr.rel (%p165) target = $region12
    $region11: #{forward.38} parent=5 // pred_region
      %s169 = ssub.s32 %s9, 1
    $region12: #{forward.38} parent=5 // pred_fallthru
      _
    %p170 = scmp.lt.s32.totalorder %s9, 8
    // Predicated region
    $region13: #{forward.38} parent=5 // pred_check
      %p171 = pneg %p170
    $region14: #{forward.38} parent=5 // pred_check_branch
      %173 = sbr.rel (%p171) target = $region16
    $region15: #{forward.38} parent=5 // pred_region
      // Predicated region
      $region17: #{forward.38} parent=15 // pred_check
        %p174 = pneg %p59
      $region18: #{forward.38} parent=15 // pred_check_branch
        %176 = sbr.rel (%p174) target = $region20
      $region19: #{forward.38} parent=15 // pred_region
        %s177 = smul.u32 5, %s18
        %p178 = scmp.lt.s32.totalorder %s16, 1
        %s179 = scalar_select %p178, %s16, 1
        %p180 = scmp.lt.s32.totalorder %s17, 3
        %s181 = scalar_select %p180, %s17, 3
        %p182 = scmp.lt.s32.totalorder %s177, 4
        %s183 = scalar_select %p182, %s177, 4
        %s184 = smul.addr %s181, 5
        %s185 = sadd.s32 %s183, %s184
        %s186 = smul.addr %s179, 20
        %s187 = sadd.s32 %s185, %s186
        %s188 = smul.addr %s187, 4
        %s189 = scalar_lea.vmem %s0, %s188
        %s190 = smul.u32 5, %s18
      $region20: #{forward.38} parent=15 // pred_fallthru
        _
      // Predicated region
      $region21: #{forward.38} parent=15 // pred_check
        %p191 = pneg %p89
      $region22: #{forward.38} parent=15 // pred_check_branch
        %193 = sbr.rel (%p191) target = $region24
      $region23: #{forward.38} parent=15 // pred_region
        %s194 = smul.u32 5, %s19
        %p195 = scmp.lt.s32.totalorder %s16, 1
        %s196 = scalar_select %p195, %s16, 1
        %p197 = scmp.lt.s32.totalorder %s17, 3
        %s198 = scalar_select %p197, %s17, 3
        %p199 = scmp.lt.s32.totalorder %s194, 4
        %s200 = scalar_select %p199, %s194, 4
        %s201 = smul.addr %s198, 5
        %s202 = sadd.s32 %s200, %s201
        %s203 = smul.addr %s196, 20
        %s204 = sadd.s32 %s202, %s203
        %s205 = smul.addr %s204, 4
        %s206 = scalar_lea.vmem %s1, %s205
        %s207 = smul.u32 5, %s19
      $region24: #{forward.38} parent=15 // pred_fallthru
        _
      // Predicated region
      $region25: #{forward.38} parent=15 // pred_check
        %p208 = pneg %p119
      $region26: #{forward.38} parent=15 // pred_check_branch
        %210 = sbr.rel (%p208) target = $region28
      $region27: #{forward.38} parent=15 // pred_region
        %s211 = smul.u32 5, %s19
        %p212 = scmp.lt.s32.totalorder %s16, 1
        %s213 = scalar_select %p212, %s16, 1
        %p214 = scmp.lt.s32.totalorder %s17, 3
        %s215 = scalar_select %p214, %s17, 3
        %p216 = scmp.lt.s32.totalorder %s211, 4
        %s217 = scalar_select %p216, %s211, 4
        %s218 = smul.addr %s215, 5
        %s219 = sadd.s32 %s217, %s218
        %s220 = smul.addr %s213, 20
        %s221 = sadd.s32 %s219, %s220
        %s222 = smul.addr %s221, 4
        %s223 = scalar_lea.vmem %s2, %s222
        %s224 = smul.u32 5, %s19
      $region28: #{forward.38} parent=15 // pred_fallthru
        _
    $region16: #{forward.38} parent=5 // pred_fallthru
      _
    %p225 = scmp.le.s32.totalorder 1, %s9
    %p226 = scmp.lt.s32.totalorder %s9, 9
    %p227 = pnand %p225, %p226
    %p228 = pneg %p227
    // Predicated region
    $region29: #{forward.38} parent=5 // pred_check
      _
    $region30: #{forward.38} parent=5 // pred_check_branch
      %230 = sbr.rel (%p227) target = $region32
    $region31: #{forward.38} parent=5 // pred_region
      %s231 = ssub.s32 %s9, 1
      %s232 = smul.u32 5, %s22
      %p233 = scmp.lt.s32.totalorder %s20, 1
      %s234 = scalar_select %p233, %s20, 1
      %p235 = scmp.lt.s32.totalorder %s21, 3
      %s236 = scalar_select %p235, %s21, 3
      %p237 = scmp.lt.s32.totalorder %s232, 4
      %s238 = scalar_select %p237, %s232, 4
      %s239 = smul.addr %s236, 5
      %s240 = sadd.s32 %s238, %s239
      %s241 = smul.addr %s234, 20
      %s242 = sadd.s32 %s240, %s241
      %s243 = smul.addr %s242, 4
      %s244 = scalar_lea.vmem %s0, %s243
      %p245 = pneg %p65
      %p246 = pneg %p62
      %s247 = smul.u32 5, %s23
      %p248 = scmp.lt.s32.totalorder %s20, 1
      %s249 = scalar_select %p248, %s20, 1
      %p250 = scmp.lt.s32.totalorder %s21, 3
      %s251 = scalar_select %p250, %s21, 3
      %p252 = scmp.lt.s32.totalorder %s247, 4
      %s253 = scalar_select %p252, %s247, 4
      %s254 = smul.addr %s251, 5
      %s255 = sadd.s32 %s253, %s254
      %s256 = smul.addr %s249, 20
      %s257 = sadd.s32 %s255, %s256
      %s258 = smul.addr %s257, 4
      %s259 = scalar_lea.vmem %s1, %s258
      %p260 = pneg %p95
      %p261 = pneg %p92
      %s262 = smul.u32 5, %s23
      %p263 = scmp.lt.s32.totalorder %s20, 1
      %s264 = scalar_select %p263, %s20, 1
      %p265 = scmp.lt.s32.totalorder %s21, 3
      %s266 = scalar_select %p265, %s21, 3
      %p267 = scmp.lt.s32.totalorder %s262, 4
      %s268 = scalar_select %p267, %s262, 4
      %s269 = smul.addr %s266, 5
      %s270 = sadd.s32 %s268, %s269
      %s271 = smul.addr %s264, 20
      %s272 = sadd.s32 %s270, %s271
      %s273 = smul.addr %s272, 4
      %s274 = scalar_lea.vmem %s2, %s273
      %p275 = pneg %p125
      %p276 = pneg %p122
      %p277 = pneg %p155
      %p278 = pneg %p152
      %s279 = smul.u32 5, %s22
      %p280 = scmp.lt.s32.totalorder %s20, 1
      %s281 = scalar_select %p280, %s20, 1
      %p282 = scmp.lt.s32.totalorder %s21, 3
      %s283 = scalar_select %p282, %s21, 3
      %p284 = scmp.lt.s32.totalorder %s279, 4
      %s285 = scalar_select %p284, %s279, 4
      %s286 = smul.addr %s283, 5
      %s287 = sadd.s32 %s285, %s286
      %s288 = smul.addr %s281, 20
      %s289 = sadd.s32 %s287, %s288
      %s290 = smul.addr %s289, 4
      %s291 = scalar_lea.vmem %s3, %s290
      %s292 = smul.u32 5, %s22
      %p293 = scmp.lt.s32.totalorder %s20, 1
      %s294 = scalar_select %p293, %s20, 1
      %p295 = scmp.lt.s32.totalorder %s21, 3
      %s296 = scalar_select %p295, %s21, 3
      %p297 = scmp.lt.s32.totalorder %s292, 4
      %s298 = scalar_select %p297, %s292, 4
      %s299 = smul.addr %s296, 5
      %s300 = sadd.s32 %s298, %s299
      %s301 = smul.addr %s294, 20
      %s302 = sadd.s32 %s300, %s301
      %s303 = smul.addr %s302, 4
      %s304 = scalar_lea.vmem %s0, %s303
      %s305 = smul.u32 5, %s22
      %s306 = smul.u32 5, %s23
      %p307 = scmp.lt.s32.totalorder %s20, 1
      %s308 = scalar_select %p307, %s20, 1
      %p309 = scmp.lt.s32.totalorder %s21, 3
      %s310 = scalar_select %p309, %s21, 3
      %p311 = scmp.lt.s32.totalorder %s306, 4
      %s312 = scalar_select %p311, %s306, 4
      %s313 = smul.addr %s310, 5
      %s314 = sadd.s32 %s312, %s313
      %s315 = smul.addr %s308, 20
      %s316 = sadd.s32 %s314, %s315
      %s317 = smul.addr %s316, 4
      %s318 = scalar_lea.vmem %s1, %s317
      %s319 = smul.u32 5, %s23
      %s320 = smul.u32 5, %s23
      %p321 = scmp.lt.s32.totalorder %s20, 1
      %s322 = scalar_select %p321, %s20, 1
      %p323 = scmp.lt.s32.totalorder %s21, 3
      %s324 = scalar_select %p323, %s21, 3
      %p325 = scmp.lt.s32.totalorder %s320, 4
      %s326 = scalar_select %p325, %s320, 4
      %s327 = smul.addr %s324, 5
      %s328 = sadd.s32 %s326, %s327
      %s329 = smul.addr %s322, 20
      %s330 = sadd.s32 %s328, %s329
      %s331 = smul.addr %s330, 4
      %s332 = scalar_lea.vmem %s2, %s331
      %s333 = smul.u32 5, %s23
      %s334 = smul.u32 5, %s22
      %p335 = scmp.lt.s32.totalorder %s20, 1
      %s336 = scalar_select %p335, %s20, 1
      %p337 = scmp.lt.s32.totalorder %s21, 3
      %s338 = scalar_select %p337, %s21, 3
      %p339 = scmp.lt.s32.totalorder %s334, 4
      %s340 = scalar_select %p339, %s334, 4
      %s341 = smul.addr %s338, 5
      %s342 = sadd.s32 %s340, %s341
      %s343 = smul.addr %s336, 20
      %s344 = sadd.s32 %s342, %s343
      %s345 = smul.addr %s344, 4
      %s346 = scalar_lea.vmem %s3, %s345
      %s347 = smul.u32 5, %s22
      %p349 = scmp.eq.s32.totalorder %s23, 0
      // Predicated region
      $region33: #{forward.38} parent=31 // pred_check
        %p350 = pneg %p349
      $region34: #{forward.38} parent=31 // pred_check_branch
        %352 = sbr.rel (%p350) target = $region36
      $region35: #{forward.38} parent=31 // pred_region
        %vm353 = vcmask 7168
        %354 = vst.msk [vmem:[#allocation2] sm:$0xff] %vm353, -inf
        %355 = vst.msk [vmem:[#allocation2 + $0x8] sm:$0xff] %vm353, -inf
        %356 = vst.msk [vmem:[#allocation2 + $0x10] sm:$0xff] %vm353, -inf
        %357 = vst.msk [vmem:[#allocation2 + $0x18] sm:$0xff] %vm353, -inf
        %358 = vst.msk [vmem:[#allocation2 + $0x20] sm:$0xff] %vm353, -inf
        %359 = vst.msk [vmem:[#allocation3] sm:$0xff] %vm353, 0.0
        %360 = vst.msk [vmem:[#allocation3 + $0x8] sm:$0xff] %vm353, 0.0
        %361 = vst.msk [vmem:[#allocation3 + $0x10] sm:$0xff] %vm353, 0.0
        %362 = vst.msk [vmem:[#allocation3 + $0x18] sm:$0xff] %vm353, 0.0
        %363 = vst.msk [vmem:[#allocation3 + $0x20] sm:$0xff] %vm353, 0.0
        %vm364 = vcmask 130048
        %365 = vst.msk [vmem:[#allocation4] sm:$0xff] %vm364, 0.0
        %366 = vst.msk [vmem:[#allocation4 + $0x8] sm:$0xff] %vm364, 0.0
        %367 = vst.msk [vmem:[#allocation4 + $0x10] sm:$0xff] %vm364, 0.0
        %368 = vst.msk [vmem:[#allocation4 + $0x18] sm:$0xff] %vm364, 0.0
        %369 = vst.msk [vmem:[#allocation4 + $0x20] sm:$0xff] %vm364, 0.0
      $region36: #{forward.38} parent=31 // pred_fallthru
        _
      %v370 = vld [vmem:[%s304] sm:$0xf]
      %v371 = vld [vmem:[%s304 + $0x4] sm:$0xf]
      %v372 = vld [vmem:[%s304 + $0x8] sm:$0xf]
      %v373 = vld [vmem:[%s304 + $0xc] sm:$0xf]
      %v374 = vld [vmem:[%s304 + $0x10] sm:$0xf]
      %v375 = vld [vmem:[%s318] sm:$0xf]
      %v376 = vld [vmem:[%s318 + $0x4] sm:$0xf]
      %v377 = vld [vmem:[%s318 + $0x8] sm:$0xf]
      %v378 = vld [vmem:[%s318 + $0xc] sm:$0xf]
      %v379 = vld [vmem:[%s318 + $0x10] sm:$0xf]
      %v380 = vld [vmem:[%s332] sm:$0xf]
      %v381 = vld [vmem:[%s332 + $0x4] sm:$0xf]
      %v382 = vld [vmem:[%s332 + $0x8] sm:$0xf]
      %v383 = vld [vmem:[%s332 + $0xc] sm:$0xf]
      %v384 = vld [vmem:[%s332 + $0x10] sm:$0xf]
      %v390 = vunpack.c.l.b16 %v370
      %v391 = vunpack.c.l.b16 %v371
      %v392 = vunpack.c.l.b16 %v372
      %v393 = vunpack.c.l.b16 %v373
      %v394 = vunpack.c.l.b16 %v374
      %v395 = vpack.c.b16 %v391, %v390
      %v396 = vpack.c.b16 %v393, %v392
      %v397 = vpack.c.b16 %v394, %v394
      %v403 = vunpack.c.l.b16 %v375
      %v404 = vunpack.c.l.b16 %v376
      %v405 = vunpack.c.l.b16 %v377
      %v406 = vunpack.c.l.b16 %v378
      %v407 = vunpack.c.l.b16 %v379
      %v408 = vpack.c.b16 %v404, %v403
      %v409 = vpack.c.b16 %v406, %v405
      %v410 = vpack.c.b16 %v407, %v407
      %vm411 = vcmask 130048
      %v413 = vsel %vm411, %v395, 0
      %v416 = vsel %vm411, %v396, 0
      %v419 = vsel %vm411, %v397, 0
      %v422 = vsel %vm411, %v408, 0
      %v425 = vsel %vm411, %v409, 0
      %v428 = vsel %vm411, %v410, 0
      %430 = vmatprep.subr.bf16.mxu0 0
      %431 = vmatpush1.bf16.xpose.msra.mxu0 %v422
      %432 = vmatprep.subr.bf16.mxu0 0
      %433 = vmatpush1.bf16.xpose.msra.mxu0 %v425
      %434 = vmatprep.subr.bf16.mxu0 0
      %435 = vmatpush1.bf16.xpose.msra.mxu0 %v428
      %436 = vmatprep.subr.bf16.mxu0 0
      %437 = vmatpush1.bf16.xpose.msra.mxu0 0
      %438 = vmatprep.subr.bf16.mxu0 0
      %439 = vmatpush1.bf16.xpose.msra.mxu0 0
      %440 = vmatprep.subr.bf16.mxu0 0
      %441 = vmatpush1.bf16.xpose.msra.mxu0 0
      %442 = vmatprep.subr.bf16.mxu0 0
      %443 = vmatpush1.bf16.xpose.msra.mxu0 0
      %444 = vmatprep.subr.bf16.mxu0 0
      %445 = vmatpush1.bf16.xpose.msra.mxu0 0
      %446 = vmatprep.subr.bf16.mxu0 0
      %447 = vmatpush1.bf16.xpose.msra.mxu0 0
      %448 = vmatprep.subr.bf16.mxu0 0
      %449 = vmatpush1.bf16.xpose.msra.mxu0 0
      %450 = vmatprep.subr.bf16.mxu0 0
      %451 = vmatpush1.bf16.xpose.msra.mxu0 0
      %452 = vmatprep.subr.bf16.mxu0 0
      %453 = vmatpush1.bf16.xpose.msra.mxu0 0
      %454 = vmatprep.subr.bf16.mxu0 0
      %455 = vmatpush1.bf16.xpose.msra.mxu0 0
      %456 = vmatprep.subr.bf16.mxu0 0
      %457 = vmatpush1.bf16.xpose.msra.mxu0 0
      %458 = vmatprep.subr.bf16.mxu0 0
      %459 = vmatpush1.bf16.xpose.msra.mxu0 0
      %460 = vmatprep.subr.bf16.mxu0 0
      %461 = vmatpush1.bf16.xpose.msra.mxu0 0
      %462 = vmatprep.mubr.bf16.mxu0 0
      %463 = vmatmul.mubr.bf16.gmra.mrb[0].mxu0 %v413
      %v464 = vpop.f32.mrb[0].mxu0
      %v465 = vadd.f32 0.0, %v464
      %v466 = vpop.f32.mrb[0].mxu0
      %v467 = vpop.f32.mrb[0].mxu0
      %v468 = vadd.f32 0.0, %v467
      %v469 = vpop.f32.mrb[0].mxu0
      %470 = vmatprep.mubr.bf16.mxu0 0
      %471 = vmatmul.mubr.bf16.gmra.mrb[0].mxu0 %v416
      %v472 = vpop.f32.mrb[0].mxu0
      %v473 = vadd.f32 0.0, %v472
      %v474 = vpop.f32.mrb[0].mxu0
      %v475 = vpop.f32.mrb[0].mxu0
      %v476 = vadd.f32 0.0, %v475
      %v477 = vpop.f32.mrb[0].mxu0
      %478 = vmatprep.mubr.bf16.mxu0 0
      %479 = vmatmul.mubr.bf16.gmra.mrb[0].mxu0 %v419
      %v480 = vpop.f32.mrb[0].mxu0
      %v481 = vadd.f32 0.0, %v480
      %v482 = vpop.f32.mrb[0].mxu0
      %v483 = vpop.f32.mrb[0].mxu0
      %v484 = vpop.f32.mrb[0].mxu0
      %485 = vdwg.mxu0
      %v486 = vld [vmem:[#allocation2] sm:$0xff]
      %v487 = vld [vmem:[#allocation2 + $0x8] sm:$0xff]
      %v488 = vld [vmem:[#allocation2 + $0x10] sm:$0xff]
      %v489 = vld [vmem:[#allocation2 + $0x18] sm:$0xff]
      %v490 = vld [vmem:[#allocation2 + $0x20] sm:$0xff]
      %vm491 = vcmask 326656
      %v492 = vsel %vm491, %v465, -inf
      %493 = vmax.xlane.f32.xlu0 %v492
      %v494 = vpop.xlane.xlu0 %493
      %v495 = vsel %vm491, %v468, -inf
      %496 = vmax.xlane.f32.xlu0 %v495
      %v497 = vpop.xlane.xlu0 %496
      %v498 = vsel %vm491, %v473, -inf
      %499 = vmax.xlane.f32.xlu0 %v498
      %v500 = vpop.xlane.xlu0 %499
      %v501 = vsel %vm491, %v476, -inf
      %502 = vmax.xlane.f32.xlu0 %v501
      %v503 = vpop.xlane.xlu0 %502
      %v504 = vsel %vm491, %v481, -inf
      %505 = vmax.xlane.f32.xlu0 %v504
      %v506 = vpop.xlane.xlu0 %505
      %v507 = vmax.f32 %v486, %v494
      %v508 = vmax.f32 %v487, %v497
      %v509 = vmax.f32 %v488, %v500
      %v510 = vmax.f32 %v489, %v503
      %v511 = vmax.f32 %v490, %v506
      %v512 = vsub.f32 %v486, %v507
      %v513 = vsub.f32 %v487, %v508
      %v514 = vsub.f32 %v488, %v509
      %v515 = vsub.f32 %v489, %v510
      %v516 = vsub.f32 %v490, %v511
      %v517 = vmul.f32 %v512, 1.442695
      %v518 = vpow.pop %v517
      %v519 = vmul.f32 %v513, 1.442695
      %v520 = vpow.pop %v519
      %v521 = vmul.f32 %v514, 1.442695
      %v522 = vpow.pop %v521
      %v523 = vmul.f32 %v515, 1.442695
      %v524 = vpow.pop %v523
      %v525 = vmul.f32 %v516, 1.442695
      %v526 = vpow.pop %v525
      %528 = vset.pattern.permute.xlu0 0
      %529 = vperm.xlu0 %528, %v507
      %v530 = vpop.permute.xlu0 %529
      %533 = vset.pattern.permute.xlu0 0
      %534 = vperm.xlu0 %533, %v508
      %v535 = vpop.permute.xlu0 %534
      %538 = vset.pattern.permute.xlu0 0
      %539 = vperm.xlu0 %538, %v509
      %v540 = vpop.permute.xlu0 %539
      %543 = vset.pattern.permute.xlu0 0
      %544 = vperm.xlu0 %543, %v510
      %v545 = vpop.permute.xlu0 %544
      %548 = vset.pattern.permute.xlu0 0
      %549 = vperm.xlu0 %548, %v511
      %v550 = vpop.permute.xlu0 %549
      %v552 = vsub.f32 %v465, %v530
      %v553 = vsub.f32 %v468, %v535
      %v554 = vsub.f32 %v473, %v540
      %v555 = vsub.f32 %v476, %v545
      %v556 = vsub.f32 %v481, %v550
      %v557 = vmul.f32 %v552, 1.442695
      %v558 = vpow.pop %v557
      %v559 = vmul.f32 %v553, 1.442695
      %v560 = vpow.pop %v559
      %v561 = vmul.f32 %v554, 1.442695
      %v562 = vpow.pop %v561
      %v563 = vmul.f32 %v555, 1.442695
      %v564 = vpow.pop %v563
      %v565 = vmul.f32 %v556, 1.442695
      %v566 = vpow.pop %v565
      %v567 = vld [vmem:[#allocation3] sm:$0xff]
      %v568 = vld [vmem:[#allocation3 + $0x8] sm:$0xff]
      %v569 = vld [vmem:[#allocation3 + $0x10] sm:$0xff]
      %v570 = vld [vmem:[#allocation3 + $0x18] sm:$0xff]
      %v571 = vld [vmem:[#allocation3 + $0x20] sm:$0xff]
      %v572 = vmul.f32 %v518, %v567
      %v573 = vmul.f32 %v520, %v568
      %v574 = vmul.f32 %v522, %v569
      %v575 = vmul.f32 %v524, %v570
      %v576 = vmul.f32 %v526, %v571
      %v577 = vsel %vm491, %v558, 0.0
      %578 = vadd.xlane.f32.xlu0 %v577
      %v579 = vpop.xlane.xlu0 %578
      %v580 = vsel %vm491, %v560, 0.0
      %581 = vadd.xlane.f32.xlu0 %v580
      %v582 = vpop.xlane.xlu0 %581
      %v583 = vsel %vm491, %v562, 0.0
      %584 = vadd.xlane.f32.xlu0 %v583
      %v585 = vpop.xlane.xlu0 %584
      %v586 = vsel %vm491, %v564, 0.0
      %587 = vadd.xlane.f32.xlu0 %v586
      %v588 = vpop.xlane.xlu0 %587
      %v589 = vsel %vm491, %v566, 0.0
      %590 = vadd.xlane.f32.xlu0 %v589
      %v591 = vpop.xlane.xlu0 %590
      %v592 = vadd.f32 %v572, %v579
      %v593 = vadd.f32 %v573, %v582
      %v594 = vadd.f32 %v574, %v585
      %v595 = vadd.f32 %v575, %v588
      %v596 = vadd.f32 %v576, %v591
      %vm597 = vcmask 7168
      %598 = vst.msk [vmem:[#allocation3] sm:$0xff] %vm597, %v592
      %599 = vst.msk [vmem:[#allocation3 + $0x8] sm:$0xff] %vm597, %v593
      %600 = vst.msk [vmem:[#allocation3 + $0x10] sm:$0xff] %vm597, %v594
      %601 = vst.msk [vmem:[#allocation3 + $0x18] sm:$0xff] %vm597, %v595
      %602 = vst.msk [vmem:[#allocation3 + $0x20] sm:$0xff] %vm597, %v596
      %v603 = vld [vmem:[#allocation4] sm:$0xff]
      %v604 = vld [vmem:[#allocation4 + $0x8] sm:$0xff]
      %v605 = vld [vmem:[#allocation4 + $0x10] sm:$0xff]
      %v606 = vld [vmem:[#allocation4 + $0x18] sm:$0xff]
      %v607 = vld [vmem:[#allocation4 + $0x20] sm:$0xff]
      %609 = vset.pattern.permute.xlu0 0
      %610 = vperm.xlu0 %609, %v518
      %v611 = vpop.permute.xlu0 %610
      %614 = vset.pattern.permute.xlu0 0
      %615 = vperm.xlu0 %614, %v520
      %v616 = vpop.permute.xlu0 %615
      %619 = vset.pattern.permute.xlu0 0
      %620 = vperm.xlu0 %619, %v522
      %v621 = vpop.permute.xlu0 %620
      %624 = vset.pattern.permute.xlu0 0
      %625 = vperm.xlu0 %624, %v524
      %v626 = vpop.permute.xlu0 %625
      %629 = vset.pattern.permute.xlu0 0
      %630 = vperm.xlu0 %629, %v526
      %v631 = vpop.permute.xlu0 %630
      %v633 = vmul.f32 %v611, %v603
      %v634 = vmul.f32 %v616, %v604
      %v635 = vmul.f32 %v621, %v605
      %v636 = vmul.f32 %v626, %v606
      %v637 = vmul.f32 %v631, %v607
      %v638 = vpack.c.bf16 %v560, %v558
      %v639 = vpack.c.bf16 %v564, %v562
      %v640 = vpack.c.bf16 %v566, %v566
      %v646 = vunpack.c.l.b16 %v380
      %v647 = vunpack.c.l.b16 %v381
      %v648 = vunpack.c.l.b16 %v382
      %v649 = vunpack.c.l.b16 %v383
      %v650 = vunpack.c.l.b16 %v384
      %v651 = vpack.c.b16 %v647, %v646
      %v652 = vpack.c.b16 %v649, %v648
      %v653 = vpack.c.b16 %v650, %v650
      %v657 = vsel %vm491, %v638, 0
      %v660 = vsel %vm491, %v639, 0
      %v663 = vsel %vm491, %v640, 0
      %vm665 = vcmask 1043456
      %v667 = vsel %vm665, %v653, 0
      %669 = vmatprep.subr.bf16.mxu0 0
      %670 = vmatpush1.bf16.msra.mxu0 %v651
      %671 = vmatprep.subr.bf16.mxu0 0
      %672 = vmatpush1.bf16.msra.mxu0 %v652
      %673 = vmatprep.subr.bf16.mxu0 0
      %674 = vmatpush1.bf16.msra.mxu0 %v667
      %675 = vmatprep.subr.bf16.mxu0 0
      %676 = vmatpush1.bf16.msra.mxu0 0
      %677 = vmatprep.subr.bf16.mxu0 0
      %678 = vmatpush1.bf16.msra.mxu0 0
      %679 = vmatprep.subr.bf16.mxu0 0
      %680 = vmatpush1.bf16.msra.mxu0 0
      %681 = vmatprep.subr.bf16.mxu0 0
      %682 = vmatpush1.bf16.msra.mxu0 0
      %683 = vmatprep.subr.bf16.mxu0 0
      %684 = vmatpush1.bf16.msra.mxu0 0
      %685 = vmatprep.subr.bf16.mxu0 0
      %686 = vmatpush1.bf16.msra.mxu0 0
      %687 = vmatprep.subr.bf16.mxu0 0
      %688 = vmatpush1.bf16.msra.mxu0 0
      %689 = vmatprep.subr.bf16.mxu0 0
      %690 = vmatpush1.bf16.msra.mxu0 0
      %691 = vmatprep.subr.bf16.mxu0 0
      %692 = vmatpush1.bf16.msra.mxu0 0
      %693 = vmatprep.subr.bf16.mxu0 0
      %694 = vmatpush1.bf16.msra.mxu0 0
      %695 = vmatprep.subr.bf16.mxu0 0
      %696 = vmatpush1.bf16.msra.mxu0 0
      %697 = vmatprep.subr.bf16.mxu0 0
      %698 = vmatpush1.bf16.msra.mxu0 0
      %699 = vmatprep.subr.bf16.mxu0 0
      %700 = vmatpush1.bf16.msra.mxu0 0
      %701 = vmatprep.mubr.bf16.mxu0 0
      %702 = vmatmul.mubr.bf16.gmra.mrb[0].mxu0 %v657
      %v703 = vpop.f32.mrb[0].mxu0
      %v704 = vadd.f32 0.0, %v703
      %v705 = vpop.f32.mrb[0].mxu0
      %v706 = vpop.f32.mrb[0].mxu0
      %v707 = vadd.f32 0.0, %v706
      %v708 = vpop.f32.mrb[0].mxu0
      %709 = vmatprep.mubr.bf16.mxu0 0
      %710 = vmatmul.mubr.bf16.gmra.mrb[0].mxu0 %v660
      %v711 = vpop.f32.mrb[0].mxu0
      %v712 = vadd.f32 0.0, %v711
      %v713 = vpop.f32.mrb[0].mxu0
      %v714 = vpop.f32.mrb[0].mxu0
      %v715 = vadd.f32 0.0, %v714
      %v716 = vpop.f32.mrb[0].mxu0
      %717 = vmatprep.mubr.bf16.mxu0 0
      %718 = vmatmul.mubr.bf16.gmra.mrb[0].mxu0 %v663
      %v719 = vpop.f32.mrb[0].mxu0
      %v720 = vadd.f32 0.0, %v719
      %v721 = vpop.f32.mrb[0].mxu0
      %v722 = vpop.f32.mrb[0].mxu0
      %v723 = vpop.f32.mrb[0].mxu0
      %724 = vdwg.mxu0
      %v725 = vadd.f32 %v633, %v704
      %v726 = vadd.f32 %v634, %v707
      %v727 = vadd.f32 %v635, %v712
      %v728 = vadd.f32 %v636, %v715
      %v729 = vadd.f32 %v637, %v720
      %730 = vst.msk [vmem:[#allocation4] sm:$0xff] %vm411, %v725
      %731 = vst.msk [vmem:[#allocation4 + $0x8] sm:$0xff] %vm411, %v726
      %732 = vst.msk [vmem:[#allocation4 + $0x10] sm:$0xff] %vm411, %v727
      %733 = vst.msk [vmem:[#allocation4 + $0x18] sm:$0xff] %vm411, %v728
      %734 = vst.msk [vmem:[#allocation4 + $0x20] sm:$0xff] %vm411, %v729
      %735 = vst.msk [vmem:[#allocation2] sm:$0xff] %vm597, %v507
      %736 = vst.msk [vmem:[#allocation2 + $0x8] sm:$0xff] %vm597, %v508
      %737 = vst.msk [vmem:[#allocation2 + $0x10] sm:$0xff] %vm597, %v509
      %738 = vst.msk [vmem:[#allocation2 + $0x18] sm:$0xff] %vm597, %v510
      %739 = vst.msk [vmem:[#allocation2 + $0x20] sm:$0xff] %vm597, %v511
      // Predicated region
      $region37: #{forward.38} parent=31 // pred_check
        %p740 = pneg %p349
      $region38: #{forward.38} parent=31 // pred_check_branch
        %742 = sbr.rel (%p740) target = $region40
      $region39: #{forward.38} parent=31 // pred_region
        %v743 = vld [vmem:[#allocation4] sm:$0xff]
        %v744 = vld [vmem:[#allocation4 + $0x8] sm:$0xff]
        %v745 = vld [vmem:[#allocation4 + $0x10] sm:$0xff]
        %v746 = vld [vmem:[#allocation4 + $0x18] sm:$0xff]
        %v747 = vld [vmem:[#allocation4 + $0x20] sm:$0xff]
        %v748 = vld [vmem:[#allocation3] sm:$0xff]
        %v749 = vld [vmem:[#allocation3 + $0x8] sm:$0xff]
        %v750 = vld [vmem:[#allocation3 + $0x10] sm:$0xff]
        %v751 = vld [vmem:[#allocation3 + $0x18] sm:$0xff]
        %v752 = vld [vmem:[#allocation3 + $0x20] sm:$0xff]
        %v753 = vrcp.pop %v748
        %v754 = vrcp.pop %v749
        %v755 = vrcp.pop %v750
        %v756 = vrcp.pop %v751
        %v757 = vrcp.pop %v752
        %759 = vset.pattern.permute.xlu0 0
        %760 = vperm.xlu0 %759, %v753
        %v761 = vpop.permute.xlu0 %760
        %764 = vset.pattern.permute.xlu0 0
        %765 = vperm.xlu0 %764, %v754
        %v766 = vpop.permute.xlu0 %765
        %769 = vset.pattern.permute.xlu0 0
        %770 = vperm.xlu0 %769, %v755
        %v771 = vpop.permute.xlu0 %770
        %774 = vset.pattern.permute.xlu0 0
        %775 = vperm.xlu0 %774, %v756
        %v776 = vpop.permute.xlu0 %775
        %779 = vset.pattern.permute.xlu0 0
        %780 = vperm.xlu0 %779, %v757
        %v781 = vpop.permute.xlu0 %780
        %v783 = vmul.f32 %v743, %v761
        %v784 = vmul.f32 %v744, %v766
        %v785 = vmul.f32 %v745, %v771
        %v786 = vmul.f32 %v746, %v776
        %v787 = vmul.f32 %v747, %v781
        %v788 = vpack.c.bf16 %v784, %v783
        %v789 = vpack.c.bf16 %v786, %v785
        %v790 = vpack.c.bf16 %v787, %v787
        %v794 = vunpack.c.l.b16 %v788
        %v795 = vunpack.c.h.b16 %v788
        %v796 = vunpack.c.l.b16 %v789
        %v797 = vunpack.c.h.b16 %v789
        %v798 = vunpack.c.l.b16 %v790
        %v799 = vpack.c.b16 %v794, %v794
        %v800 = vpack.c.b16 %v795, %v795
        %v801 = vpack.c.b16 %v796, %v796
        %v802 = vpack.c.b16 %v797, %v797
        %v803 = vpack.c.b16 %v798, %v798
        %vm809 = vcmask 125952
        %810 = vst.msk [vmem:[%s346] sm:$0xf] %vm809, %v799
        %811 = vst.msk [vmem:[%s346 + $0x4] sm:$0xf] %vm809, %v800
        %812 = vst.msk [vmem:[%s346 + $0x8] sm:$0xf] %vm809, %v801
        %813 = vst.msk [vmem:[%s346 + $0xc] sm:$0xf] %vm809, %v802
        %814 = vst.msk [vmem:[%s346 + $0x10] sm:$0xf] %vm809, %v803
      $region40: #{forward.38} parent=31 // pred_fallthru
        _
      %s815 = smul.u32 5, %s22
      %p816 = scmp.lt.s32.totalorder %s20, 1
      %s817 = scalar_select %p816, %s20, 1
      %p818 = scmp.lt.s32.totalorder %s21, 3
      %s819 = scalar_select %p818, %s21, 3
      %p820 = scmp.lt.s32.totalorder %s815, 4
      %s821 = scalar_select %p820, %s815, 4
      %s822 = smul.addr %s819, 5
      %s823 = sadd.s32 %s821, %s822
      %s824 = smul.addr %s817, 20
      %s825 = sadd.s32 %s823, %s824
      %s826 = smul.addr %s825, 4
      %s827 = scalar_lea.vmem %s3, %s826
      // Predicated region
      $region41: #{forward.38} parent=31 // pred_check
        %p828 = pneg %p152
      $region42: #{forward.38} parent=31 // pred_check_branch
        %830 = sbr.rel (%p828) target = $region44
      $region43: #{forward.38} parent=31 // pred_region
        %s831 = smul.u32 5, %s22
      $region44: #{forward.38} parent=31 // pred_fallthru
        _
    $region32: #{forward.38} parent=5 // pred_fallthru
      _
    %p832 = scmp.le.s32.totalorder 2, %s9
    // Predicated region
    $region45: #{forward.38} parent=5 // pred_check
      %p833 = pneg %p832
    $region46: #{forward.38} parent=5 // pred_check_branch
      %835 = sbr.rel (%p833) target = $region48
    $region47: #{forward.38} parent=5 // pred_region
      %s836 = ssub.s32 %s9, 2
      // Predicated region
      $region49: #{forward.38} parent=47 // pred_check
        %p837 = pneg %p158
      $region50: #{forward.38} parent=47 // pred_check_branch
        %839 = sbr.rel (%p837) target = $region52
      $region51: #{forward.38} parent=47 // pred_region
        %s840 = smul.u32 5, %s26
        %p841 = scmp.lt.s32.totalorder %s24, 1
        %s842 = scalar_select %p841, %s24, 1
        %p843 = scmp.lt.s32.totalorder %s25, 3
        %s844 = scalar_select %p843, %s25, 3
        %p845 = scmp.lt.s32.totalorder %s840, 4
        %s846 = scalar_select %p845, %s840, 4
        %s847 = smul.addr %s844, 5
        %s848 = sadd.s32 %s846, %s847
        %s849 = smul.addr %s842, 20
        %s850 = sadd.s32 %s848, %s849
        %s851 = smul.addr %s850, 4
        %s852 = scalar_lea.vmem %s3, %s851
      $region52: #{forward.38} parent=47 // pred_fallthru
        _
    $region48: #{forward.38} parent=5 // pred_fallthru
      _
  $region6: #{forward.38} parent=0 // loop_footer
    %s13 = sadd.s32 1, %s9
  $region7: #{forward.38} parent=0 // loop_footer_branch
    %8 = sbr.rel target = $region3
  $region8: #{forward.38} parent=0 // loop_exit
    _

// kernel: forward.39
$region0: #{forward.39}
  #allocation0 [shape = 'u32[]', space=smem, size = 0x4, offset = 0x4, fixed_abs, tag = 'smem constant byte address 0x4 - core index']
  #allocation1 [shape = 'u32[144,128]{1,0:T(1,128)}', space=vmem, size = 0x12000, scoped, tag = 'internal scratch']
  #allocation2 [shape = 'f32[80,64]{1,0:T(8,128)}', space=vmem, size = 0xa000, scoped, tag = 'scratch operand']
  %s0 = inlined_call_operand.vmem [shape: bf16[80,64], index: 0, kind: input, shape index: {}]
  %s1 = inlined_call_operand.vmem [shape: bf16[64,64], index: 1, kind: input, shape index: {}]
  %s2 = inlined_call_operand.vmem [shape: f32[1,64], index: 2, kind: input, shape index: {}]
  %s3 = inlined_call_operand.vmem [shape: f32[80,64], index: 3, kind: input, shape index: {}]
  %s4 = inlined_call_operand.vmem [shape: f32[80,64], index: 4, kind: output, shape index: {}]
  %s5 = sld [smem:[#allocation0]]
  $region34: #{forward.39} parent=0
    _
  %s7 = ssub.s32 1, %s5
  %s8 = scalar_select 0, %s7, %s5
  // Predicated region
  $region2: #{forward.39} parent=0 // pred_check
    _
  $region3: #{forward.39} parent=0 // pred_check_branch
    %10 = sbr.rel (0) target = $region5
  $region4: #{forward.39} parent=0 // pred_region
    _
  $region5: #{forward.39} parent=0 // pred_fallthru
    _
  // Predicated region
  $region6: #{forward.39} parent=0 // pred_check
    _
  $region7: #{forward.39} parent=0 // pred_check_branch
    %12 = sbr.rel (0) target = $region9
  $region8: #{forward.39} parent=0 // pred_region
    _
  $region9: #{forward.39} parent=0 // pred_fallthru
    _
  // Predicated region
  $region10: #{forward.39} parent=0 // pred_check
    _
  $region11: #{forward.39} parent=0 // pred_check_branch
    %14 = sbr.rel (0) target = $region13
  $region12: #{forward.39} parent=0 // pred_region
    _
  $region13: #{forward.39} parent=0 // pred_fallthru
    _
  // Predicated region
  $region14: #{forward.39} parent=0 // pred_check
    _
  $region15: #{forward.39} parent=0 // pred_check_branch
    %16 = sbr.rel (0) target = $region17
  $region16: #{forward.39} parent=0 // pred_region
    _
  $region17: #{forward.39} parent=0 // pred_fallthru
    _
  %p18 = scmp.eq.s32.totalorder 0, 0
  // Predicated region
  $region18: #{forward.39} parent=0 // pred_check
    %p19 = pneg %p18
  $region19: #{forward.39} parent=0 // pred_check_branch
    %21 = sbr.rel (%p19) target = $region21
  $region20: #{forward.39} parent=0 // pred_region
    %vm22 = vcmask 523264
    %23 = vst.msk [vmem:[#allocation2] sm:$0xff] %vm22, 0.0
    %24 = vst.msk [vmem:[#allocation2 + $0x8] sm:$0xff] %vm22, 0.0
    %25 = vst.msk [vmem:[#allocation2 + $0x10] sm:$0xff] %vm22, 0.0
    %26 = vst.msk [vmem:[#allocation2 + $0x18] sm:$0xff] %vm22, 0.0
    %27 = vst.msk [vmem:[#allocation2 + $0x20] sm:$0xff] %vm22, 0.0
    %28 = vst.msk [vmem:[#allocation2 + $0x28] sm:$0xff] %vm22, 0.0
    %29 = vst.msk [vmem:[#allocation2 + $0x30] sm:$0xff] %vm22, 0.0
    %30 = vst.msk [vmem:[#allocation2 + $0x38] sm:$0xff] %vm22, 0.0
    %31 = vst.msk [vmem:[#allocation2 + $0x40] sm:$0xff] %vm22, 0.0
    %32 = vst.msk [vmem:[#allocation2 + $0x48] sm:$0xff] %vm22, 0.0
  $region21: #{forward.39} parent=0 // pred_fallthru
    _
  %v33 = vld [vmem:[#allocation2] sm:$0xff]
  %v34 = vld [vmem:[#allocation2 + $0x8] sm:$0xff]
  %v35 = vld [vmem:[#allocation2 + $0x10] sm:$0xff]
  %v36 = vld [vmem:[#allocation2 + $0x18] sm:$0xff]
  %v37 = vld [vmem:[#allocation2 + $0x20] sm:$0xff]
  %v38 = vld [vmem:[#allocation2 + $0x28] sm:$0xff]
  %v39 = vld [vmem:[#allocation2 + $0x30] sm:$0xff]
  %v40 = vld [vmem:[#allocation2 + $0x38] sm:$0xff]
  %v41 = vld [vmem:[#allocation2 + $0x40] sm:$0xff]
  %v42 = vld [vmem:[#allocation2 + $0x48] sm:$0xff]
  %v43 = vld [vmem:[%s0] sm:$0xf]
  %v44 = vld [vmem:[%s0 + $0x4] sm:$0xf]
  %v45 = vld [vmem:[%s0 + $0x8] sm:$0xf]
  %v46 = vld [vmem:[%s0 + $0xc] sm:$0xf]
  %v47 = vld [vmem:[%s0 + $0x10] sm:$0xf]
  %v48 = vld [vmem:[%s0 + $0x14] sm:$0xf]
  %v49 = vld [vmem:[%s0 + $0x18] sm:$0xf]
  %v50 = vld [vmem:[%s0 + $0x1c] sm:$0xf]
  %v51 = vld [vmem:[%s0 + $0x20] sm:$0xf]
  %v52 = vld [vmem:[%s0 + $0x24] sm:$0xf]
  %v53 = vld [vmem:[%s1] sm:$0xf]
  %v54 = vld [vmem:[%s1 + $0x4] sm:$0xf]
  %v55 = vld [vmem:[%s1 + $0x8] sm:$0xf]
  %v56 = vld [vmem:[%s1 + $0xc] sm:$0xf]
  %v57 = vld [vmem:[%s1 + $0x10] sm:$0xf]
  %v58 = vld [vmem:[%s1 + $0x14] sm:$0xf]
  %v59 = vld [vmem:[%s1 + $0x18] sm:$0xf]
  %v60 = vld [vmem:[%s1 + $0x1c] sm:$0xf]
  %v71 = vunpack.c.l.b16 %v43
  %v72 = vunpack.c.l.b16 %v44
  %v73 = vunpack.c.l.b16 %v45
  %v74 = vunpack.c.l.b16 %v46
  %v75 = vunpack.c.l.b16 %v47
  %v76 = vunpack.c.l.b16 %v48
  %v77 = vunpack.c.l.b16 %v49
  %v78 = vunpack.c.l.b16 %v50
  %v79 = vunpack.c.l.b16 %v51
  %v80 = vunpack.c.l.b16 %v52
  %v81 = vpack.c.b16 %v72, %v71
  %v82 = vpack.c.b16 %v74, %v73
  %v83 = vpack.c.b16 %v76, %v75
  %v84 = vpack.c.b16 %v78, %v77
  %v85 = vpack.c.b16 %v80, %v79
  %v94 = vunpack.c.l.b16 %v53
  %v95 = vunpack.c.l.b16 %v54
  %v96 = vunpack.c.l.b16 %v55
  %v97 = vunpack.c.l.b16 %v56
  %v98 = vunpack.c.l.b16 %v57
  %v99 = vunpack.c.l.b16 %v58
  %v100 = vunpack.c.l.b16 %v59
  %v101 = vunpack.c.l.b16 %v60
  %v102 = vpack.c.b16 %v95, %v94
  %v103 = vpack.c.b16 %v97, %v96
  %v104 = vpack.c.b16 %v99, %v98
  %v105 = vpack.c.b16 %v101, %v100
  %vm110 = vcmask 523264
  %v112 = vsel %vm110, %v81, 0
  %v115 = vsel %vm110, %v82, 0
  %v118 = vsel %vm110, %v83, 0
  %v121 = vsel %vm110, %v84, 0
  %v124 = vsel %vm110, %v85, 0
  %126 = vmatprep.subr.bf16.mxu0 0
  %127 = vmatpush1.bf16.msra.mxu0 %v102
  %128 = vmatprep.subr.bf16.mxu0 0
  %129 = vmatpush1.bf16.msra.mxu0 %v103
  %130 = vmatprep.subr.bf16.mxu0 0
  %131 = vmatpush1.bf16.msra.mxu0 %v104
  %132 = vmatprep.subr.bf16.mxu0 0
  %133 = vmatpush1.bf16.msra.mxu0 %v105
  %134 = vmatprep.subr.bf16.mxu0 0
  %135 = vmatpush1.bf16.msra.mxu0 0
  %136 = vmatprep.subr.bf16.mxu0 0
  %137 = vmatpush1.bf16.msra.mxu0 0
  %138 = vmatprep.subr.bf16.mxu0 0
  %139 = vmatpush1.bf16.msra.mxu0 0
  %140 = vmatprep.subr.bf16.mxu0 0
  %141 = vmatpush1.bf16.msra.mxu0 0
  %142 = vmatprep.subr.bf16.mxu0 0
  %143 = vmatpush1.bf16.msra.mxu0 0
  %144 = vmatprep.subr.bf16.mxu0 0
  %145 = vmatpush1.bf16.msra.mxu0 0
  %146 = vmatprep.subr.bf16.mxu0 0
  %147 = vmatpush1.bf16.msra.mxu0 0
  %148 = vmatprep.subr.bf16.mxu0 0
  %149 = vmatpush1.bf16.msra.mxu0 0
  %150 = vmatprep.subr.bf16.mxu0 0
  %151 = vmatpush1.bf16.msra.mxu0 0
  %152 = vmatprep.subr.bf16.mxu0 0
  %153 = vmatpush1.bf16.msra.mxu0 0
  %154 = vmatprep.subr.bf16.mxu0 0
  %155 = vmatpush1.bf16.msra.mxu0 0
  %156 = vmatprep.subr.bf16.mxu0 0
  %157 = vmatpush1.bf16.msra.mxu0 0
  %158 = vmatprep.mubr.bf16.mxu0 0
  %159 = vmatmul.mubr.bf16.gmra.mrb[0].mxu0 %v112
  %v160 = vpop.f32.mrb[0].mxu0
  %v161 = vadd.f32 0.0, %v160
  %v162 = vpop.f32.mrb[0].mxu0
  %v163 = vpop.f32.mrb[0].mxu0
  %v164 = vadd.f32 0.0, %v163
  %v165 = vpop.f32.mrb[0].mxu0
  %166 = vmatprep.mubr.bf16.mxu0 0
  %167 = vmatmul.mubr.bf16.gmra.mrb[0].mxu0 %v115
  %v168 = vpop.f32.mrb[0].mxu0
  %v169 = vadd.f32 0.0, %v168
  %v170 = vpop.f32.mrb[0].mxu0
  %v171 = vpop.f32.mrb[0].mxu0
  %v172 = vadd.f32 0.0, %v171
  %v173 = vpop.f32.mrb[0].mxu0
  %174 = vmatprep.mubr.bf16.mxu0 0
  %175 = vmatmul.mubr.bf16.gmra.mrb[0].mxu0 %v118
  %v176 = vpop.f32.mrb[0].mxu0
  %v177 = vadd.f32 0.0, %v176
  %v178 = vpop.f32.mrb[0].mxu0
  %v179 = vpop.f32.mrb[0].mxu0
  %v180 = vadd.f32 0.0, %v179
  %v181 = vpop.f32.mrb[0].mxu0
  %182 = vmatprep.mubr.bf16.mxu0 0
  %183 = vmatmul.mubr.bf16.gmra.mrb[0].mxu0 %v121
  %v184 = vpop.f32.mrb[0].mxu0
  %v185 = vadd.f32 0.0, %v184
  %v186 = vpop.f32.mrb[0].mxu0
  %v187 = vpop.f32.mrb[0].mxu0
  %v188 = vadd.f32 0.0, %v187
  %v189 = vpop.f32.mrb[0].mxu0
  %190 = vmatprep.mubr.bf16.mxu0 0
  %191 = vmatmul.mubr.bf16.gmra.mrb[0].mxu0 %v124
  %v192 = vpop.f32.mrb[0].mxu0
  %v193 = vadd.f32 0.0, %v192
  %v194 = vpop.f32.mrb[0].mxu0
  %v195 = vpop.f32.mrb[0].mxu0
  %v196 = vadd.f32 0.0, %v195
  %v197 = vpop.f32.mrb[0].mxu0
  %198 = vdwg.mxu0
  %v199 = vadd.f32 %v33, %v161
  %v200 = vadd.f32 %v34, %v164
  %v201 = vadd.f32 %v35, %v169
  %v202 = vadd.f32 %v36, %v172
  %v203 = vadd.f32 %v37, %v177
  %v204 = vadd.f32 %v38, %v180
  %v205 = vadd.f32 %v39, %v185
  %v206 = vadd.f32 %v40, %v188
  %v207 = vadd.f32 %v41, %v193
  %v208 = vadd.f32 %v42, %v196
  %209 = vst.msk [vmem:[#allocation2] sm:$0xff] %vm110, %v199
  %210 = vst.msk [vmem:[#allocation2 + $0x8] sm:$0xff] %vm110, %v200
  %211 = vst.msk [vmem:[#allocation2 + $0x10] sm:$0xff] %vm110, %v201
  %212 = vst.msk [vmem:[#allocation2 + $0x18] sm:$0xff] %vm110, %v202
  %213 = vst.msk [vmem:[#allocation2 + $0x20] sm:$0xff] %vm110, %v203
  %214 = vst.msk [vmem:[#allocation2 + $0x28] sm:$0xff] %vm110, %v204
  %215 = vst.msk [vmem:[#allocation2 + $0x30] sm:$0xff] %vm110, %v205
  %216 = vst.msk [vmem:[#allocation2 + $0x38] sm:$0xff] %vm110, %v206
  %217 = vst.msk [vmem:[#allocation2 + $0x40] sm:$0xff] %vm110, %v207
  %218 = vst.msk [vmem:[#allocation2 + $0x48] sm:$0xff] %vm110, %v208
  // Predicated region
  $region22: #{forward.39} parent=0 // pred_check
    %p219 = pneg %p18
  $region23: #{forward.39} parent=0 // pred_check_branch
    %221 = sbr.rel (%p219) target = $region25
  $region24: #{forward.39} parent=0 // pred_region
    %v222 = vld [vmem:[#allocation2] sm:$0xff]
    %v223 = vld [vmem:[#allocation2 + $0x8] sm:$0xff]
    %v224 = vld [vmem:[#allocation2 + $0x10] sm:$0xff]
    %v225 = vld [vmem:[#allocation2 + $0x18] sm:$0xff]
    %v226 = vld [vmem:[#allocation2 + $0x20] sm:$0xff]
    %v227 = vld [vmem:[#allocation2 + $0x28] sm:$0xff]
    %v228 = vld [vmem:[#allocation2 + $0x30] sm:$0xff]
    %v229 = vld [vmem:[#allocation2 + $0x38] sm:$0xff]
    %v230 = vld [vmem:[#allocation2 + $0x40] sm:$0xff]
    %v231 = vld [vmem:[#allocation2 + $0x48] sm:$0xff]
    %v232 = vld [vmem:[%s2] sm:$0x1]
    %v234 = vlaneseq
    %v235 = vshrl.u32 %v234, 7
    %v236 = vsub.s32 0, %v235
    %v237 = vrot.slane %v232, %v236
    %v239 = vadd.f32 %v222, %v237
    %v240 = vadd.f32 %v223, %v237
    %v241 = vadd.f32 %v224, %v237
    %v242 = vadd.f32 %v225, %v237
    %v243 = vadd.f32 %v226, %v237
    %v244 = vadd.f32 %v227, %v237
    %v245 = vadd.f32 %v228, %v237
    %v246 = vadd.f32 %v229, %v237
    %v247 = vadd.f32 %v230, %v237
    %v248 = vadd.f32 %v231, %v237
    %v249 = vld [vmem:[%s3] sm:$0xff]
    %v250 = vld [vmem:[%s3 + $0x8] sm:$0xff]
    %v251 = vld [vmem:[%s3 + $0x10] sm:$0xff]
    %v252 = vld [vmem:[%s3 + $0x18] sm:$0xff]
    %v253 = vld [vmem:[%s3 + $0x20] sm:$0xff]
    %v254 = vld [vmem:[%s3 + $0x28] sm:$0xff]
    %v255 = vld [vmem:[%s3 + $0x30] sm:$0xff]
    %v256 = vld [vmem:[%s3 + $0x38] sm:$0xff]
    %v257 = vld [vmem:[%s3 + $0x40] sm:$0xff]
    %v258 = vld [vmem:[%s3 + $0x48] sm:$0xff]
    %v259 = vadd.f32 %v239, %v249
    %v260 = vadd.f32 %v240, %v250
    %v261 = vadd.f32 %v241, %v251
    %v262 = vadd.f32 %v242, %v252
    %v263 = vadd.f32 %v243, %v253
    %v264 = vadd.f32 %v244, %v254
    %v265 = vadd.f32 %v245, %v255
    %v266 = vadd.f32 %v246, %v256
    %v267 = vadd.f32 %v247, %v257
    %v268 = vadd.f32 %v248, %v258
    %269 = vst.msk [vmem:[%s4] sm:$0xff] %vm110, %v259
    %270 = vst.msk [vmem:[%s4 + $0x8] sm:$0xff] %vm110, %v260
    %271 = vst.msk [vmem:[%s4 + $0x10] sm:$0xff] %vm110, %v261
    %272 = vst.msk [vmem:[%s4 + $0x18] sm:$0xff] %vm110, %v262
    %273 = vst.msk [vmem:[%s4 + $0x20] sm:$0xff] %vm110, %v263
    %274 = vst.msk [vmem:[%s4 + $0x28] sm:$0xff] %vm110, %v264
    %275 = vst.msk [vmem:[%s4 + $0x30] sm:$0xff] %vm110, %v265
    %276 = vst.msk [vmem:[%s4 + $0x38] sm:$0xff] %vm110, %v266
    %277 = vst.msk [vmem:[%s4 + $0x40] sm:$0xff] %vm110, %v267
    %278 = vst.msk [vmem:[%s4 + $0x48] sm:$0xff] %vm110, %v268
  $region25: #{forward.39} parent=0 // pred_fallthru
    _
  // Predicated region
  $region26: #{forward.39} parent=0 // pred_check
    _
  $region27: #{forward.39} parent=0 // pred_check_branch
    %280 = sbr.rel (0) target = $region29
  $region28: #{forward.39} parent=0 // pred_region
    _
  $region29: #{forward.39} parent=0 // pred_fallthru
    _
  // Predicated region
  $region30: #{forward.39} parent=0 // pred_check
    _
  $region31: #{forward.39} parent=0 // pred_check_branch
    %282 = sbr.rel (0) target = $region33
  $region32: #{forward.39} parent=0 // pred_region
    _
  $region33: #{forward.39} parent=0 // pred_fallthru
    _

// kernel: forward.41
$region0: #{forward.41}
  #allocation0 [shape = 'u32[]', space=smem, size = 0x4, offset = 0x4, fixed_abs, tag = 'smem constant byte address 0x4 - core index']
  #allocation1 [shape = 'u32[144,128]{1,0:T(1,128)}', space=vmem, size = 0x12000, scoped, tag = 'internal scratch']
  #allocation2 [shape = 'f32[80,256]{1,0:T(8,128)}', space=vmem, size = 0x14000, scoped, tag = 'scratch operand']
  %s0 = inlined_call_operand.vmem [shape: bf16[80,64], index: 0, kind: input, shape index: {}]
  %s1 = inlined_call_operand.vmem [shape: bf16[64,256], index: 1, kind: input, shape index: {}]
  %s2 = inlined_call_operand.vmem [shape: f32[1,256], index: 2, kind: input, shape index: {}]
  %s3 = inlined_call_operand.vmem [shape: bf16[80,256], index: 3, kind: output, shape index: {}]
  %s4 = sld [smem:[#allocation0]]
  $region30: #{forward.41} parent=0
    _
  %s6 = ssub.s32 1, %s4
  %s7 = scalar_select 0, %s6, %s4
  // Predicated region
  $region2: #{forward.41} parent=0 // pred_check
    _
  $region3: #{forward.41} parent=0 // pred_check_branch
    %9 = sbr.rel (0) target = $region5
  $region4: #{forward.41} parent=0 // pred_region
    _
  $region5: #{forward.41} parent=0 // pred_fallthru
    _
  // Predicated region
  $region6: #{forward.41} parent=0 // pred_check
    _
  $region7: #{forward.41} parent=0 // pred_check_branch
    %11 = sbr.rel (0) target = $region9
  $region8: #{forward.41} parent=0 // pred_region
    _
  $region9: #{forward.41} parent=0 // pred_fallthru
    _
  // Predicated region
  $region10: #{forward.41} parent=0 // pred_check
    _
  $region11: #{forward.41} parent=0 // pred_check_branch
    %13 = sbr.rel (0) target = $region13
  $region12: #{forward.41} parent=0 // pred_region
    _
  $region13: #{forward.41} parent=0 // pred_fallthru
    _
  %p15 = scmp.eq.s32.totalorder 0, 0
  // Predicated region
  $region14: #{forward.41} parent=0 // pred_check
    %p16 = pneg %p15
  $region15: #{forward.41} parent=0 // pred_check_branch
    %18 = sbr.rel (%p16) target = $region17
  $region16: #{forward.41} parent=0 // pred_region
    %19 = vst [vmem:[#allocation2] sm:$0xff] 0.0
    %20 = vst [vmem:[#allocation2 + $0x8] sm:$0xff] 0.0
    %21 = vst [vmem:[#allocation2 + $0x10] sm:$0xff] 0.0
    %22 = vst [vmem:[#allocation2 + $0x18] sm:$0xff] 0.0
    %23 = vst [vmem:[#allocation2 + $0x20] sm:$0xff] 0.0
    %24 = vst [vmem:[#allocation2 + $0x28] sm:$0xff] 0.0
    %25 = vst [vmem:[#allocation2 + $0x30] sm:$0xff] 0.0
    %26 = vst [vmem:[#allocation2 + $0x38] sm:$0xff] 0.0
    %27 = vst [vmem:[#allocation2 + $0x40] sm:$0xff] 0.0
    %28 = vst [vmem:[#allocation2 + $0x48] sm:$0xff] 0.0
    %29 = vst [vmem:[#allocation2 + $0x50] sm:$0xff] 0.0
    %30 = vst [vmem:[#allocation2 + $0x58] sm:$0xff] 0.0
    %31 = vst [vmem:[#allocation2 + $0x60] sm:$0xff] 0.0
    %32 = vst [vmem:[#allocation2 + $0x68] sm:$0xff] 0.0
    %33 = vst [vmem:[#allocation2 + $0x70] sm:$0xff] 0.0
    %34 = vst [vmem:[#allocation2 + $0x78] sm:$0xff] 0.0
    %35 = vst [vmem:[#allocation2 + $0x80] sm:$0xff] 0.0
    %36 = vst [vmem:[#allocation2 + $0x88] sm:$0xff] 0.0
    %37 = vst [vmem:[#allocation2 + $0x90] sm:$0xff] 0.0
    %38 = vst [vmem:[#allocation2 + $0x98] sm:$0xff] 0.0
  $region17: #{forward.41} parent=0 // pred_fallthru
    _
  %v39 = vld [vmem:[#allocation2] sm:$0xff]
  %v40 = vld [vmem:[#allocation2 + $0x8] sm:$0xff]
  %v41 = vld [vmem:[#allocation2 + $0x10] sm:$0xff]
  %v42 = vld [vmem:[#allocation2 + $0x18] sm:$0xff]
  %v43 = vld [vmem:[#allocation2 + $0x20] sm:$0xff]
  %v44 = vld [vmem:[#allocation2 + $0x28] sm:$0xff]
  %v45 = vld [vmem:[#allocation2 + $0x30] sm:$0xff]
  %v46 = vld [vmem:[#allocation2 + $0x38] sm:$0xff]
  %v47 = vld [vmem:[#allocation2 + $0x40] sm:$0xff]
  %v48 = vld [vmem:[#allocation2 + $0x48] sm:$0xff]
  %v49 = vld [vmem:[#allocation2 + $0x50] sm:$0xff]
  %v50 = vld [vmem:[#allocation2 + $0x58] sm:$0xff]
  %v51 = vld [vmem:[#allocation2 + $0x60] sm:$0xff]
  %v52 = vld [vmem:[#allocation2 + $0x68] sm:$0xff]
  %v53 = vld [vmem:[#allocation2 + $0x70] sm:$0xff]
  %v54 = vld [vmem:[#allocation2 + $0x78] sm:$0xff]
  %v55 = vld [vmem:[#allocation2 + $0x80] sm:$0xff]
  %v56 = vld [vmem:[#allocation2 + $0x88] sm:$0xff]
  %v57 = vld [vmem:[#allocation2 + $0x90] sm:$0xff]
  %v58 = vld [vmem:[#allocation2 + $0x98] sm:$0xff]
  %v59 = vld [vmem:[%s0] sm:$0xf]
  %v60 = vld [vmem:[%s0 + $0x4] sm:$0xf]
  %v61 = vld [vmem:[%s0 + $0x8] sm:$0xf]
  %v62 = vld [vmem:[%s0 + $0xc] sm:$0xf]
  %v63 = vld [vmem:[%s0 + $0x10] sm:$0xf]
  %v64 = vld [vmem:[%s0 + $0x14] sm:$0xf]
  %v65 = vld [vmem:[%s0 + $0x18] sm:$0xf]
  %v66 = vld [vmem:[%s0 + $0x1c] sm:$0xf]
  %v67 = vld [vmem:[%s0 + $0x20] sm:$0xf]
  %v68 = vld [vmem:[%s0 + $0x24] sm:$0xf]
  %v69 = vld [vmem:[%s1] sm:$0xff]
  %v70 = vld [vmem:[%s1 + $0x8] sm:$0xff]
  %v71 = vld [vmem:[%s1 + $0x10] sm:$0xff]
  %v72 = vld [vmem:[%s1 + $0x18] sm:$0xff]
  %v73 = vld [vmem:[%s1 + $0x20] sm:$0xff]
  %v74 = vld [vmem:[%s1 + $0x28] sm:$0xff]
  %v75 = vld [vmem:[%s1 + $0x30] sm:$0xff]
  %v76 = vld [vmem:[%s1 + $0x38] sm:$0xff]
  %v87 = vunpack.c.l.b16 %v59
  %v88 = vunpack.c.l.b16 %v60
  %v89 = vunpack.c.l.b16 %v61
  %v90 = vunpack.c.l.b16 %v62
  %v91 = vunpack.c.l.b16 %v63
  %v92 = vunpack.c.l.b16 %v64
  %v93 = vunpack.c.l.b16 %v65
  %v94 = vunpack.c.l.b16 %v66
  %v95 = vunpack.c.l.b16 %v67
  %v96 = vunpack.c.l.b16 %v68
  %v97 = vpack.c.b16 %v88, %v87
  %v98 = vpack.c.b16 %v90, %v89
  %v99 = vpack.c.b16 %v92, %v91
  %v100 = vpack.c.b16 %v94, %v93
  %v101 = vpack.c.b16 %v96, %v95
  %v110 = vunpack.c.l.b16 %v69
  %v111 = vunpack.c.h.b16 %v69
  %v112 = vunpack.c.l.b16 %v70
  %v113 = vunpack.c.h.b16 %v70
  %v114 = vunpack.c.l.b16 %v71
  %v115 = vunpack.c.h.b16 %v71
  %v116 = vunpack.c.l.b16 %v72
  %v117 = vunpack.c.h.b16 %v72
  %v118 = vunpack.c.l.b16 %v73
  %v119 = vunpack.c.h.b16 %v73
  %v120 = vunpack.c.l.b16 %v74
  %v121 = vunpack.c.h.b16 %v74
  %v122 = vunpack.c.l.b16 %v75
  %v123 = vunpack.c.h.b16 %v75
  %v124 = vunpack.c.l.b16 %v76
  %v125 = vunpack.c.h.b16 %v76
  %v126 = vpack.c.b16 %v112, %v110
  %v127 = vpack.c.b16 %v113, %v111
  %v128 = vpack.c.b16 %v116, %v114
  %v129 = vpack.c.b16 %v117, %v115
  %v130 = vpack.c.b16 %v120, %v118
  %v131 = vpack.c.b16 %v121, %v119
  %v132 = vpack.c.b16 %v124, %v122
  %v133 = vpack.c.b16 %v125, %v123
  %vm142 = vcmask 523264
  %v144 = vsel %vm142, %v97, 0
  %v147 = vsel %vm142, %v98, 0
  %v150 = vsel %vm142, %v99, 0
  %v153 = vsel %vm142, %v100, 0
  %v156 = vsel %vm142, %v101, 0
  %158 = vmatprep.subr.bf16.mxu0 %v127
  %159 = vmatpush1.bf16.msra.mxu0 %v126
  %160 = vmatprep.subr.bf16.mxu0 %v129
  %161 = vmatpush1.bf16.msra.mxu0 %v128
  %162 = vmatprep.subr.bf16.mxu0 %v131
  %163 = vmatpush1.bf16.msra.mxu0 %v130
  %164 = vmatprep.subr.bf16.mxu0 %v133
  %165 = vmatpush1.bf16.msra.mxu0 %v132
  %166 = vmatprep.subr.bf16.mxu0 0
  %167 = vmatpush1.bf16.msra.mxu0 0
  %168 = vmatprep.subr.bf16.mxu0 0
  %169 = vmatpush1.bf16.msra.mxu0 0
  %170 = vmatprep.subr.bf16.mxu0 0
  %171 = vmatpush1.bf16.msra.mxu0 0
  %172 = vmatprep.subr.bf16.mxu0 0
  %173 = vmatpush1.bf16.msra.mxu0 0
  %174 = vmatprep.subr.bf16.mxu0 0
  %175 = vmatpush1.bf16.msra.mxu0 0
  %176 = vmatprep.subr.bf16.mxu0 0
  %177 = vmatpush1.bf16.msra.mxu0 0
  %178 = vmatprep.subr.bf16.mxu0 0
  %179 = vmatpush1.bf16.msra.mxu0 0
  %180 = vmatprep.subr.bf16.mxu0 0
  %181 = vmatpush1.bf16.msra.mxu0 0
  %182 = vmatprep.subr.bf16.mxu0 0
  %183 = vmatpush1.bf16.msra.mxu0 0
  %184 = vmatprep.subr.bf16.mxu0 0
  %185 = vmatpush1.bf16.msra.mxu0 0
  %186 = vmatprep.subr.bf16.mxu0 0
  %187 = vmatpush1.bf16.msra.mxu0 0
  %188 = vmatprep.subr.bf16.mxu0 0
  %189 = vmatpush1.bf16.msra.mxu0 0
  %190 = vmatprep.mubr.bf16.mxu0 0
  %191 = vmatmul.mubr.bf16.gmra.mrb[0].mxu0 %v144
  %v192 = vpop.f32.mrb[0].mxu0
  %v193 = vadd.f32 0.0, %v192
  %v194 = vpop.f32.mrb[0].mxu0
  %v195 = vadd.f32 0.0, %v194
  %v196 = vpop.f32.mrb[0].mxu0
  %v197 = vadd.f32 0.0, %v196
  %v198 = vpop.f32.mrb[0].mxu0
  %v199 = vadd.f32 0.0, %v198
  %200 = vmatprep.mubr.bf16.mxu0 0
  %201 = vmatmul.mubr.bf16.gmra.mrb[0].mxu0 %v147
  %v202 = vpop.f32.mrb[0].mxu0
  %v203 = vadd.f32 0.0, %v202
  %v204 = vpop.f32.mrb[0].mxu0
  %v205 = vadd.f32 0.0, %v204
  %v206 = vpop.f32.mrb[0].mxu0
  %v207 = vadd.f32 0.0, %v206
  %v208 = vpop.f32.mrb[0].mxu0
  %v209 = vadd.f32 0.0, %v208
  %210 = vmatprep.mubr.bf16.mxu0 0
  %211 = vmatmul.mubr.bf16.gmra.mrb[0].mxu0 %v150
  %v212 = vpop.f32.mrb[0].mxu0
  %v213 = vadd.f32 0.0, %v212
  %v214 = vpop.f32.mrb[0].mxu0
  %v215 = vadd.f32 0.0, %v214
  %v216 = vpop.f32.mrb[0].mxu0
  %v217 = vadd.f32 0.0, %v216
  %v218 = vpop.f32.mrb[0].mxu0
  %v219 = vadd.f32 0.0, %v218
  %220 = vmatprep.mubr.bf16.mxu0 0
  %221 = vmatmul.mubr.bf16.gmra.mrb[0].mxu0 %v153
  %v222 = vpop.f32.mrb[0].mxu0
  %v223 = vadd.f32 0.0, %v222
  %v224 = vpop.f32.mrb[0].mxu0
  %v225 = vadd.f32 0.0, %v224
  %v226 = vpop.f32.mrb[0].mxu0
  %v227 = vadd.f32 0.0, %v226
  %v228 = vpop.f32.mrb[0].mxu0
  %v229 = vadd.f32 0.0, %v228
  %230 = vmatprep.mubr.bf16.mxu0 0
  %231 = vmatmul.mubr.bf16.gmra.mrb[0].mxu0 %v156
  %v232 = vpop.f32.mrb[0].mxu0
  %v233 = vadd.f32 0.0, %v232
  %v234 = vpop.f32.mrb[0].mxu0
  %v235 = vadd.f32 0.0, %v234
  %v236 = vpop.f32.mrb[0].mxu0
  %v237 = vadd.f32 0.0, %v236
  %v238 = vpop.f32.mrb[0].mxu0
  %v239 = vadd.f32 0.0, %v238
  %240 = vdwg.mxu0
  %v241 = vadd.f32 %v39, %v193
  %v242 = vadd.f32 %v40, %v195
  %v243 = vadd.f32 %v41, %v197
  %v244 = vadd.f32 %v42, %v199
  %v245 = vadd.f32 %v43, %v203
  %v246 = vadd.f32 %v44, %v205
  %v247 = vadd.f32 %v45, %v207
  %v248 = vadd.f32 %v46, %v209
  %v249 = vadd.f32 %v47, %v213
  %v250 = vadd.f32 %v48, %v215
  %v251 = vadd.f32 %v49, %v217
  %v252 = vadd.f32 %v50, %v219
  %v253 = vadd.f32 %v51, %v223
  %v254 = vadd.f32 %v52, %v225
  %v255 = vadd.f32 %v53, %v227
  %v256 = vadd.f32 %v54, %v229
  %v257 = vadd.f32 %v55, %v233
  %v258 = vadd.f32 %v56, %v235
  %v259 = vadd.f32 %v57, %v237
  %v260 = vadd.f32 %v58, %v239
  %261 = vst [vmem:[#allocation2] sm:$0xff] %v241
  %262 = vst [vmem:[#allocation2 + $0x8] sm:$0xff] %v242
  %263 = vst [vmem:[#allocation2 + $0x10] sm:$0xff] %v243
  %264 = vst [vmem:[#allocation2 + $0x18] sm:$0xff] %v244
  %265 = vst [vmem:[#allocation2 + $0x20] sm:$0xff] %v245
  %266 = vst [vmem:[#allocation2 + $0x28] sm:$0xff] %v246
  %267 = vst [vmem:[#allocation2 + $0x30] sm:$0xff] %v247
  %268 = vst [vmem:[#allocation2 + $0x38] sm:$0xff] %v248
  %269 = vst [vmem:[#allocation2 + $0x40] sm:$0xff] %v249
  %270 = vst [vmem:[#allocation2 + $0x48] sm:$0xff] %v250
  %271 = vst [vmem:[#allocation2 + $0x50] sm:$0xff] %v251
  %272 = vst [vmem:[#allocation2 + $0x58] sm:$0xff] %v252
  %273 = vst [vmem:[#allocation2 + $0x60] sm:$0xff] %v253
  %274 = vst [vmem:[#allocation2 + $0x68] sm:$0xff] %v254
  %275 = vst [vmem:[#allocation2 + $0x70] sm:$0xff] %v255
  %276 = vst [vmem:[#allocation2 + $0x78] sm:$0xff] %v256
  %277 = vst [vmem:[#allocation2 + $0x80] sm:$0xff] %v257
  %278 = vst [vmem:[#allocation2 + $0x88] sm:$0xff] %v258
  %279 = vst [vmem:[#allocation2 + $0x90] sm:$0xff] %v259
  %280 = vst [vmem:[#allocation2 + $0x98] sm:$0xff] %v260
  // Predicated region
  $region18: #{forward.41} parent=0 // pred_check
    %p281 = pneg %p15
  $region19: #{forward.41} parent=0 // pred_check_branch
    %283 = sbr.rel (%p281) target = $region21
  $region20: #{forward.41} parent=0 // pred_region
    %v284 = vld [vmem:[#allocation2] sm:$0xff]
    %v285 = vld [vmem:[#allocation2 + $0x8] sm:$0xff]
    %v286 = vld [vmem:[#allocation2 + $0x10] sm:$0xff]
    %v287 = vld [vmem:[#allocation2 + $0x18] sm:$0xff]
    %v288 = vld [vmem:[#allocation2 + $0x20] sm:$0xff]
    %v289 = vld [vmem:[#allocation2 + $0x28] sm:$0xff]
    %v290 = vld [vmem:[#allocation2 + $0x30] sm:$0xff]
    %v291 = vld [vmem:[#allocation2 + $0x38] sm:$0xff]
    %v292 = vld [vmem:[#allocation2 + $0x40] sm:$0xff]
    %v293 = vld [vmem:[#allocation2 + $0x48] sm:$0xff]
    %v294 = vld [vmem:[#allocation2 + $0x50] sm:$0xff]
    %v295 = vld [vmem:[#allocation2 + $0x58] sm:$0xff]
    %v296 = vld [vmem:[#allocation2 + $0x60] sm:$0xff]
    %v297 = vld [vmem:[#allocation2 + $0x68] sm:$0xff]
    %v298 = vld [vmem:[#allocation2 + $0x70] sm:$0xff]
    %v299 = vld [vmem:[#allocation2 + $0x78] sm:$0xff]
    %v300 = vld [vmem:[#allocation2 + $0x80] sm:$0xff]
    %v301 = vld [vmem:[#allocation2 + $0x88] sm:$0xff]
    %v302 = vld [vmem:[#allocation2 + $0x90] sm:$0xff]
    %v303 = vld [vmem:[#allocation2 + $0x98] sm:$0xff]
    %v304 = vld [vmem:[%s2] sm:$0x3]
    %v306 = vlaneseq
    %v307 = vshrl.u32 %v306, 7
    %v308 = vsub.s32 0, %v307
    %v309 = vrot.slane %v304, %v308
    %v310 = vlaneseq
    %v311 = vshrl.u32 %v310, 7
    %v312 = vsub.s32 1, %v311
    %v313 = vrot.slane %v304, %v312
    %v316 = vadd.f32 %v284, %v309
    %v317 = vadd.f32 %v285, %v313
    %v318 = vadd.f32 %v286, %v309
    %v319 = vadd.f32 %v287, %v313
    %v320 = vadd.f32 %v288, %v309
    %v321 = vadd.f32 %v289, %v313
    %v322 = vadd.f32 %v290, %v309
    %v323 = vadd.f32 %v291, %v313
    %v324 = vadd.f32 %v292, %v309
    %v325 = vadd.f32 %v293, %v313
    %v326 = vadd.f32 %v294, %v309
    %v327 = vadd.f32 %v295, %v313
    %v328 = vadd.f32 %v296, %v309
    %v329 = vadd.f32 %v297, %v313
    %v330 = vadd.f32 %v298, %v309
    %v331 = vadd.f32 %v299, %v313
    %v332 = vadd.f32 %v300, %v309
    %v333 = vadd.f32 %v301, %v313
    %v334 = vadd.f32 %v302, %v309
    %v335 = vadd.f32 %v303, %v313
    %v336 = vmul.f32 %v316, 0.5
    %v337 = vmul.f32 %v317, 0.5
    %v338 = vmul.f32 %v318, 0.5
    %v339 = vmul.f32 %v319, 0.5
    %v340 = vmul.f32 %v320, 0.5
    %v341 = vmul.f32 %v321, 0.5
    %v342 = vmul.f32 %v322, 0.5
    %v343 = vmul.f32 %v323, 0.5
    %v344 = vmul.f32 %v324, 0.5
    %v345 = vmul.f32 %v325, 0.5
    %v346 = vmul.f32 %v326, 0.5
    %v347 = vmul.f32 %v327, 0.5
    %v348 = vmul.f32 %v328, 0.5
    %v349 = vmul.f32 %v329, 0.5
    %v350 = vmul.f32 %v330, 0.5
    %v351 = vmul.f32 %v331, 0.5
    %v352 = vmul.f32 %v332, 0.5
    %v353 = vmul.f32 %v333, 0.5
    %v354 = vmul.f32 %v334, 0.5
    %v355 = vmul.f32 %v335, 0.5
    %v356 = vmul.f32 %v316, 0.70710677
    %v357 = vmul.f32 %v317, 0.70710677
    %v358 = vmul.f32 %v318, 0.70710677
    %v359 = vmul.f32 %v319, 0.70710677
    %v360 = vmul.f32 %v320, 0.70710677
    %v361 = vmul.f32 %v321, 0.70710677
    %v362 = vmul.f32 %v322, 0.70710677
    %v363 = vmul.f32 %v323, 0.70710677
    %v364 = vmul.f32 %v324, 0.70710677
    %v365 = vmul.f32 %v325, 0.70710677
    %v366 = vmul.f32 %v326, 0.70710677
    %v367 = vmul.f32 %v327, 0.70710677
    %v368 = vmul.f32 %v328, 0.70710677
    %v369 = vmul.f32 %v329, 0.70710677
    %v370 = vmul.f32 %v330, 0.70710677
    %v371 = vmul.f32 %v331, 0.70710677
    %v372 = vmul.f32 %v332, 0.70710677
    %v373 = vmul.f32 %v333, 0.70710677
    %v374 = vmul.f32 %v334, 0.70710677
    %v375 = vmul.f32 %v335, 0.70710677
    %v376 = verf.f32.pop %v356
    %v377 = verf.f32.pop %v357
    %v378 = verf.f32.pop %v358
    %v379 = verf.f32.pop %v359
    %v380 = verf.f32.pop %v360
    %v381 = verf.f32.pop %v361
    %v382 = verf.f32.pop %v362
    %v383 = verf.f32.pop %v363
    %v384 = verf.f32.pop %v364
    %v385 = verf.f32.pop %v365
    %v386 = verf.f32.pop %v366
    %v387 = verf.f32.pop %v367
    %v388 = verf.f32.pop %v368
    %v389 = verf.f32.pop %v369
    %v390 = verf.f32.pop %v370
    %v391 = verf.f32.pop %v371
    %v392 = verf.f32.pop %v372
    %v393 = verf.f32.pop %v373
    %v394 = verf.f32.pop %v374
    %v395 = verf.f32.pop %v375
    %v396 = vadd.f32 %v376, 1.0
    %v397 = vadd.f32 %v377, 1.0
    %v398 = vadd.f32 %v378, 1.0
    %v399 = vadd.f32 %v379, 1.0
    %v400 = vadd.f32 %v380, 1.0
    %v401 = vadd.f32 %v381, 1.0
    %v402 = vadd.f32 %v382, 1.0
    %v403 = vadd.f32 %v383, 1.0
    %v404 = vadd.f32 %v384, 1.0
    %v405 = vadd.f32 %v385, 1.0
    %v406 = vadd.f32 %v386, 1.0
    %v407 = vadd.f32 %v387, 1.0
    %v408 = vadd.f32 %v388, 1.0
    %v409 = vadd.f32 %v389, 1.0
    %v410 = vadd.f32 %v390, 1.0
    %v411 = vadd.f32 %v391, 1.0
    %v412 = vadd.f32 %v392, 1.0
    %v413 = vadd.f32 %v393, 1.0
    %v414 = vadd.f32 %v394, 1.0
    %v415 = vadd.f32 %v395, 1.0
    %v416 = vmul.f32 %v336, %v396
    %v417 = vmul.f32 %v337, %v397
    %v418 = vmul.f32 %v338, %v398
    %v419 = vmul.f32 %v339, %v399
    %v420 = vmul.f32 %v340, %v400
    %v421 = vmul.f32 %v341, %v401
    %v422 = vmul.f32 %v342, %v402
    %v423 = vmul.f32 %v343, %v403
    %v424 = vmul.f32 %v344, %v404
    %v425 = vmul.f32 %v345, %v405
    %v426 = vmul.f32 %v346, %v406
    %v427 = vmul.f32 %v347, %v407
    %v428 = vmul.f32 %v348, %v408
    %v429 = vmul.f32 %v349, %v409
    %v430 = vmul.f32 %v350, %v410
    %v431 = vmul.f32 %v351, %v411
    %v432 = vmul.f32 %v352, %v412
    %v433 = vmul.f32 %v353, %v413
    %v434 = vmul.f32 %v354, %v414
    %v435 = vmul.f32 %v355, %v415
    %v436 = vpack.c.bf16 %v418, %v416
    %v437 = vpack.c.bf16 %v419, %v417
    %v438 = vpack.c.bf16 %v422, %v420
    %v439 = vpack.c.bf16 %v423, %v421
    %v440 = vpack.c.bf16 %v426, %v424
    %v441 = vpack.c.bf16 %v427, %v425
    %v442 = vpack.c.bf16 %v430, %v428
    %v443 = vpack.c.bf16 %v431, %v429
    %v444 = vpack.c.bf16 %v434, %v432
    %v445 = vpack.c.bf16 %v435, %v433
    %v456 = vunpack.c.l.b16 %v436
    %v457 = vunpack.c.l.b16 %v437
    %v458 = vunpack.c.h.b16 %v436
    %v459 = vunpack.c.h.b16 %v437
    %v460 = vunpack.c.l.b16 %v438
    %v461 = vunpack.c.l.b16 %v439
    %v462 = vunpack.c.h.b16 %v438
    %v463 = vunpack.c.h.b16 %v439
    %v464 = vunpack.c.l.b16 %v440
    %v465 = vunpack.c.l.b16 %v441
    %v466 = vunpack.c.h.b16 %v440
    %v467 = vunpack.c.h.b16 %v441
    %v468 = vunpack.c.l.b16 %v442
    %v469 = vunpack.c.l.b16 %v443
    %v470 = vunpack.c.h.b16 %v442
    %v471 = vunpack.c.h.b16 %v443
    %v472 = vunpack.c.l.b16 %v444
    %v473 = vunpack.c.l.b16 %v445
    %v474 = vunpack.c.h.b16 %v444
    %v475 = vunpack.c.h.b16 %v445
    %v476 = vpack.c.b16 %v457, %v456
    %v477 = vpack.c.b16 %v459, %v458
    %v478 = vpack.c.b16 %v461, %v460
    %v479 = vpack.c.b16 %v463, %v462
    %v480 = vpack.c.b16 %v465, %v464
    %v481 = vpack.c.b16 %v467, %v466
    %v482 = vpack.c.b16 %v469, %v468
    %v483 = vpack.c.b16 %v471, %v470
    %v484 = vpack.c.b16 %v473, %v472
    %v485 = vpack.c.b16 %v475, %v474
    %496 = vst [vmem:[%s3] sm:$0xff] %v476
    %497 = vst [vmem:[%s3 + $0x8] sm:$0xff] %v477
    %498 = vst [vmem:[%s3 + $0x10] sm:$0xff] %v478
    %499 = vst [vmem:[%s3 + $0x18] sm:$0xff] %v479
    %500 = vst [vmem:[%s3 + $0x20] sm:$0xff] %v480
    %501 = vst [vmem:[%s3 + $0x28] sm:$0xff] %v481
    %502 = vst [vmem:[%s3 + $0x30] sm:$0xff] %v482
    %503 = vst [vmem:[%s3 + $0x38] sm:$0xff] %v483
    %504 = vst [vmem:[%s3 + $0x40] sm:$0xff] %v484
    %505 = vst [vmem:[%s3 + $0x48] sm:$0xff] %v485
  $region21: #{forward.41} parent=0 // pred_fallthru
    _
  // Predicated region
  $region22: #{forward.41} parent=0 // pred_check
    _
  $region23: #{forward.41} parent=0 // pred_check_branch
    %507 = sbr.rel (0) target = $region25
  $region24: #{forward.41} parent=0 // pred_region
    _
  $region25: #{forward.41} parent=0 // pred_fallthru
    _
  // Predicated region
  $region26: #{forward.41} parent=0 // pred_check
    _
  $region27: #{forward.41} parent=0 // pred_check_branch
    %509 = sbr.rel (0) target = $region29
  $region28: #{forward.41} parent=0 // pred_region
    _
  $region29: #{forward.41} parent=0 // pred_fallthru
    _

// kernel: forward.42
$region0: #{forward.42}
  #allocation0 [shape = 'u32[]', space=smem, size = 0x4, offset = 0x4, fixed_abs, tag = 'smem constant byte address 0x4 - core index']
  #allocation1 [shape = 'u32[144,128]{1,0:T(1,128)}', space=vmem, size = 0x12000, scoped, tag = 'internal scratch']
  #allocation2 [shape = 'f32[80,64]{1,0:T(8,128)}', space=vmem, size = 0xa000, scoped, tag = 'scratch operand']
  %s0 = inlined_call_operand.vmem [shape: bf16[80,256], index: 0, kind: input, shape index: {}]
  %s1 = inlined_call_operand.vmem [shape: bf16[256,64], index: 1, kind: input, shape index: {}]
  %s2 = inlined_call_operand.vmem [shape: f32[1,64], index: 2, kind: input, shape index: {}]
  %s3 = inlined_call_operand.vmem [shape: f32[80,64], index: 3, kind: input, shape index: {}]
  %s4 = inlined_call_operand.vmem [shape: f32[80,64], index: 4, kind: output, shape index: {}]
  %s5 = sld [smem:[#allocation0]]
  $region34: #{forward.42} parent=0
    _
  %s7 = ssub.s32 1, %s5
  %s8 = scalar_select 0, %s7, %s5
  // Predicated region
  $region2: #{forward.42} parent=0 // pred_check
    _
  $region3: #{forward.42} parent=0 // pred_check_branch
    %10 = sbr.rel (0) target = $region5
  $region4: #{forward.42} parent=0 // pred_region
    _
  $region5: #{forward.42} parent=0 // pred_fallthru
    _
  // Predicated region
  $region6: #{forward.42} parent=0 // pred_check
    _
  $region7: #{forward.42} parent=0 // pred_check_branch
    %12 = sbr.rel (0) target = $region9
  $region8: #{forward.42} parent=0 // pred_region
    _
  $region9: #{forward.42} parent=0 // pred_fallthru
    _
  // Predicated region
  $region10: #{forward.42} parent=0 // pred_check
    _
  $region11: #{forward.42} parent=0 // pred_check_branch
    %14 = sbr.rel (0) target = $region13
  $region12: #{forward.42} parent=0 // pred_region
    _
  $region13: #{forward.42} parent=0 // pred_fallthru
    _
  // Predicated region
  $region14: #{forward.42} parent=0 // pred_check
    _
  $region15: #{forward.42} parent=0 // pred_check_branch
    %16 = sbr.rel (0) target = $region17
  $region16: #{forward.42} parent=0 // pred_region
    _
  $region17: #{forward.42} parent=0 // pred_fallthru
    _
  %p18 = scmp.eq.s32.totalorder 0, 0
  // Predicated region
  $region18: #{forward.42} parent=0 // pred_check
    %p19 = pneg %p18
  $region19: #{forward.42} parent=0 // pred_check_branch
    %21 = sbr.rel (%p19) target = $region21
  $region20: #{forward.42} parent=0 // pred_region
    %vm22 = vcmask 523264
    %23 = vst.msk [vmem:[#allocation2] sm:$0xff] %vm22, 0.0
    %24 = vst.msk [vmem:[#allocation2 + $0x8] sm:$0xff] %vm22, 0.0
    %25 = vst.msk [vmem:[#allocation2 + $0x10] sm:$0xff] %vm22, 0.0
    %26 = vst.msk [vmem:[#allocation2 + $0x18] sm:$0xff] %vm22, 0.0
    %27 = vst.msk [vmem:[#allocation2 + $0x20] sm:$0xff] %vm22, 0.0
    %28 = vst.msk [vmem:[#allocation2 + $0x28] sm:$0xff] %vm22, 0.0
    %29 = vst.msk [vmem:[#allocation2 + $0x30] sm:$0xff] %vm22, 0.0
    %30 = vst.msk [vmem:[#allocation2 + $0x38] sm:$0xff] %vm22, 0.0
    %31 = vst.msk [vmem:[#allocation2 + $0x40] sm:$0xff] %vm22, 0.0
    %32 = vst.msk [vmem:[#allocation2 + $0x48] sm:$0xff] %vm22, 0.0
  $region21: #{forward.42} parent=0 // pred_fallthru
    _
  %v33 = vld [vmem:[#allocation2] sm:$0xff]
  %v34 = vld [vmem:[#allocation2 + $0x8] sm:$0xff]
  %v35 = vld [vmem:[#allocation2 + $0x10] sm:$0xff]
  %v36 = vld [vmem:[#allocation2 + $0x18] sm:$0xff]
  %v37 = vld [vmem:[#allocation2 + $0x20] sm:$0xff]
  %v38 = vld [vmem:[#allocation2 + $0x28] sm:$0xff]
  %v39 = vld [vmem:[#allocation2 + $0x30] sm:$0xff]
  %v40 = vld [vmem:[#allocation2 + $0x38] sm:$0xff]
  %v41 = vld [vmem:[#allocation2 + $0x40] sm:$0xff]
  %v42 = vld [vmem:[#allocation2 + $0x48] sm:$0xff]
  %v43 = vld [vmem:[%s0] sm:$0xff]
  %v44 = vld [vmem:[%s0 + $0x8] sm:$0xff]
  %v45 = vld [vmem:[%s0 + $0x10] sm:$0xff]
  %v46 = vld [vmem:[%s0 + $0x18] sm:$0xff]
  %v47 = vld [vmem:[%s0 + $0x20] sm:$0xff]
  %v48 = vld [vmem:[%s0 + $0x28] sm:$0xff]
  %v49 = vld [vmem:[%s0 + $0x30] sm:$0xff]
  %v50 = vld [vmem:[%s0 + $0x38] sm:$0xff]
  %v51 = vld [vmem:[%s0 + $0x40] sm:$0xff]
  %v52 = vld [vmem:[%s0 + $0x48] sm:$0xff]
  %v53 = vld [vmem:[%s1] sm:$0xf]
  %v54 = vld [vmem:[%s1 + $0x4] sm:$0xf]
  %v55 = vld [vmem:[%s1 + $0x8] sm:$0xf]
  %v56 = vld [vmem:[%s1 + $0xc] sm:$0xf]
  %v57 = vld [vmem:[%s1 + $0x10] sm:$0xf]
  %v58 = vld [vmem:[%s1 + $0x14] sm:$0xf]
  %v59 = vld [vmem:[%s1 + $0x18] sm:$0xf]
  %v60 = vld [vmem:[%s1 + $0x1c] sm:$0xf]
  %v61 = vld [vmem:[%s1 + $0x20] sm:$0xf]
  %v62 = vld [vmem:[%s1 + $0x24] sm:$0xf]
  %v63 = vld [vmem:[%s1 + $0x28] sm:$0xf]
  %v64 = vld [vmem:[%s1 + $0x2c] sm:$0xf]
  %v65 = vld [vmem:[%s1 + $0x30] sm:$0xf]
  %v66 = vld [vmem:[%s1 + $0x34] sm:$0xf]
  %v67 = vld [vmem:[%s1 + $0x38] sm:$0xf]
  %v68 = vld [vmem:[%s1 + $0x3c] sm:$0xf]
  %v69 = vld [vmem:[%s1 + $0x40] sm:$0xf]
  %v70 = vld [vmem:[%s1 + $0x44] sm:$0xf]
  %v71 = vld [vmem:[%s1 + $0x48] sm:$0xf]
  %v72 = vld [vmem:[%s1 + $0x4c] sm:$0xf]
  %v73 = vld [vmem:[%s1 + $0x50] sm:$0xf]
  %v74 = vld [vmem:[%s1 + $0x54] sm:$0xf]
  %v75 = vld [vmem:[%s1 + $0x58] sm:$0xf]
  %v76 = vld [vmem:[%s1 + $0x5c] sm:$0xf]
  %v77 = vld [vmem:[%s1 + $0x60] sm:$0xf]
  %v78 = vld [vmem:[%s1 + $0x64] sm:$0xf]
  %v79 = vld [vmem:[%s1 + $0x68] sm:$0xf]
  %v80 = vld [vmem:[%s1 + $0x6c] sm:$0xf]
  %v81 = vld [vmem:[%s1 + $0x70] sm:$0xf]
  %v82 = vld [vmem:[%s1 + $0x74] sm:$0xf]
  %v83 = vld [vmem:[%s1 + $0x78] sm:$0xf]
  %v84 = vld [vmem:[%s1 + $0x7c] sm:$0xf]
  %v95 = vunpack.c.l.b16 %v43
  %v96 = vunpack.c.h.b16 %v43
  %v97 = vunpack.c.l.b16 %v44
  %v98 = vunpack.c.h.b16 %v44
  %v99 = vunpack.c.l.b16 %v45
  %v100 = vunpack.c.h.b16 %v45
  %v101 = vunpack.c.l.b16 %v46
  %v102 = vunpack.c.h.b16 %v46
  %v103 = vunpack.c.l.b16 %v47
  %v104 = vunpack.c.h.b16 %v47
  %v105 = vunpack.c.l.b16 %v48
  %v106 = vunpack.c.h.b16 %v48
  %v107 = vunpack.c.l.b16 %v49
  %v108 = vunpack.c.h.b16 %v49
  %v109 = vunpack.c.l.b16 %v50
  %v110 = vunpack.c.h.b16 %v50
  %v111 = vunpack.c.l.b16 %v51
  %v112 = vunpack.c.h.b16 %v51
  %v113 = vunpack.c.l.b16 %v52
  %v114 = vunpack.c.h.b16 %v52
  %v115 = vpack.c.b16 %v97, %v95
  %v116 = vpack.c.b16 %v98, %v96
  %v117 = vpack.c.b16 %v101, %v99
  %v118 = vpack.c.b16 %v102, %v100
  %v119 = vpack.c.b16 %v105, %v103
  %v120 = vpack.c.b16 %v106, %v104
  %v121 = vpack.c.b16 %v109, %v107
  %v122 = vpack.c.b16 %v110, %v108
  %v123 = vpack.c.b16 %v113, %v111
  %v124 = vpack.c.b16 %v114, %v112
  %v167 = vunpack.c.l.b16 %v53
  %v168 = vunpack.c.l.b16 %v54
  %v169 = vunpack.c.l.b16 %v55
  %v170 = vunpack.c.l.b16 %v56
  %v171 = vunpack.c.l.b16 %v57
  %v172 = vunpack.c.l.b16 %v58
  %v173 = vunpack.c.l.b16 %v59
  %v174 = vunpack.c.l.b16 %v60
  %v175 = vunpack.c.l.b16 %v61
  %v176 = vunpack.c.l.b16 %v62
  %v177 = vunpack.c.l.b16 %v63
  %v178 = vunpack.c.l.b16 %v64
  %v179 = vunpack.c.l.b16 %v65
  %v180 = vunpack.c.l.b16 %v66
  %v181 = vunpack.c.l.b16 %v67
  %v182 = vunpack.c.l.b16 %v68
  %v183 = vunpack.c.l.b16 %v69
  %v184 = vunpack.c.l.b16 %v70
  %v185 = vunpack.c.l.b16 %v71
  %v186 = vunpack.c.l.b16 %v72
  %v187 = vunpack.c.l.b16 %v73
  %v188 = vunpack.c.l.b16 %v74
  %v189 = vunpack.c.l.b16 %v75
  %v190 = vunpack.c.l.b16 %v76
  %v191 = vunpack.c.l.b16 %v77
  %v192 = vunpack.c.l.b16 %v78
  %v193 = vunpack.c.l.b16 %v79
  %v194 = vunpack.c.l.b16 %v80
  %v195 = vunpack.c.l.b16 %v81
  %v196 = vunpack.c.l.b16 %v82
  %v197 = vunpack.c.l.b16 %v83
  %v198 = vunpack.c.l.b16 %v84
  %v199 = vpack.c.b16 %v168, %v167
  %v200 = vpack.c.b16 %v170, %v169
  %v201 = vpack.c.b16 %v172, %v171
  %v202 = vpack.c.b16 %v174, %v173
  %v203 = vpack.c.b16 %v176, %v175
  %v204 = vpack.c.b16 %v178, %v177
  %v205 = vpack.c.b16 %v180, %v179
  %v206 = vpack.c.b16 %v182, %v181
  %v207 = vpack.c.b16 %v184, %v183
  %v208 = vpack.c.b16 %v186, %v185
  %v209 = vpack.c.b16 %v188, %v187
  %v210 = vpack.c.b16 %v190, %v189
  %v211 = vpack.c.b16 %v192, %v191
  %v212 = vpack.c.b16 %v194, %v193
  %v213 = vpack.c.b16 %v196, %v195
  %v214 = vpack.c.b16 %v198, %v197
  %231 = vmatprep.subr.bf16.mxu0 0
  %232 = vmatpush1.bf16.msra.mxu0 %v199
  %233 = vmatprep.subr.bf16.mxu0 0
  %234 = vmatpush1.bf16.msra.mxu0 %v200
  %235 = vmatprep.subr.bf16.mxu0 0
  %236 = vmatpush1.bf16.msra.mxu0 %v201
  %237 = vmatprep.subr.bf16.mxu0 0
  %238 = vmatpush1.bf16.msra.mxu0 %v202
  %239 = vmatprep.subr.bf16.mxu0 0
  %240 = vmatpush1.bf16.msra.mxu0 %v203
  %241 = vmatprep.subr.bf16.mxu0 0
  %242 = vmatpush1.bf16.msra.mxu0 %v204
  %243 = vmatprep.subr.bf16.mxu0 0
  %244 = vmatpush1.bf16.msra.mxu0 %v205
  %245 = vmatprep.subr.bf16.mxu0 0
  %246 = vmatpush1.bf16.msra.mxu0 %v206
  %247 = vmatprep.subr.bf16.mxu0 0
  %248 = vmatpush1.bf16.msra.mxu0 %v207
  %249 = vmatprep.subr.bf16.mxu0 0
  %250 = vmatpush1.bf16.msra.mxu0 %v208
  %251 = vmatprep.subr.bf16.mxu0 0
  %252 = vmatpush1.bf16.msra.mxu0 %v209
  %253 = vmatprep.subr.bf16.mxu0 0
  %254 = vmatpush1.bf16.msra.mxu0 %v210
  %255 = vmatprep.subr.bf16.mxu0 0
  %256 = vmatpush1.bf16.msra.mxu0 %v211
  %257 = vmatprep.subr.bf16.mxu0 0
  %258 = vmatpush1.bf16.msra.mxu0 %v212
  %259 = vmatprep.subr.bf16.mxu0 0
  %260 = vmatpush1.bf16.msra.mxu0 %v213
  %261 = vmatprep.subr.bf16.mxu0 0
  %262 = vmatpush1.bf16.msra.mxu0 %v214
  %263 = vmatprep.mubr.bf16.mxu0 %v116
  %264 = vmatmul.mubr.bf16.gmra.mrb[0].mxu0 %v115
  %v265 = vpop.f32.mrb[0].mxu0
  %v266 = vadd.f32 0.0, %v265
  %v267 = vpop.f32.mrb[0].mxu0
  %v268 = vpop.f32.mrb[0].mxu0
  %v269 = vadd.f32 0.0, %v268
  %v270 = vpop.f32.mrb[0].mxu0
  %271 = vmatprep.mubr.bf16.mxu0 %v118
  %272 = vmatmul.mubr.bf16.gmra.mrb[0].mxu0 %v117
  %v273 = vpop.f32.mrb[0].mxu0
  %v274 = vadd.f32 0.0, %v273
  %v275 = vpop.f32.mrb[0].mxu0
  %v276 = vpop.f32.mrb[0].mxu0
  %v277 = vadd.f32 0.0, %v276
  %v278 = vpop.f32.mrb[0].mxu0
  %279 = vmatprep.mubr.bf16.mxu0 %v120
  %280 = vmatmul.mubr.bf16.gmra.mrb[0].mxu0 %v119
  %v281 = vpop.f32.mrb[0].mxu0
  %v282 = vadd.f32 0.0, %v281
  %v283 = vpop.f32.mrb[0].mxu0
  %v284 = vpop.f32.mrb[0].mxu0
  %v285 = vadd.f32 0.0, %v284
  %v286 = vpop.f32.mrb[0].mxu0
  %287 = vmatprep.mubr.bf16.mxu0 %v122
  %288 = vmatmul.mubr.bf16.gmra.mrb[0].mxu0 %v121
  %v289 = vpop.f32.mrb[0].mxu0
  %v290 = vadd.f32 0.0, %v289
  %v291 = vpop.f32.mrb[0].mxu0
  %v292 = vpop.f32.mrb[0].mxu0
  %v293 = vadd.f32 0.0, %v292
  %v294 = vpop.f32.mrb[0].mxu0
  %295 = vmatprep.mubr.bf16.mxu0 %v124
  %296 = vmatmul.mubr.bf16.gmra.mrb[0].mxu0 %v123
  %v297 = vpop.f32.mrb[0].mxu0
  %v298 = vadd.f32 0.0, %v297
  %v299 = vpop.f32.mrb[0].mxu0
  %v300 = vpop.f32.mrb[0].mxu0
  %v301 = vadd.f32 0.0, %v300
  %v302 = vpop.f32.mrb[0].mxu0
  %303 = vdwg.mxu0
  %v304 = vadd.f32 %v33, %v266
  %v305 = vadd.f32 %v34, %v269
  %v306 = vadd.f32 %v35, %v274
  %v307 = vadd.f32 %v36, %v277
  %v308 = vadd.f32 %v37, %v282
  %v309 = vadd.f32 %v38, %v285
  %v310 = vadd.f32 %v39, %v290
  %v311 = vadd.f32 %v40, %v293
  %v312 = vadd.f32 %v41, %v298
  %v313 = vadd.f32 %v42, %v301
  %vm314 = vcmask 523264
  %315 = vst.msk [vmem:[#allocation2] sm:$0xff] %vm314, %v304
  %316 = vst.msk [vmem:[#allocation2 + $0x8] sm:$0xff] %vm314, %v305
  %317 = vst.msk [vmem:[#allocation2 + $0x10] sm:$0xff] %vm314, %v306
  %318 = vst.msk [vmem:[#allocation2 + $0x18] sm:$0xff] %vm314, %v307
  %319 = vst.msk [vmem:[#allocation2 + $0x20] sm:$0xff] %vm314, %v308
  %320 = vst.msk [vmem:[#allocation2 + $0x28] sm:$0xff] %vm314, %v309
  %321 = vst.msk [vmem:[#allocation2 + $0x30] sm:$0xff] %vm314, %v310
  %322 = vst.msk [vmem:[#allocation2 + $0x38] sm:$0xff] %vm314, %v311
  %323 = vst.msk [vmem:[#allocation2 + $0x40] sm:$0xff] %vm314, %v312
  %324 = vst.msk [vmem:[#allocation2 + $0x48] sm:$0xff] %vm314, %v313
  // Predicated region
  $region22: #{forward.42} parent=0 // pred_check
    %p325 = pneg %p18
  $region23: #{forward.42} parent=0 // pred_check_branch
    %327 = sbr.rel (%p325) target = $region25
  $region24: #{forward.42} parent=0 // pred_region
    %v328 = vld [vmem:[#allocation2] sm:$0xff]
    %v329 = vld [vmem:[#allocation2 + $0x8] sm:$0xff]
    %v330 = vld [vmem:[#allocation2 + $0x10] sm:$0xff]
    %v331 = vld [vmem:[#allocation2 + $0x18] sm:$0xff]
    %v332 = vld [vmem:[#allocation2 + $0x20] sm:$0xff]
    %v333 = vld [vmem:[#allocation2 + $0x28] sm:$0xff]
    %v334 = vld [vmem:[#allocation2 + $0x30] sm:$0xff]
    %v335 = vld [vmem:[#allocation2 + $0x38] sm:$0xff]
    %v336 = vld [vmem:[#allocation2 + $0x40] sm:$0xff]
    %v337 = vld [vmem:[#allocation2 + $0x48] sm:$0xff]
    %v338 = vld [vmem:[%s2] sm:$0x1]
    %v340 = vlaneseq
    %v341 = vshrl.u32 %v340, 7
    %v342 = vsub.s32 0, %v341
    %v343 = vrot.slane %v338, %v342
    %v345 = vadd.f32 %v328, %v343
    %v346 = vadd.f32 %v329, %v343
    %v347 = vadd.f32 %v330, %v343
    %v348 = vadd.f32 %v331, %v343
    %v349 = vadd.f32 %v332, %v343
    %v350 = vadd.f32 %v333, %v343
    %v351 = vadd.f32 %v334, %v343
    %v352 = vadd.f32 %v335, %v343
    %v353 = vadd.f32 %v336, %v343
    %v354 = vadd.f32 %v337, %v343
    %v355 = vld [vmem:[%s3] sm:$0xff]
    %v356 = vld [vmem:[%s3 + $0x8] sm:$0xff]
    %v357 = vld [vmem:[%s3 + $0x10] sm:$0xff]
    %v358 = vld [vmem:[%s3 + $0x18] sm:$0xff]
    %v359 = vld [vmem:[%s3 + $0x20] sm:$0xff]
    %v360 = vld [vmem:[%s3 + $0x28] sm:$0xff]
    %v361 = vld [vmem:[%s3 + $0x30] sm:$0xff]
    %v362 = vld [vmem:[%s3 + $0x38] sm:$0xff]
    %v363 = vld [vmem:[%s3 + $0x40] sm:$0xff]
    %v364 = vld [vmem:[%s3 + $0x48] sm:$0xff]
    %v365 = vadd.f32 %v345, %v355
    %v366 = vadd.f32 %v346, %v356
    %v367 = vadd.f32 %v347, %v357
    %v368 = vadd.f32 %v348, %v358
    %v369 = vadd.f32 %v349, %v359
    %v370 = vadd.f32 %v350, %v360
    %v371 = vadd.f32 %v351, %v361
    %v372 = vadd.f32 %v352, %v362
    %v373 = vadd.f32 %v353, %v363
    %v374 = vadd.f32 %v354, %v364
    %375 = vst.msk [vmem:[%s4] sm:$0xff] %vm314, %v365
    %376 = vst.msk [vmem:[%s4 + $0x8] sm:$0xff] %vm314, %v366
    %377 = vst.msk [vmem:[%s4 + $0x10] sm:$0xff] %vm314, %v367
    %378 = vst.msk [vmem:[%s4 + $0x18] sm:$0xff] %vm314, %v368
    %379 = vst.msk [vmem:[%s4 + $0x20] sm:$0xff] %vm314, %v369
    %380 = vst.msk [vmem:[%s4 + $0x28] sm:$0xff] %vm314, %v370
    %381 = vst.msk [vmem:[%s4 + $0x30] sm:$0xff] %vm314, %v371
    %382 = vst.msk [vmem:[%s4 + $0x38] sm:$0xff] %vm314, %v372
    %383 = vst.msk [vmem:[%s4 + $0x40] sm:$0xff] %vm314, %v373
    %384 = vst.msk [vmem:[%s4 + $0x48] sm:$0xff] %vm314, %v374
  $region25: #{forward.42} parent=0 // pred_fallthru
    _
  // Predicated region
  $region26: #{forward.42} parent=0 // pred_check
    _
  $region27: #{forward.42} parent=0 // pred_check_branch
    %386 = sbr.rel (0) target = $region29
  $region28: #{forward.42} parent=0 // pred_region
    _
  $region29: #{forward.42} parent=0 // pred_fallthru
    _
  // Predicated region
  $region30: #{forward.42} parent=0 // pred_check
    _
  $region31: #{forward.42} parent=0 // pred_check_branch
    %388 = sbr.rel (0) target = $region33
  $region32: #{forward.42} parent=0 // pred_region
    _
  $region33: #{forward.42} parent=0 // pred_fallthru
    _

// kernel: forward.67
$region0: #{forward.67}
  #allocation0 [shape = 'u32[]', space=smem, size = 0x4, offset = 0x4, fixed_abs, tag = 'smem constant byte address 0x4 - core index']
  #allocation1 [shape = 'u32[144,128]{1,0:T(1,128)}', space=vmem, size = 0x12000, scoped, tag = 'internal scratch']
  #allocation2 [shape = 'f32[64,96]{1,0:T(8,128)}', space=vmem, size = 0x8000, scoped, tag = 'scratch operand']
  %s0 = inlined_call_operand.vmem [shape: bf16[64,64], index: 0, kind: input, shape index: {}]
  %s1 = inlined_call_operand.vmem [shape: bf16[64,96], index: 1, kind: input, shape index: {}]
  %s2 = inlined_call_operand.vmem [shape: f32[1,96], index: 2, kind: input, shape index: {}]
  %s3 = inlined_call_operand.vmem [shape: f32[64,96], index: 3, kind: output, shape index: {}]
  %s4 = sld [smem:[#allocation0]]
  $region30: #{forward.67} parent=0
    _
  %s6 = ssub.s32 1, %s4
  %s7 = scalar_select 0, %s6, %s4
  // Predicated region
  $region2: #{forward.67} parent=0 // pred_check
    _
  $region3: #{forward.67} parent=0 // pred_check_branch
    %9 = sbr.rel (0) target = $region5
  $region4: #{forward.67} parent=0 // pred_region
    _
  $region5: #{forward.67} parent=0 // pred_fallthru
    _
  // Predicated region
  $region6: #{forward.67} parent=0 // pred_check
    _
  $region7: #{forward.67} parent=0 // pred_check_branch
    %11 = sbr.rel (0) target = $region9
  $region8: #{forward.67} parent=0 // pred_region
    _
  $region9: #{forward.67} parent=0 // pred_fallthru
    _
  // Predicated region
  $region10: #{forward.67} parent=0 // pred_check
    _
  $region11: #{forward.67} parent=0 // pred_check_branch
    %13 = sbr.rel (0) target = $region13
  $region12: #{forward.67} parent=0 // pred_region
    _
  $region13: #{forward.67} parent=0 // pred_fallthru
    _
  %p15 = scmp.eq.s32.totalorder 0, 0
  // Predicated region
  $region14: #{forward.67} parent=0 // pred_check
    %p16 = pneg %p15
  $region15: #{forward.67} parent=0 // pred_check_branch
    %18 = sbr.rel (%p16) target = $region17
  $region16: #{forward.67} parent=0 // pred_region
    %vm19 = vcmask 785408
    %20 = vst.msk [vmem:[#allocation2] sm:$0xff] %vm19, 0.0
    %21 = vst.msk [vmem:[#allocation2 + $0x8] sm:$0xff] %vm19, 0.0
    %22 = vst.msk [vmem:[#allocation2 + $0x10] sm:$0xff] %vm19, 0.0
    %23 = vst.msk [vmem:[#allocation2 + $0x18] sm:$0xff] %vm19, 0.0
    %24 = vst.msk [vmem:[#allocation2 + $0x20] sm:$0xff] %vm19, 0.0
    %25 = vst.msk [vmem:[#allocation2 + $0x28] sm:$0xff] %vm19, 0.0
    %26 = vst.msk [vmem:[#allocation2 + $0x30] sm:$0xff] %vm19, 0.0
    %27 = vst.msk [vmem:[#allocation2 + $0x38] sm:$0xff] %vm19, 0.0
  $region17: #{forward.67} parent=0 // pred_fallthru
    _
  %v28 = vld [vmem:[#allocation2] sm:$0xff]
  %v29 = vld [vmem:[#allocation2 + $0x8] sm:$0xff]
  %v30 = vld [vmem:[#allocation2 + $0x10] sm:$0xff]
  %v31 = vld [vmem:[#allocation2 + $0x18] sm:$0xff]
  %v32 = vld [vmem:[#allocation2 + $0x20] sm:$0xff]
  %v33 = vld [vmem:[#allocation2 + $0x28] sm:$0xff]
  %v34 = vld [vmem:[#allocation2 + $0x30] sm:$0xff]
  %v35 = vld [vmem:[#allocation2 + $0x38] sm:$0xff]
  %v36 = vld [vmem:[%s0] sm:$0xf]
  %v37 = vld [vmem:[%s0 + $0x4] sm:$0xf]
  %v38 = vld [vmem:[%s0 + $0x8] sm:$0xf]
  %v39 = vld [vmem:[%s0 + $0xc] sm:$0xf]
  %v40 = vld [vmem:[%s0 + $0x10] sm:$0xf]
  %v41 = vld [vmem:[%s0 + $0x14] sm:$0xf]
  %v42 = vld [vmem:[%s0 + $0x18] sm:$0xf]
  %v43 = vld [vmem:[%s0 + $0x1c] sm:$0xf]
  %v44 = vld [vmem:[%s1] sm:$0xf]
  %v45 = vld [vmem:[%s1 + $0x4] sm:$0xf]
  %v46 = vld [vmem:[%s1 + $0x8] sm:$0xf]
  %v47 = vld [vmem:[%s1 + $0xc] sm:$0xf]
  %v48 = vld [vmem:[%s1 + $0x10] sm:$0xf]
  %v49 = vld [vmem:[%s1 + $0x14] sm:$0xf]
  %v50 = vld [vmem:[%s1 + $0x18] sm:$0xf]
  %v51 = vld [vmem:[%s1 + $0x1c] sm:$0xf]
  %v60 = vunpack.c.l.b16 %v36
  %v61 = vunpack.c.l.b16 %v37
  %v62 = vunpack.c.l.b16 %v38
  %v63 = vunpack.c.l.b16 %v39
  %v64 = vunpack.c.l.b16 %v40
  %v65 = vunpack.c.l.b16 %v41
  %v66 = vunpack.c.l.b16 %v42
  %v67 = vunpack.c.l.b16 %v43
  %v68 = vpack.c.b16 %v61, %v60
  %v69 = vpack.c.b16 %v63, %v62
  %v70 = vpack.c.b16 %v65, %v64
  %v71 = vpack.c.b16 %v67, %v66
  %v80 = vunpack.c.l.b16 %v44
  %v81 = vunpack.c.l.b16 %v45
  %v82 = vunpack.c.l.b16 %v46
  %v83 = vunpack.c.l.b16 %v47
  %v84 = vunpack.c.l.b16 %v48
  %v85 = vunpack.c.l.b16 %v49
  %v86 = vunpack.c.l.b16 %v50
  %v87 = vunpack.c.l.b16 %v51
  %v88 = vpack.c.b16 %v81, %v80
  %v89 = vpack.c.b16 %v83, %v82
  %v90 = vpack.c.b16 %v85, %v84
  %v91 = vpack.c.b16 %v87, %v86
  %vm96 = vcmask 523264
  %v98 = vsel %vm96, %v68, 0
  %v101 = vsel %vm96, %v69, 0
  %v104 = vsel %vm96, %v70, 0
  %v107 = vsel %vm96, %v71, 0
  %109 = vmatprep.subr.bf16.mxu0 0
  %110 = vmatpush1.bf16.msra.mxu0 %v88
  %111 = vmatprep.subr.bf16.mxu0 0
  %112 = vmatpush1.bf16.msra.mxu0 %v89
  %113 = vmatprep.subr.bf16.mxu0 0
  %114 = vmatpush1.bf16.msra.mxu0 %v90
  %115 = vmatprep.subr.bf16.mxu0 0
  %116 = vmatpush1.bf16.msra.mxu0 %v91
  %117 = vmatprep.subr.bf16.mxu0 0
  %118 = vmatpush1.bf16.msra.mxu0 0
  %119 = vmatprep.subr.bf16.mxu0 0
  %120 = vmatpush1.bf16.msra.mxu0 0
  %121 = vmatprep.subr.bf16.mxu0 0
  %122 = vmatpush1.bf16.msra.mxu0 0
  %123 = vmatprep.subr.bf16.mxu0 0
  %124 = vmatpush1.bf16.msra.mxu0 0
  %125 = vmatprep.subr.bf16.mxu0 0
  %126 = vmatpush1.bf16.msra.mxu0 0
  %127 = vmatprep.subr.bf16.mxu0 0
  %128 = vmatpush1.bf16.msra.mxu0 0
  %129 = vmatprep.subr.bf16.mxu0 0
  %130 = vmatpush1.bf16.msra.mxu0 0
  %131 = vmatprep.subr.bf16.mxu0 0
  %132 = vmatpush1.bf16.msra.mxu0 0
  %133 = vmatprep.subr.bf16.mxu0 0
  %134 = vmatpush1.bf16.msra.mxu0 0
  %135 = vmatprep.subr.bf16.mxu0 0
  %136 = vmatpush1.bf16.msra.mxu0 0
  %137 = vmatprep.subr.bf16.mxu0 0
  %138 = vmatpush1.bf16.msra.mxu0 0
  %139 = vmatprep.subr.bf16.mxu0 0
  %140 = vmatpush1.bf16.msra.mxu0 0
  %141 = vmatprep.mubr.bf16.mxu0 0
  %142 = vmatmul.mubr.bf16.gmra.mrb[0].mxu0 %v98
  %v143 = vpop.f32.mrb[0].mxu0
  %v144 = vadd.f32 0.0, %v143
  %v145 = vpop.f32.mrb[0].mxu0
  %v146 = vpop.f32.mrb[0].mxu0
  %v147 = vadd.f32 0.0, %v146
  %v148 = vpop.f32.mrb[0].mxu0
  %149 = vmatprep.mubr.bf16.mxu0 0
  %150 = vmatmul.mubr.bf16.gmra.mrb[0].mxu0 %v101
  %v151 = vpop.f32.mrb[0].mxu0
  %v152 = vadd.f32 0.0, %v151
  %v153 = vpop.f32.mrb[0].mxu0
  %v154 = vpop.f32.mrb[0].mxu0
  %v155 = vadd.f32 0.0, %v154
  %v156 = vpop.f32.mrb[0].mxu0
  %157 = vmatprep.mubr.bf16.mxu0 0
  %158 = vmatmul.mubr.bf16.gmra.mrb[0].mxu0 %v104
  %v159 = vpop.f32.mrb[0].mxu0
  %v160 = vadd.f32 0.0, %v159
  %v161 = vpop.f32.mrb[0].mxu0
  %v162 = vpop.f32.mrb[0].mxu0
  %v163 = vadd.f32 0.0, %v162
  %v164 = vpop.f32.mrb[0].mxu0
  %165 = vmatprep.mubr.bf16.mxu0 0
  %166 = vmatmul.mubr.bf16.gmra.mrb[0].mxu0 %v107
  %v167 = vpop.f32.mrb[0].mxu0
  %v168 = vadd.f32 0.0, %v167
  %v169 = vpop.f32.mrb[0].mxu0
  %v170 = vpop.f32.mrb[0].mxu0
  %v171 = vadd.f32 0.0, %v170
  %v172 = vpop.f32.mrb[0].mxu0
  %173 = vdwg.mxu0
  %v174 = vadd.f32 %v28, %v144
  %v175 = vadd.f32 %v29, %v147
  %v176 = vadd.f32 %v30, %v152
  %v177 = vadd.f32 %v31, %v155
  %v178 = vadd.f32 %v32, %v160
  %v179 = vadd.f32 %v33, %v163
  %v180 = vadd.f32 %v34, %v168
  %v181 = vadd.f32 %v35, %v171
  %vm182 = vcmask 785408
  %183 = vst.msk [vmem:[#allocation2] sm:$0xff] %vm182, %v174
  %184 = vst.msk [vmem:[#allocation2 + $0x8] sm:$0xff] %vm182, %v175
  %185 = vst.msk [vmem:[#allocation2 + $0x10] sm:$0xff] %vm182, %v176
  %186 = vst.msk [vmem:[#allocation2 + $0x18] sm:$0xff] %vm182, %v177
  %187 = vst.msk [vmem:[#allocation2 + $0x20] sm:$0xff] %vm182, %v178
  %188 = vst.msk [vmem:[#allocation2 + $0x28] sm:$0xff] %vm182, %v179
  %189 = vst.msk [vmem:[#allocation2 + $0x30] sm:$0xff] %vm182, %v180
  %190 = vst.msk [vmem:[#allocation2 + $0x38] sm:$0xff] %vm182, %v181
  // Predicated region
  $region18: #{forward.67} parent=0 // pred_check
    %p191 = pneg %p15
  $region19: #{forward.67} parent=0 // pred_check_branch
    %193 = sbr.rel (%p191) target = $region21
  $region20: #{forward.67} parent=0 // pred_region
    %v194 = vld [vmem:[#allocation2] sm:$0xff]
    %v195 = vld [vmem:[#allocation2 + $0x8] sm:$0xff]
    %v196 = vld [vmem:[#allocation2 + $0x10] sm:$0xff]
    %v197 = vld [vmem:[#allocation2 + $0x18] sm:$0xff]
    %v198 = vld [vmem:[#allocation2 + $0x20] sm:$0xff]
    %v199 = vld [vmem:[#allocation2 + $0x28] sm:$0xff]
    %v200 = vld [vmem:[#allocation2 + $0x30] sm:$0xff]
    %v201 = vld [vmem:[#allocation2 + $0x38] sm:$0xff]
    %v202 = vld [vmem:[%s2] sm:$0x1]
    %v204 = vlaneseq
    %v205 = vshrl.u32 %v204, 7
    %v206 = vsub.s32 0, %v205
    %v207 = vrot.slane %v202, %v206
    %v209 = vadd.f32 %v194, %v207
    %v210 = vadd.f32 %v195, %v207
    %v211 = vadd.f32 %v196, %v207
    %v212 = vadd.f32 %v197, %v207
    %v213 = vadd.f32 %v198, %v207
    %v214 = vadd.f32 %v199, %v207
    %v215 = vadd.f32 %v200, %v207
    %v216 = vadd.f32 %v201, %v207
    %217 = vst.msk [vmem:[%s3] sm:$0xff] %vm182, %v209
    %218 = vst.msk [vmem:[%s3 + $0x8] sm:$0xff] %vm182, %v210
    %219 = vst.msk [vmem:[%s3 + $0x10] sm:$0xff] %vm182, %v211
    %220 = vst.msk [vmem:[%s3 + $0x18] sm:$0xff] %vm182, %v212
    %221 = vst.msk [vmem:[%s3 + $0x20] sm:$0xff] %vm182, %v213
    %222 = vst.msk [vmem:[%s3 + $0x28] sm:$0xff] %vm182, %v214
    %223 = vst.msk [vmem:[%s3 + $0x30] sm:$0xff] %vm182, %v215
    %224 = vst.msk [vmem:[%s3 + $0x38] sm:$0xff] %vm182, %v216
  $region21: #{forward.67} parent=0 // pred_fallthru
    _
  // Predicated region
  $region22: #{forward.67} parent=0 // pred_check
    _
  $region23: #{forward.67} parent=0 // pred_check_branch
    %226 = sbr.rel (0) target = $region25
  $region24: #{forward.67} parent=0 // pred_region
    _
  $region25: #{forward.67} parent=0 // pred_fallthru
    _
  // Predicated region
  $region26: #{forward.67} parent=0 // pred_check
    _
  $region27: #{forward.67} parent=0 // pred_check_branch
    %228 = sbr.rel (0) target = $region29
  $region28: #{forward.67} parent=0 // pred_region
    _
  $region29: #{forward.67} parent=0 // pred_fallthru
    _

</llo_original>
